<compile_context>
chip_gen: v5e
topology: v5e:2x2
jax: 0.10.0
libtpu: 0.0.40
codegen_flags: <defaults>
</compile_context>

<pallas_src>
import math
from functools import partial

import numpy as np
import jax
import jax.numpy as jnp
from jax.experimental import pallas as pl
from jax.experimental.pallas import tpu as pltpu


# ----------------------------- config ---------------------------------------
class Config:
    vocab_size = 64
    hidden_size = 32
    intermediate_size = 64
    num_hidden_layers = 2
    num_attention_heads = 4
    num_key_value_heads = 2
    max_position_embeddings = 4096
    rope_theta = 100000.0
    rope_scaling = None
    rms_norm_eps = 1e-6
    hidden_act = "silu"
    attention_dropout = 0.0   # dropout p=0 -> identity
    resid_pdrop = 0.0
    embd_pdrop = 0.0
    initializer_range = 0.02


# ----------------------------- fused kernel ----------------------------------
def _fused_model_kernel(x_ref, cos_ref, sin_ref, rq_ref, rk_ref,
                        wq_ref, wk_ref, wv_ref, wo_ref, wg_ref, wu_ref, wd_ref,
                        ln1_ref, ln2_ref, normw_ref,
                        out_ref, kcache_ref, vcache_ref,
                        *, num_layers, num_heads, num_kv_heads, head_dim, eps):
    """One grid step == one batch row.  Everything stays in VMEM/vregs."""
    S = x_ref.shape[1]
    groups = num_heads // num_kv_heads
    kv_width = num_kv_heads * head_dim
    scale = 1.0 / math.sqrt(head_dim)

    hid = x_ref[0].astype(jnp.float32)            # (S, H)
    cos_q = cos_ref[0]                            # (S, nh*hd), per-head tiled
    sin_q = sin_ref[0]
    cos_k = cos_q[:, :kv_width]                   # same tiling, first nkv heads
    sin_k = sin_q[:, :kv_width]
    rq = rq_ref[...]                              # rotate_half permutation (+/-1)
    rk = rk_ref[...]

    # causal mask, shared across layers / heads
    row = jax.lax.broadcasted_iota(jnp.int32, (S, S), 0)
    col = jax.lax.broadcasted_iota(jnp.int32, (S, S), 1)
    causal = col <= row

    def rmsnorm(x, w):                            # x: (S,H), w: (1,H)
        var = jnp.mean(x * x, axis=-1, keepdims=True)
        return w * (x * jax.lax.rsqrt(var + eps))

    for l in range(num_layers):                   # static unroll (L small)
        # ---------------- attention block ----------------
        residual = hid
        xn = rmsnorm(hid, ln1_ref[l])

        q = jnp.dot(xn, wq_ref[l], preferred_element_type=jnp.float32)   # (S, nh*hd)
        k = jnp.dot(xn, wk_ref[l], preferred_element_type=jnp.float32)   # (S, nkv*hd)
        v = jnp.dot(xn, wv_ref[l], preferred_element_type=jnp.float32)   # (S, nkv*hd)

        # RoPE: rotate_half(q) == q @ Rq (constant permutation w/ sign flip)
        q = q * cos_q + jnp.dot(q, rq, preferred_element_type=jnp.float32) * sin_q
        k = k * cos_k + jnp.dot(k, rk, preferred_element_type=jnp.float32) * sin_k

        # KV cache written straight from the kernel (compact layout, no pad)
        kcache_ref[l, 0] = k.astype(kcache_ref.dtype)
        vcache_ref[l, 0] = v.astype(vcache_ref.dtype)

        wo_l = wo_ref[l]                          # (nh*hd, H)

        # per-head causal attention; o_proj accumulated per head so the
        # concatenated attention tensor is never materialized.
        attn_o = residual                         # fused residual add
        for hh in range(num_heads):
            g = hh // groups                      # GQA: kv head for this q head
            q_h = q[:, hh * head_dim:(hh + 1) * head_dim]      # (S, hd)
            k_g = k[:, g * head_dim:(g + 1) * head_dim]        # (S, hd)
            v_g = v[:, g * head_dim:(g + 1) * head_dim]        # (S, hd)

            s = jax.lax.dot_general(q_h, k_g, (((1,), (1,)), ((), ())),
                                    preferred_element_type=jnp.float32) * scale
            s = jnp.where(causal, s, -1e30)
            m = jnp.max(s, axis=-1, keepdims=True)
            p = jnp.exp(s - m)
            denom = jnp.sum(p, axis=-1, keepdims=True)
            o_h = jnp.dot(p, v_g, preferred_element_type=jnp.float32) / denom

            attn_o = attn_o + jnp.dot(o_h, wo_l[hh * head_dim:(hh + 1) * head_dim, :],
                                      preferred_element_type=jnp.float32)
        hid = attn_o

        # ---------------- MLP block ----------------
        residual = hid
        xn = rmsnorm(hid, ln2_ref[l])
        gate = jnp.dot(xn, wg_ref[l], preferred_element_type=jnp.float32)  # (S, I)
        up = jnp.dot(xn, wu_ref[l], preferred_element_type=jnp.float32)    # (S, I)
        inter = up * (gate * jax.nn.sigmoid(gate))                         # SiLU-gated
        hid = residual + jnp.dot(inter, wd_ref[l],
                                 preferred_element_type=jnp.float32)

    out_ref[0] = rmsnorm(hid, normw_ref[...]).astype(out_ref.dtype)


# ----------------------------- params ----------------------------------------
def _rotate_half_matrix(n_heads, head_dim):
    """R such that (q @ R) == rotate_half(q) applied per head on a flat
    (S, n_heads*head_dim) layout."""
    d = n_heads * head_dim
    half = head_dim // 2
    R = np.zeros((d, d), np.float32)
    for h in range(n_heads):
        base = h * head_dim
        for j in range(half):
            R[base + half + j, base + j] = -1.0   # out[j]        = -q[j+half]
            R[base + j, base + half + j] = 1.0    # out[j+half]   =  q[j]
    return jnp.asarray(R)


def init_params(cfg, key):
    std = cfg.initializer_range
    H, I = cfg.hidden_size, cfg.intermediate_size
    nh, nkv = cfg.num_attention_heads, cfg.num_key_value_heads
    hd = H // nh
    L = cfg.num_hidden_layers
    q_sz, kv_sz = nh * hd, nkv * hd
    op_size = q_sz + 2 * kv_sz

    key, k_emb = jax.random.split(key)
    embed = std * jax.random.normal(k_emb, (cfg.vocab_size, H), jnp.float32)

    wq, wk, wv, wo, wg, wu, wd, ln1, ln2 = ([] for _ in range(9))
    for _ in range(L):
        key, k1, k2, k3, k4 = jax.random.split(key, 5)
        w_qkv = std * jax.random.normal(k1, (op_size, H), jnp.float32)  # torch (out,in)
        w_o = std * jax.random.normal(k2, (H, q_sz), jnp.float32)
        w_gu = std * jax.random.normal(k3, (2 * I, H), jnp.float32)
        w_dn = std * jax.random.normal(k4, (H, I), jnp.float32)
        # split fused projections + transpose ONCE to (in, out) for x @ W
        wq.append(w_qkv[:q_sz].T)
        wk.append(w_qkv[q_sz:q_sz + kv_sz].T)
        wv.append(w_qkv[q_sz + kv_sz:].T)
        wo.append(w_o.T)
        wg.append(w_gu[:I].T)
        wu.append(w_gu[I:].T)
        wd.append(w_dn.T)
        ln1.append(jnp.ones((1, H), jnp.float32))
        ln2.append(jnp.ones((1, H), jnp.float32))

    return {
        "embed_tokens": embed,
        "wq": jnp.stack(wq), "wk": jnp.stack(wk), "wv": jnp.stack(wv),
        "wo": jnp.stack(wo), "wg": jnp.stack(wg), "wu": jnp.stack(wu),
        "wd": jnp.stack(wd),
        "ln1": jnp.stack(ln1), "ln2": jnp.stack(ln2),
        "norm": jnp.ones((1, H), jnp.float32),
        "rq": _rotate_half_matrix(nh, hd),
        "rk": _rotate_half_matrix(nkv, hd),
    }


# ----------------------------- model forward ---------------------------------
def model_forward(params, cfg, input_ids):
    B, S = input_ids.shape
    H = cfg.hidden_size
    nh, nkv = cfg.num_attention_heads, cfg.num_key_value_heads
    hd = H // nh
    L = cfg.num_hidden_layers
    kv_width = nkv * hd

    # --- glue (plain JAX, fused by XLA): embedding gather + rotary table ---
    # embed dropout p=0 -> identity
    x = jnp.take(params["embed_tokens"], input_ids, axis=0)          # (B,S,H) f32
    pos = jnp.broadcast_to(jnp.arange(S, dtype=jnp.float32)[None, :], (B, S))
    inv_freq = 1.0 / (cfg.rope_theta **
                      (jnp.arange(0, hd, 2, dtype=jnp.float32) / hd))
    freqs = pos[:, :, None] * inv_freq[None, None, :]                # (B,S,hd/2)
    emb = jnp.concatenate([freqs, freqs], axis=-1)                   # (B,S,hd)
    cos = jnp.tile(jnp.cos(emb), (1, 1, nh))                         # (B,S,nh*hd)
    sin = jnp.tile(jnp.sin(emb), (1, 1, nh))

    def full_spec(arr):        # whole array, constant index_map -> DMA'd once
        shp = arr.shape
        return pl.BlockSpec(shp, lambda b, _n=len(shp): (0,) * _n)

    def batch_spec(arr):       # one batch row per grid step
        shp = arr.shape
        return pl.BlockSpec((1,) + shp[1:], lambda b: (b, 0, 0))

    kernel = partial(_fused_model_kernel,
                     num_layers=L, num_heads=nh, num_kv_heads=nkv,
                     head_dim=hd, eps=cfg.rms_norm_eps)

    out_shape = (
        jax.ShapeDtypeStruct((B, S, H), jnp.float32),                # hidden
        jax.ShapeDtypeStruct((L, B, S, kv_width), jnp.float32),      # k cache
        jax.ShapeDtypeStruct((L, B, S, kv_width), jnp.float32),      # v cache
    )
    out_specs = (
        pl.BlockSpec((1, S, H), lambda b: (b, 0, 0)),
        pl.BlockSpec((L, 1, S, kv_width), lambda b: (0, b, 0, 0)),
        pl.BlockSpec((L, 1, S, kv_width), lambda b: (0, b, 0, 0)),
    )
    in_specs = [
        batch_spec(x), batch_spec(cos), batch_spec(sin),
        full_spec(params["rq"]), full_spec(params["rk"]),
        full_spec(params["wq"]), full_spec(params["wk"]), full_spec(params["wv"]),
        full_spec(params["wo"]), full_spec(params["wg"]), full_spec(params["wu"]),
        full_spec(params["wd"]),
        full_spec(params["ln1"]), full_spec(params["ln2"]),
        full_spec(params["norm"]),
    ]

    hidden, kc, vc = pl.pallas_call(
        kernel,
        grid=(B,),
        out_shape=out_shape,
        in_specs=in_specs,
        out_specs=out_specs,
        compiler_params=pltpu.CompilerParams(
            dimension_semantics=("parallel",)),     # feed both TCs on v7x
    )(x, cos, sin, params["rq"], params["rk"],
      params["wq"], params["wk"], params["wv"], params["wo"],
      params["wg"], params["wu"], params["wd"],
      params["ln1"], params["ln2"], params["norm"])

    # caches back to the torch layout (B, S, nkv, hd); cheap metadata reshape
    caches = [(kc[l].reshape(B, S, nkv, hd), vc[l].reshape(B, S, nkv, hd))
              for l in range(L)]
    return hidden, caches


# ----------------------------- main ------------------------------------------
if __name__ == "__main__":
    cfg = Config()
    key = jax.random.PRNGKey(0)
    key, pk, ik = jax.random.split(key, 3)

    params = init_params(cfg, pk)
    B, S = 2, 8
    input_ids = jax.random.randint(ik, (B, S), 0, cfg.vocab_size, dtype=jnp.int32)

    fwd = jax.jit(lambda ids: model_forward(params, cfg, ids))
    hidden_states, caches = fwd(input_ids)
    jax.block_until_ready((hidden_states, caches))

    assert hidden_states.shape == (B, S, cfg.hidden_size)
    assert bool(jnp.isfinite(hidden_states).all())
    assert len(caches) == cfg.num_hidden_layers
    assert caches[0][0].shape == (
        B, S, cfg.num_key_value_heads, cfg.hidden_size // cfg.num_attention_heads
    )
    assert caches[0][1].shape == caches[0][0].shape
    print("KERNEL_OK")
</pallas_src>

<mosaic_0001>
module attributes {stable_mosaic.version = 11 : i64} {
  func.func @_fused_model_kernel(%arg0: i32, %arg1: memref<1x8x32xf32, #tpu.memory_space<vmem>>, %arg2: memref<1x8x32xf32, #tpu.memory_space<vmem>>, %arg3: memref<1x8x32xf32, #tpu.memory_space<vmem>>, %arg4: memref<32x32xf32, #tpu.memory_space<vmem>>, %arg5: memref<16x16xf32, #tpu.memory_space<vmem>>, %arg6: memref<2x32x32xf32, #tpu.memory_space<vmem>>, %arg7: memref<2x32x16xf32, #tpu.memory_space<vmem>>, %arg8: memref<2x32x16xf32, #tpu.memory_space<vmem>>, %arg9: memref<2x32x32xf32, #tpu.memory_space<vmem>>, %arg10: memref<2x32x64xf32, #tpu.memory_space<vmem>>, %arg11: memref<2x32x64xf32, #tpu.memory_space<vmem>>, %arg12: memref<2x64x32xf32, #tpu.memory_space<vmem>>, %arg13: memref<2x1x32xf32, #tpu.memory_space<vmem>>, %arg14: memref<2x1x32xf32, #tpu.memory_space<vmem>>, %arg15: memref<1x32xf32, #tpu.memory_space<vmem>>, %arg16: memref<1x8x32xf32, #tpu.memory_space<vmem>>, %arg17: memref<2x1x8x16xf32, #tpu.memory_space<vmem>>, %arg18: memref<2x1x8x16xf32, #tpu.memory_space<vmem>>) attributes {dimension_semantics = [#tpu.dimension_semantics<parallel>], iteration_bounds = array<i64: 2>, scalar_prefetch = 0 : i64, scratch_operands = 0 : i64, tpu.core_type = #tpu.core_type<tc>, window_params = [{transform_indices = @transform_0, window_bounds = array<i64: 1, 8, 32>}, {transform_indices = @transform_1, window_bounds = array<i64: 1, 8, 32>}, {transform_indices = @transform_2, window_bounds = array<i64: 1, 8, 32>}, {pipeline_mode = #tpu.pipeline_mode<synchronous>, transform_indices = @transform_3, window_bounds = array<i64: 32, 32>}, {pipeline_mode = #tpu.pipeline_mode<synchronous>, transform_indices = @transform_4, window_bounds = array<i64: 16, 16>}, {pipeline_mode = #tpu.pipeline_mode<synchronous>, transform_indices = @transform_5, window_bounds = array<i64: 2, 32, 32>}, {pipeline_mode = #tpu.pipeline_mode<synchronous>, transform_indices = @transform_6, window_bounds = array<i64: 2, 32, 16>}, {pipeline_mode = #tpu.pipeline_mode<synchronous>, transform_indices = @transform_7, window_bounds = array<i64: 2, 32, 16>}, {pipeline_mode = #tpu.pipeline_mode<synchronous>, transform_indices = @transform_8, window_bounds = array<i64: 2, 32, 32>}, {pipeline_mode = #tpu.pipeline_mode<synchronous>, transform_indices = @transform_9, window_bounds = array<i64: 2, 32, 64>}, {pipeline_mode = #tpu.pipeline_mode<synchronous>, transform_indices = @transform_10, window_bounds = array<i64: 2, 32, 64>}, {pipeline_mode = #tpu.pipeline_mode<synchronous>, transform_indices = @transform_11, window_bounds = array<i64: 2, 64, 32>}, {pipeline_mode = #tpu.pipeline_mode<synchronous>, transform_indices = @transform_12, window_bounds = array<i64: 2, 1, 32>}, {pipeline_mode = #tpu.pipeline_mode<synchronous>, transform_indices = @transform_13, window_bounds = array<i64: 2, 1, 32>}, {pipeline_mode = #tpu.pipeline_mode<synchronous>, transform_indices = @transform_14, window_bounds = array<i64: 1, 32>}, {transform_indices = @transform_15, window_bounds = array<i64: 1, 8, 32>}, {transform_indices = @transform_16, window_bounds = array<i64: 2, 1, 8, 16>}, {transform_indices = @transform_17, window_bounds = array<i64: 2, 1, 8, 16>}]} {
    %c0 = arith.constant 0 : index
    %c0_0 = arith.constant 0 : index
    %c0_1 = arith.constant 0 : index
    %0 = vector.load %arg1[%c0, %c0_0, %c0_1] : memref<1x8x32xf32, #tpu.memory_space<vmem>>, vector<1x8x32xf32>
    %1 = vector.shape_cast %0 : vector<1x8x32xf32> to vector<8x32xf32>
    %c0_2 = arith.constant 0 : index
    %c0_3 = arith.constant 0 : index
    %c0_4 = arith.constant 0 : index
    %2 = vector.load %arg2[%c0_2, %c0_3, %c0_4] : memref<1x8x32xf32, #tpu.memory_space<vmem>>, vector<1x8x32xf32>
    %3 = vector.shape_cast %2 : vector<1x8x32xf32> to vector<8x32xf32>
    %c0_5 = arith.constant 0 : index
    %c0_6 = arith.constant 0 : index
    %c0_7 = arith.constant 0 : index
    %4 = vector.load %arg3[%c0_5, %c0_6, %c0_7] : memref<1x8x32xf32, #tpu.memory_space<vmem>>, vector<1x8x32xf32>
    %5 = vector.shape_cast %4 : vector<1x8x32xf32> to vector<8x32xf32>
    %6 = vector.extract_strided_slice %3 {offsets = [0, 0], sizes = [8, 16], strides = [1, 1]} : vector<8x32xf32> to vector<8x16xf32>
    %7 = vector.extract_strided_slice %5 {offsets = [0, 0], sizes = [8, 16], strides = [1, 1]} : vector<8x32xf32> to vector<8x16xf32>
    %c0_8 = arith.constant 0 : index
    %c0_9 = arith.constant 0 : index
    %8 = vector.load %arg4[%c0_8, %c0_9] : memref<32x32xf32, #tpu.memory_space<vmem>>, vector<32x32xf32>
    %c0_10 = arith.constant 0 : index
    %c0_11 = arith.constant 0 : index
    %9 = vector.load %arg5[%c0_10, %c0_11] : memref<16x16xf32, #tpu.memory_space<vmem>>, vector<16x16xf32>
    %10 = tpu.iota {dimensions = array<i32: 0>} : vector<8x8xi32>
    %11 = tpu.iota {dimensions = array<i32: 1>} : vector<8x8xi32>
    %12 = arith.cmpi sle, %11, %10 : vector<8x8xi32>
    %c0_12 = arith.constant 0 : index
    %c0_13 = arith.constant 0 : index
    %c0_14 = arith.constant 0 : index
    %13 = vector.load %arg13[%c0_12, %c0_13, %c0_14] : memref<2x1x32xf32, #tpu.memory_space<vmem>>, vector<1x1x32xf32>
    %14 = vector.shape_cast %13 : vector<1x1x32xf32> to vector<1x32xf32>
    %15 = arith.mulf %1, %1 : vector<8x32xf32>
    %cst = arith.constant dense<0.000000e+00> : vector<8xf32>
    %16 = vector.multi_reduction <add>, %15, %cst [1] : vector<8x32xf32> to vector<8xf32>
    %17 = vector.shape_cast %16 : vector<8xf32> to vector<8x1xf32>
    %cst_15 = arith.constant 3.200000e+01 : f32
    %18 = vector.broadcast %cst_15 : f32 to vector<8x1xf32>
    %19 = arith.divf %17, %18 : vector<8x1xf32>
    %cst_16 = arith.constant 9.99999997E-7 : f32
    %20 = vector.broadcast %cst_16 : f32 to vector<8x1xf32>
    %21 = arith.addf %19, %20 : vector<8x1xf32>
    %22 = math.rsqrt %21 : vector<8x1xf32>
    %23 = vector.broadcast %22 : vector<8x1xf32> to vector<8x32xf32>
    %24 = arith.mulf %1, %23 : vector<8x32xf32>
    %25 = vector.broadcast %14 : vector<1x32xf32> to vector<8x32xf32>
    %26 = arith.mulf %25, %24 : vector<8x32xf32>
    %c0_17 = arith.constant 0 : index
    %c0_18 = arith.constant 0 : index
    %c0_19 = arith.constant 0 : index
    %27 = vector.load %arg6[%c0_17, %c0_18, %c0_19] : memref<2x32x32xf32, #tpu.memory_space<vmem>>, vector<1x32x32xf32>
    %28 = vector.shape_cast %27 : vector<1x32x32xf32> to vector<32x32xf32>
    %cst_20 = arith.constant dense<0.000000e+00> : vector<8x32xf32>
    %29 = tpu.matmul %26, %28, %cst_20 {dimension_numbers = #tpu.dot_dimension_numbers<[1], [0], [0], [1], [0, 0, 1, 1], [], []>} : vector<8x32xf32>, vector<32x32xf32>, vector<8x32xf32> -> vector<8x32xf32>
    %c0_21 = arith.constant 0 : index
    %c0_22 = arith.constant 0 : index
    %c0_23 = arith.constant 0 : index
    %30 = vector.load %arg7[%c0_21, %c0_22, %c0_23] : memref<2x32x16xf32, #tpu.memory_space<vmem>>, vector<1x32x16xf32>
    %31 = vector.shape_cast %30 : vector<1x32x16xf32> to vector<32x16xf32>
    %cst_24 = arith.constant dense<0.000000e+00> : vector<8x16xf32>
    %32 = tpu.matmul %26, %31, %cst_24 {dimension_numbers = #tpu.dot_dimension_numbers<[1], [0], [0], [1], [0, 0, 1, 1], [], []>} : vector<8x32xf32>, vector<32x16xf32>, vector<8x16xf32> -> vector<8x16xf32>
    %c0_25 = arith.constant 0 : index
    %c0_26 = arith.constant 0 : index
    %c0_27 = arith.constant 0 : index
    %33 = vector.load %arg8[%c0_25, %c0_26, %c0_27] : memref<2x32x16xf32, #tpu.memory_space<vmem>>, vector<1x32x16xf32>
    %34 = vector.shape_cast %33 : vector<1x32x16xf32> to vector<32x16xf32>
    %cst_28 = arith.constant dense<0.000000e+00> : vector<8x16xf32>
    %35 = tpu.matmul %26, %34, %cst_28 {dimension_numbers = #tpu.dot_dimension_numbers<[1], [0], [0], [1], [0, 0, 1, 1], [], []>} : vector<8x32xf32>, vector<32x16xf32>, vector<8x16xf32> -> vector<8x16xf32>
    %36 = arith.mulf %29, %3 : vector<8x32xf32>
    %cst_29 = arith.constant dense<0.000000e+00> : vector<8x32xf32>
    %37 = tpu.matmul %29, %8, %cst_29 {dimension_numbers = #tpu.dot_dimension_numbers<[1], [0], [0], [1], [0, 0, 1, 1], [], []>} : vector<8x32xf32>, vector<32x32xf32>, vector<8x32xf32> -> vector<8x32xf32>
    %38 = arith.mulf %37, %5 : vector<8x32xf32>
    %39 = arith.addf %36, %38 : vector<8x32xf32>
    %40 = arith.mulf %32, %6 : vector<8x16xf32>
    %cst_30 = arith.constant dense<0.000000e+00> : vector<8x16xf32>
    %41 = tpu.matmul %32, %9, %cst_30 {dimension_numbers = #tpu.dot_dimension_numbers<[1], [0], [0], [1], [0, 0, 1, 1], [], []>} : vector<8x16xf32>, vector<16x16xf32>, vector<8x16xf32> -> vector<8x16xf32>
    %42 = arith.mulf %41, %7 : vector<8x16xf32>
    %43 = arith.addf %40, %42 : vector<8x16xf32>
    %c0_31 = arith.constant 0 : index
    %c0_32 = arith.constant 0 : index
    %c0_33 = arith.constant 0 : index
    %c0_34 = arith.constant 0 : index
    %44 = vector.load %arg17[%c0_31, %c0_32, %c0_33, %c0_34] : memref<2x1x8x16xf32, #tpu.memory_space<vmem>>, vector<1x1x8x16xf32>
    %45 = vector.shape_cast %44 : vector<1x1x8x16xf32> to vector<8x16xf32>
    %46 = vector.shape_cast %43 : vector<8x16xf32> to vector<1x1x8x16xf32>
    tpu.vector_store %arg17[%c0_31, %c0_32, %c0_33, %c0_34], %46 {strides = array<i32>} : memref<2x1x8x16xf32, #tpu.memory_space<vmem>>, vector<1x1x8x16xf32>,
    %c0_35 = arith.constant 0 : index
    %c0_36 = arith.constant 0 : index
    %c0_37 = arith.constant 0 : index
    %c0_38 = arith.constant 0 : index
    %47 = vector.load %arg18[%c0_35, %c0_36, %c0_37, %c0_38] : memref<2x1x8x16xf32, #tpu.memory_space<vmem>>, vector<1x1x8x16xf32>
    %48 = vector.shape_cast %47 : vector<1x1x8x16xf32> to vector<8x16xf32>
    %49 = vector.shape_cast %35 : vector<8x16xf32> to vector<1x1x8x16xf32>
    tpu.vector_store %arg18[%c0_35, %c0_36, %c0_37, %c0_38], %49 {strides = array<i32>} : memref<2x1x8x16xf32, #tpu.memory_space<vmem>>, vector<1x1x8x16xf32>,
    %c0_39 = arith.constant 0 : index
    %c0_40 = arith.constant 0 : index
    %c0_41 = arith.constant 0 : index
    %50 = vector.load %arg9[%c0_39, %c0_40, %c0_41] : memref<2x32x32xf32, #tpu.memory_space<vmem>>, vector<1x32x32xf32>
    %51 = vector.shape_cast %50 : vector<1x32x32xf32> to vector<32x32xf32>
    %52 = vector.extract_strided_slice %39 {offsets = [0, 0], sizes = [8, 8], strides = [1, 1]} : vector<8x32xf32> to vector<8x8xf32>
    %53 = vector.extract_strided_slice %43 {offsets = [0, 0], sizes = [8, 8], strides = [1, 1]} : vector<8x16xf32> to vector<8x8xf32>
    %54 = vector.extract_strided_slice %35 {offsets = [0, 0], sizes = [8, 8], strides = [1, 1]} : vector<8x16xf32> to vector<8x8xf32>
    %cst_42 = arith.constant dense<0.000000e+00> : vector<8x8xf32>
    %55 = tpu.matmul %52, %53, %cst_42 {dimension_numbers = #tpu.dot_dimension_numbers<[1], [1], [0], [0], [0, 0, 1, 0], [], []>} : vector<8x8xf32>, vector<8x8xf32>, vector<8x8xf32> -> vector<8x8xf32>
    %cst_43 = arith.constant 0.353553385 : f32
    %56 = vector.broadcast %cst_43 : f32 to vector<8x8xf32>
    %57 = arith.mulf %55, %56 : vector<8x8xf32>
    %cst_44 = arith.constant -1.000000e+30 : f32
    %58 = vector.broadcast %cst_44 : f32 to vector<8x8xf32>
    %59 = arith.select %12, %57, %58 : vector<8x8xi1>, vector<8x8xf32>
    %cst_45 = arith.constant dense<0xFF800000> : vector<8xf32>
    %60 = vector.multi_reduction <maximumf>, %59, %cst_45 [1] : vector<8x8xf32> to vector<8xf32>
    %61 = vector.shape_cast %60 : vector<8xf32> to vector<8x1xf32>
    %62 = vector.broadcast %61 : vector<8x1xf32> to vector<8x8xf32>
    %63 = arith.subf %59, %62 : vector<8x8xf32>
    %64 = math.exp %63 : vector<8x8xf32>
    %cst_46 = arith.constant dense<0.000000e+00> : vector<8xf32>
    %65 = vector.multi_reduction <add>, %64, %cst_46 [1] : vector<8x8xf32> to vector<8xf32>
    %66 = vector.shape_cast %65 : vector<8xf32> to vector<8x1xf32>
    %cst_47 = arith.constant dense<0.000000e+00> : vector<8x8xf32>
    %67 = tpu.matmul %64, %54, %cst_47 {dimension_numbers = #tpu.dot_dimension_numbers<[1], [0], [0], [1], [0, 0, 1, 1], [], []>} : vector<8x8xf32>, vector<8x8xf32>, vector<8x8xf32> -> vector<8x8xf32>
    %68 = vector.broadcast %66 : vector<8x1xf32> to vector<8x8xf32>
    %69 = arith.divf %67, %68 : vector<8x8xf32>
    %70 = vector.extract_strided_slice %51 {offsets = [0, 0], sizes = [8, 32], strides = [1, 1]} : vector<32x32xf32> to vector<8x32xf32>
    %cst_48 = arith.constant dense<0.000000e+00> : vector<8x32xf32>
    %71 = tpu.matmul %69, %70, %cst_48 {dimension_numbers = #tpu.dot_dimension_numbers<[1], [0], [0], [1], [0, 0, 1, 1], [], []>} : vector<8x8xf32>, vector<8x32xf32>, vector<8x32xf32> -> vector<8x32xf32>
    %72 = arith.addf %1, %71 : vector<8x32xf32>
    %73 = vector.extract_strided_slice %39 {offsets = [0, 8], sizes = [8, 8], strides = [1, 1]} : vector<8x32xf32> to vector<8x8xf32>
    %74 = vector.extract_strided_slice %43 {offsets = [0, 0], sizes = [8, 8], strides = [1, 1]} : vector<8x16xf32> to vector<8x8xf32>
    %75 = vector.extract_strided_slice %35 {offsets = [0, 0], sizes = [8, 8], strides = [1, 1]} : vector<8x16xf32> to vector<8x8xf32>
    %cst_49 = arith.constant dense<0.000000e+00> : vector<8x8xf32>
    %76 = tpu.matmul %73, %74, %cst_49 {dimension_numbers = #tpu.dot_dimension_numbers<[1], [1], [0], [0], [0, 0, 1, 0], [], []>} : vector<8x8xf32>, vector<8x8xf32>, vector<8x8xf32> -> vector<8x8xf32>
    %cst_50 = arith.constant 0.353553385 : f32
    %77 = vector.broadcast %cst_50 : f32 to vector<8x8xf32>
    %78 = arith.mulf %76, %77 : vector<8x8xf32>
    %cst_51 = arith.constant -1.000000e+30 : f32
    %79 = vector.broadcast %cst_51 : f32 to vector<8x8xf32>
    %80 = arith.select %12, %78, %79 : vector<8x8xi1>, vector<8x8xf32>
    %cst_52 = arith.constant dense<0xFF800000> : vector<8xf32>
    %81 = vector.multi_reduction <maximumf>, %80, %cst_52 [1] : vector<8x8xf32> to vector<8xf32>
    %82 = vector.shape_cast %81 : vector<8xf32> to vector<8x1xf32>
    %83 = vector.broadcast %82 : vector<8x1xf32> to vector<8x8xf32>
    %84 = arith.subf %80, %83 : vector<8x8xf32>
    %85 = math.exp %84 : vector<8x8xf32>
    %cst_53 = arith.constant dense<0.000000e+00> : vector<8xf32>
    %86 = vector.multi_reduction <add>, %85, %cst_53 [1] : vector<8x8xf32> to vector<8xf32>
    %87 = vector.shape_cast %86 : vector<8xf32> to vector<8x1xf32>
    %cst_54 = arith.constant dense<0.000000e+00> : vector<8x8xf32>
    %88 = tpu.matmul %85, %75, %cst_54 {dimension_numbers = #tpu.dot_dimension_numbers<[1], [0], [0], [1], [0, 0, 1, 1], [], []>} : vector<8x8xf32>, vector<8x8xf32>, vector<8x8xf32> -> vector<8x8xf32>
    %89 = vector.broadcast %87 : vector<8x1xf32> to vector<8x8xf32>
    %90 = arith.divf %88, %89 : vector<8x8xf32>
    %91 = vector.extract_strided_slice %51 {offsets = [8, 0], sizes = [8, 32], strides = [1, 1]} : vector<32x32xf32> to vector<8x32xf32>
    %cst_55 = arith.constant dense<0.000000e+00> : vector<8x32xf32>
    %92 = tpu.matmul %90, %91, %cst_55 {dimension_numbers = #tpu.dot_dimension_numbers<[1], [0], [0], [1], [0, 0, 1, 1], [], []>} : vector<8x8xf32>, vector<8x32xf32>, vector<8x32xf32> -> vector<8x32xf32>
    %93 = arith.addf %72, %92 : vector<8x32xf32>
    %94 = vector.extract_strided_slice %39 {offsets = [0, 16], sizes = [8, 8], strides = [1, 1]} : vector<8x32xf32> to vector<8x8xf32>
    %95 = vector.extract_strided_slice %43 {offsets = [0, 8], sizes = [8, 8], strides = [1, 1]} : vector<8x16xf32> to vector<8x8xf32>
    %96 = vector.extract_strided_slice %35 {offsets = [0, 8], sizes = [8, 8], strides = [1, 1]} : vector<8x16xf32> to vector<8x8xf32>
    %cst_56 = arith.constant dense<0.000000e+00> : vector<8x8xf32>
    %97 = tpu.matmul %94, %95, %cst_56 {dimension_numbers = #tpu.dot_dimension_numbers<[1], [1], [0], [0], [0, 0, 1, 0], [], []>} : vector<8x8xf32>, vector<8x8xf32>, vector<8x8xf32> -> vector<8x8xf32>
    %cst_57 = arith.constant 0.353553385 : f32
    %98 = vector.broadcast %cst_57 : f32 to vector<8x8xf32>
    %99 = arith.mulf %97, %98 : vector<8x8xf32>
    %cst_58 = arith.constant -1.000000e+30 : f32
    %100 = vector.broadcast %cst_58 : f32 to vector<8x8xf32>
    %101 = arith.select %12, %99, %100 : vector<8x8xi1>, vector<8x8xf32>
    %cst_59 = arith.constant dense<0xFF800000> : vector<8xf32>
    %102 = vector.multi_reduction <maximumf>, %101, %cst_59 [1] : vector<8x8xf32> to vector<8xf32>
    %103 = vector.shape_cast %102 : vector<8xf32> to vector<8x1xf32>
    %104 = vector.broadcast %103 : vector<8x1xf32> to vector<8x8xf32>
    %105 = arith.subf %101, %104 : vector<8x8xf32>
    %106 = math.exp %105 : vector<8x8xf32>
    %cst_60 = arith.constant dense<0.000000e+00> : vector<8xf32>
    %107 = vector.multi_reduction <add>, %106, %cst_60 [1] : vector<8x8xf32> to vector<8xf32>
    %108 = vector.shape_cast %107 : vector<8xf32> to vector<8x1xf32>
    %cst_61 = arith.constant dense<0.000000e+00> : vector<8x8xf32>
    %109 = tpu.matmul %106, %96, %cst_61 {dimension_numbers = #tpu.dot_dimension_numbers<[1], [0], [0], [1], [0, 0, 1, 1], [], []>} : vector<8x8xf32>, vector<8x8xf32>, vector<8x8xf32> -> vector<8x8xf32>
    %110 = vector.broadcast %108 : vector<8x1xf32> to vector<8x8xf32>
    %111 = arith.divf %109, %110 : vector<8x8xf32>
    %112 = vector.extract_strided_slice %51 {offsets = [16, 0], sizes = [8, 32], strides = [1, 1]} : vector<32x32xf32> to vector<8x32xf32>
    %cst_62 = arith.constant dense<0.000000e+00> : vector<8x32xf32>
    %113 = tpu.matmul %111, %112, %cst_62 {dimension_numbers = #tpu.dot_dimension_numbers<[1], [0], [0], [1], [0, 0, 1, 1], [], []>} : vector<8x8xf32>, vector<8x32xf32>, vector<8x32xf32> -> vector<8x32xf32>
    %114 = arith.addf %93, %113 : vector<8x32xf32>
    %115 = vector.extract_strided_slice %39 {offsets = [0, 24], sizes = [8, 8], strides = [1, 1]} : vector<8x32xf32> to vector<8x8xf32>
    %116 = vector.extract_strided_slice %43 {offsets = [0, 8], sizes = [8, 8], strides = [1, 1]} : vector<8x16xf32> to vector<8x8xf32>
    %117 = vector.extract_strided_slice %35 {offsets = [0, 8], sizes = [8, 8], strides = [1, 1]} : vector<8x16xf32> to vector<8x8xf32>
    %cst_63 = arith.constant dense<0.000000e+00> : vector<8x8xf32>
    %118 = tpu.matmul %115, %116, %cst_63 {dimension_numbers = #tpu.dot_dimension_numbers<[1], [1], [0], [0], [0, 0, 1, 0], [], []>} : vector<8x8xf32>, vector<8x8xf32>, vector<8x8xf32> -> vector<8x8xf32>
    %cst_64 = arith.constant 0.353553385 : f32
    %119 = vector.broadcast %cst_64 : f32 to vector<8x8xf32>
    %120 = arith.mulf %118, %119 : vector<8x8xf32>
    %cst_65 = arith.constant -1.000000e+30 : f32
    %121 = vector.broadcast %cst_65 : f32 to vector<8x8xf32>
    %122 = arith.select %12, %120, %121 : vector<8x8xi1>, vector<8x8xf32>
    %cst_66 = arith.constant dense<0xFF800000> : vector<8xf32>
    %123 = vector.multi_reduction <maximumf>, %122, %cst_66 [1] : vector<8x8xf32> to vector<8xf32>
    %124 = vector.shape_cast %123 : vector<8xf32> to vector<8x1xf32>
    %125 = vector.broadcast %124 : vector<8x1xf32> to vector<8x8xf32>
    %126 = arith.subf %122, %125 : vector<8x8xf32>
    %127 = math.exp %126 : vector<8x8xf32>
    %cst_67 = arith.constant dense<0.000000e+00> : vector<8xf32>
    %128 = vector.multi_reduction <add>, %127, %cst_67 [1] : vector<8x8xf32> to vector<8xf32>
    %129 = vector.shape_cast %128 : vector<8xf32> to vector<8x1xf32>
    %cst_68 = arith.constant dense<0.000000e+00> : vector<8x8xf32>
    %130 = tpu.matmul %127, %117, %cst_68 {dimension_numbers = #tpu.dot_dimension_numbers<[1], [0], [0], [1], [0, 0, 1, 1], [], []>} : vector<8x8xf32>, vector<8x8xf32>, vector<8x8xf32> -> vector<8x8xf32>
    %131 = vector.broadcast %129 : vector<8x1xf32> to vector<8x8xf32>
    %132 = arith.divf %130, %131 : vector<8x8xf32>
    %133 = vector.extract_strided_slice %51 {offsets = [24, 0], sizes = [8, 32], strides = [1, 1]} : vector<32x32xf32> to vector<8x32xf32>
    %cst_69 = arith.constant dense<0.000000e+00> : vector<8x32xf32>
    %134 = tpu.matmul %132, %133, %cst_69 {dimension_numbers = #tpu.dot_dimension_numbers<[1], [0], [0], [1], [0, 0, 1, 1], [], []>} : vector<8x8xf32>, vector<8x32xf32>, vector<8x32xf32> -> vector<8x32xf32>
    %135 = arith.addf %114, %134 : vector<8x32xf32>
    %c0_70 = arith.constant 0 : index
    %c0_71 = arith.constant 0 : index
    %c0_72 = arith.constant 0 : index
    %136 = vector.load %arg14[%c0_70, %c0_71, %c0_72] : memref<2x1x32xf32, #tpu.memory_space<vmem>>, vector<1x1x32xf32>
    %137 = vector.shape_cast %136 : vector<1x1x32xf32> to vector<1x32xf32>
    %138 = arith.mulf %135, %135 : vector<8x32xf32>
    %cst_73 = arith.constant dense<0.000000e+00> : vector<8xf32>
    %139 = vector.multi_reduction <add>, %138, %cst_73 [1] : vector<8x32xf32> to vector<8xf32>
    %140 = vector.shape_cast %139 : vector<8xf32> to vector<8x1xf32>
    %cst_74 = arith.constant 3.200000e+01 : f32
    %141 = vector.broadcast %cst_74 : f32 to vector<8x1xf32>
    %142 = arith.divf %140, %141 : vector<8x1xf32>
    %cst_75 = arith.constant 9.99999997E-7 : f32
    %143 = vector.broadcast %cst_75 : f32 to vector<8x1xf32>
    %144 = arith.addf %142, %143 : vector<8x1xf32>
    %145 = math.rsqrt %144 : vector<8x1xf32>
    %146 = vector.broadcast %145 : vector<8x1xf32> to vector<8x32xf32>
    %147 = arith.mulf %135, %146 : vector<8x32xf32>
    %148 = vector.broadcast %137 : vector<1x32xf32> to vector<8x32xf32>
    %149 = arith.mulf %148, %147 : vector<8x32xf32>
    %c0_76 = arith.constant 0 : index
    %c0_77 = arith.constant 0 : index
    %c0_78 = arith.constant 0 : index
    %150 = vector.load %arg10[%c0_76, %c0_77, %c0_78] : memref<2x32x64xf32, #tpu.memory_space<vmem>>, vector<1x32x64xf32>
    %151 = vector.shape_cast %150 : vector<1x32x64xf32> to vector<32x64xf32>
    %cst_79 = arith.constant dense<0.000000e+00> : vector<8x64xf32>
    %152 = tpu.matmul %149, %151, %cst_79 {dimension_numbers = #tpu.dot_dimension_numbers<[1], [0], [0], [1], [0, 0, 1, 1], [], []>} : vector<8x32xf32>, vector<32x64xf32>, vector<8x64xf32> -> vector<8x64xf32>
    %c0_80 = arith.constant 0 : index
    %c0_81 = arith.constant 0 : index
    %c0_82 = arith.constant 0 : index
    %153 = vector.load %arg11[%c0_80, %c0_81, %c0_82] : memref<2x32x64xf32, #tpu.memory_space<vmem>>, vector<1x32x64xf32>
    %154 = vector.shape_cast %153 : vector<1x32x64xf32> to vector<32x64xf32>
    %cst_83 = arith.constant dense<0.000000e+00> : vector<8x64xf32>
    %155 = tpu.matmul %149, %154, %cst_83 {dimension_numbers = #tpu.dot_dimension_numbers<[1], [0], [0], [1], [0, 0, 1, 1], [], []>} : vector<8x32xf32>, vector<32x64xf32>, vector<8x64xf32> -> vector<8x64xf32>
    %156 = arith.negf %152 : vector<8x64xf32>
    %157 = math.exp %156 : vector<8x64xf32>
    %cst_84 = arith.constant 1.000000e+00 : f32
    %158 = vector.broadcast %cst_84 : f32 to vector<8x64xf32>
    %159 = arith.addf %158, %157 : vector<8x64xf32>
    %160 = arith.divf %158, %159 : vector<8x64xf32>
    %161 = arith.mulf %152, %160 : vector<8x64xf32>
    %162 = arith.mulf %155, %161 : vector<8x64xf32>
    %c0_85 = arith.constant 0 : index
    %c0_86 = arith.constant 0 : index
    %c0_87 = arith.constant 0 : index
    %163 = vector.load %arg12[%c0_85, %c0_86, %c0_87] : memref<2x64x32xf32, #tpu.memory_space<vmem>>, vector<1x64x32xf32>
    %164 = vector.shape_cast %163 : vector<1x64x32xf32> to vector<64x32xf32>
    %cst_88 = arith.constant dense<0.000000e+00> : vector<8x32xf32>
    %165 = tpu.matmul %162, %164, %cst_88 {dimension_numbers = #tpu.dot_dimension_numbers<[1], [0], [0], [1], [0, 0, 1, 1], [], []>} : vector<8x64xf32>, vector<64x32xf32>, vector<8x32xf32> -> vector<8x32xf32>
    %166 = arith.addf %135, %165 : vector<8x32xf32>
    %c1 = arith.constant 1 : index
    %c0_89 = arith.constant 0 : index
    %c0_90 = arith.constant 0 : index
    %167 = vector.load %arg13[%c1, %c0_89, %c0_90] : memref<2x1x32xf32, #tpu.memory_space<vmem>>, vector<1x1x32xf32>
    %168 = vector.shape_cast %167 : vector<1x1x32xf32> to vector<1x32xf32>
    %169 = arith.mulf %166, %166 : vector<8x32xf32>
    %cst_91 = arith.constant dense<0.000000e+00> : vector<8xf32>
    %170 = vector.multi_reduction <add>, %169, %cst_91 [1] : vector<8x32xf32> to vector<8xf32>
    %171 = vector.shape_cast %170 : vector<8xf32> to vector<8x1xf32>
    %cst_92 = arith.constant 3.200000e+01 : f32
    %172 = vector.broadcast %cst_92 : f32 to vector<8x1xf32>
    %173 = arith.divf %171, %172 : vector<8x1xf32>
    %cst_93 = arith.constant 9.99999997E-7 : f32
    %174 = vector.broadcast %cst_93 : f32 to vector<8x1xf32>
    %175 = arith.addf %173, %174 : vector<8x1xf32>
    %176 = math.rsqrt %175 : vector<8x1xf32>
    %177 = vector.broadcast %176 : vector<8x1xf32> to vector<8x32xf32>
    %178 = arith.mulf %166, %177 : vector<8x32xf32>
    %179 = vector.broadcast %168 : vector<1x32xf32> to vector<8x32xf32>
    %180 = arith.mulf %179, %178 : vector<8x32xf32>
    %c1_94 = arith.constant 1 : index
    %c0_95 = arith.constant 0 : index
    %c0_96 = arith.constant 0 : index
    %181 = vector.load %arg6[%c1_94, %c0_95, %c0_96] : memref<2x32x32xf32, #tpu.memory_space<vmem>>, vector<1x32x32xf32>
    %182 = vector.shape_cast %181 : vector<1x32x32xf32> to vector<32x32xf32>
    %cst_97 = arith.constant dense<0.000000e+00> : vector<8x32xf32>
    %183 = tpu.matmul %180, %182, %cst_97 {dimension_numbers = #tpu.dot_dimension_numbers<[1], [0], [0], [1], [0, 0, 1, 1], [], []>} : vector<8x32xf32>, vector<32x32xf32>, vector<8x32xf32> -> vector<8x32xf32>
    %c1_98 = arith.constant 1 : index
    %c0_99 = arith.constant 0 : index
    %c0_100 = arith.constant 0 : index
    %184 = vector.load %arg7[%c1_98, %c0_99, %c0_100] : memref<2x32x16xf32, #tpu.memory_space<vmem>>, vector<1x32x16xf32>
    %185 = vector.shape_cast %184 : vector<1x32x16xf32> to vector<32x16xf32>
    %cst_101 = arith.constant dense<0.000000e+00> : vector<8x16xf32>
    %186 = tpu.matmul %180, %185, %cst_101 {dimension_numbers = #tpu.dot_dimension_numbers<[1], [0], [0], [1], [0, 0, 1, 1], [], []>} : vector<8x32xf32>, vector<32x16xf32>, vector<8x16xf32> -> vector<8x16xf32>
    %c1_102 = arith.constant 1 : index
    %c0_103 = arith.constant 0 : index
    %c0_104 = arith.constant 0 : index
    %187 = vector.load %arg8[%c1_102, %c0_103, %c0_104] : memref<2x32x16xf32, #tpu.memory_space<vmem>>, vector<1x32x16xf32>
    %188 = vector.shape_cast %187 : vector<1x32x16xf32> to vector<32x16xf32>
    %cst_105 = arith.constant dense<0.000000e+00> : vector<8x16xf32>
    %189 = tpu.matmul %180, %188, %cst_105 {dimension_numbers = #tpu.dot_dimension_numbers<[1], [0], [0], [1], [0, 0, 1, 1], [], []>} : vector<8x32xf32>, vector<32x16xf32>, vector<8x16xf32> -> vector<8x16xf32>
    %190 = arith.mulf %183, %3 : vector<8x32xf32>
    %cst_106 = arith.constant dense<0.000000e+00> : vector<8x32xf32>
    %191 = tpu.matmul %183, %8, %cst_106 {dimension_numbers = #tpu.dot_dimension_numbers<[1], [0], [0], [1], [0, 0, 1, 1], [], []>} : vector<8x32xf32>, vector<32x32xf32>, vector<8x32xf32> -> vector<8x32xf32>
    %192 = arith.mulf %191, %5 : vector<8x32xf32>
    %193 = arith.addf %190, %192 : vector<8x32xf32>
    %194 = arith.mulf %186, %6 : vector<8x16xf32>
    %cst_107 = arith.constant dense<0.000000e+00> : vector<8x16xf32>
    %195 = tpu.matmul %186, %9, %cst_107 {dimension_numbers = #tpu.dot_dimension_numbers<[1], [0], [0], [1], [0, 0, 1, 1], [], []>} : vector<8x16xf32>, vector<16x16xf32>, vector<8x16xf32> -> vector<8x16xf32>
    %196 = arith.mulf %195, %7 : vector<8x16xf32>
    %197 = arith.addf %194, %196 : vector<8x16xf32>
    %c1_108 = arith.constant 1 : index
    %c0_109 = arith.constant 0 : index
    %c0_110 = arith.constant 0 : index
    %c0_111 = arith.constant 0 : index
    %198 = vector.load %arg17[%c1_108, %c0_109, %c0_110, %c0_111] : memref<2x1x8x16xf32, #tpu.memory_space<vmem>>, vector<1x1x8x16xf32>
    %199 = vector.shape_cast %198 : vector<1x1x8x16xf32> to vector<8x16xf32>
    %200 = vector.shape_cast %197 : vector<8x16xf32> to vector<1x1x8x16xf32>
    tpu.vector_store %arg17[%c1_108, %c0_109, %c0_110, %c0_111], %200 {strides = array<i32>} : memref<2x1x8x16xf32, #tpu.memory_space<vmem>>, vector<1x1x8x16xf32>,
    %c1_112 = arith.constant 1 : index
    %c0_113 = arith.constant 0 : index
    %c0_114 = arith.constant 0 : index
    %c0_115 = arith.constant 0 : index
    %201 = vector.load %arg18[%c1_112, %c0_113, %c0_114, %c0_115] : memref<2x1x8x16xf32, #tpu.memory_space<vmem>>, vector<1x1x8x16xf32>
    %202 = vector.shape_cast %201 : vector<1x1x8x16xf32> to vector<8x16xf32>
    %203 = vector.shape_cast %189 : vector<8x16xf32> to vector<1x1x8x16xf32>
    tpu.vector_store %arg18[%c1_112, %c0_113, %c0_114, %c0_115], %203 {strides = array<i32>} : memref<2x1x8x16xf32, #tpu.memory_space<vmem>>, vector<1x1x8x16xf32>,
    %c1_116 = arith.constant 1 : index
    %c0_117 = arith.constant 0 : index
    %c0_118 = arith.constant 0 : index
    %204 = vector.load %arg9[%c1_116, %c0_117, %c0_118] : memref<2x32x32xf32, #tpu.memory_space<vmem>>, vector<1x32x32xf32>
    %205 = vector.shape_cast %204 : vector<1x32x32xf32> to vector<32x32xf32>
    %206 = vector.extract_strided_slice %193 {offsets = [0, 0], sizes = [8, 8], strides = [1, 1]} : vector<8x32xf32> to vector<8x8xf32>
    %207 = vector.extract_strided_slice %197 {offsets = [0, 0], sizes = [8, 8], strides = [1, 1]} : vector<8x16xf32> to vector<8x8xf32>
    %208 = vector.extract_strided_slice %189 {offsets = [0, 0], sizes = [8, 8], strides = [1, 1]} : vector<8x16xf32> to vector<8x8xf32>
    %cst_119 = arith.constant dense<0.000000e+00> : vector<8x8xf32>
    %209 = tpu.matmul %206, %207, %cst_119 {dimension_numbers = #tpu.dot_dimension_numbers<[1], [1], [0], [0], [0, 0, 1, 0], [], []>} : vector<8x8xf32>, vector<8x8xf32>, vector<8x8xf32> -> vector<8x8xf32>
    %cst_120 = arith.constant 0.353553385 : f32
    %210 = vector.broadcast %cst_120 : f32 to vector<8x8xf32>
    %211 = arith.mulf %209, %210 : vector<8x8xf32>
    %cst_121 = arith.constant -1.000000e+30 : f32
    %212 = vector.broadcast %cst_121 : f32 to vector<8x8xf32>
    %213 = arith.select %12, %211, %212 : vector<8x8xi1>, vector<8x8xf32>
    %cst_122 = arith.constant dense<0xFF800000> : vector<8xf32>
    %214 = vector.multi_reduction <maximumf>, %213, %cst_122 [1] : vector<8x8xf32> to vector<8xf32>
    %215 = vector.shape_cast %214 : vector<8xf32> to vector<8x1xf32>
    %216 = vector.broadcast %215 : vector<8x1xf32> to vector<8x8xf32>
    %217 = arith.subf %213, %216 : vector<8x8xf32>
    %218 = math.exp %217 : vector<8x8xf32>
    %cst_123 = arith.constant dense<0.000000e+00> : vector<8xf32>
    %219 = vector.multi_reduction <add>, %218, %cst_123 [1] : vector<8x8xf32> to vector<8xf32>
    %220 = vector.shape_cast %219 : vector<8xf32> to vector<8x1xf32>
    %cst_124 = arith.constant dense<0.000000e+00> : vector<8x8xf32>
    %221 = tpu.matmul %218, %208, %cst_124 {dimension_numbers = #tpu.dot_dimension_numbers<[1], [0], [0], [1], [0, 0, 1, 1], [], []>} : vector<8x8xf32>, vector<8x8xf32>, vector<8x8xf32> -> vector<8x8xf32>
    %222 = vector.broadcast %220 : vector<8x1xf32> to vector<8x8xf32>
    %223 = arith.divf %221, %222 : vector<8x8xf32>
    %224 = vector.extract_strided_slice %205 {offsets = [0, 0], sizes = [8, 32], strides = [1, 1]} : vector<32x32xf32> to vector<8x32xf32>
    %cst_125 = arith.constant dense<0.000000e+00> : vector<8x32xf32>
    %225 = tpu.matmul %223, %224, %cst_125 {dimension_numbers = #tpu.dot_dimension_numbers<[1], [0], [0], [1], [0, 0, 1, 1], [], []>} : vector<8x8xf32>, vector<8x32xf32>, vector<8x32xf32> -> vector<8x32xf32>
    %226 = arith.addf %166, %225 : vector<8x32xf32>
    %227 = vector.extract_strided_slice %193 {offsets = [0, 8], sizes = [8, 8], strides = [1, 1]} : vector<8x32xf32> to vector<8x8xf32>
    %228 = vector.extract_strided_slice %197 {offsets = [0, 0], sizes = [8, 8], strides = [1, 1]} : vector<8x16xf32> to vector<8x8xf32>
    %229 = vector.extract_strided_slice %189 {offsets = [0, 0], sizes = [8, 8], strides = [1, 1]} : vector<8x16xf32> to vector<8x8xf32>
    %cst_126 = arith.constant dense<0.000000e+00> : vector<8x8xf32>
    %230 = tpu.matmul %227, %228, %cst_126 {dimension_numbers = #tpu.dot_dimension_numbers<[1], [1], [0], [0], [0, 0, 1, 0], [], []>} : vector<8x8xf32>, vector<8x8xf32>, vector<8x8xf32> -> vector<8x8xf32>
    %cst_127 = arith.constant 0.353553385 : f32
    %231 = vector.broadcast %cst_127 : f32 to vector<8x8xf32>
    %232 = arith.mulf %230, %231 : vector<8x8xf32>
    %cst_128 = arith.constant -1.000000e+30 : f32
    %233 = vector.broadcast %cst_128 : f32 to vector<8x8xf32>
    %234 = arith.select %12, %232, %233 : vector<8x8xi1>, vector<8x8xf32>
    %cst_129 = arith.constant dense<0xFF800000> : vector<8xf32>
    %235 = vector.multi_reduction <maximumf>, %234, %cst_129 [1] : vector<8x8xf32> to vector<8xf32>
    %236 = vector.shape_cast %235 : vector<8xf32> to vector<8x1xf32>
    %237 = vector.broadcast %236 : vector<8x1xf32> to vector<8x8xf32>
    %238 = arith.subf %234, %237 : vector<8x8xf32>
    %239 = math.exp %238 : vector<8x8xf32>
    %cst_130 = arith.constant dense<0.000000e+00> : vector<8xf32>
    %240 = vector.multi_reduction <add>, %239, %cst_130 [1] : vector<8x8xf32> to vector<8xf32>
    %241 = vector.shape_cast %240 : vector<8xf32> to vector<8x1xf32>
    %cst_131 = arith.constant dense<0.000000e+00> : vector<8x8xf32>
    %242 = tpu.matmul %239, %229, %cst_131 {dimension_numbers = #tpu.dot_dimension_numbers<[1], [0], [0], [1], [0, 0, 1, 1], [], []>} : vector<8x8xf32>, vector<8x8xf32>, vector<8x8xf32> -> vector<8x8xf32>
    %243 = vector.broadcast %241 : vector<8x1xf32> to vector<8x8xf32>
    %244 = arith.divf %242, %243 : vector<8x8xf32>
    %245 = vector.extract_strided_slice %205 {offsets = [8, 0], sizes = [8, 32], strides = [1, 1]} : vector<32x32xf32> to vector<8x32xf32>
    %cst_132 = arith.constant dense<0.000000e+00> : vector<8x32xf32>
    %246 = tpu.matmul %244, %245, %cst_132 {dimension_numbers = #tpu.dot_dimension_numbers<[1], [0], [0], [1], [0, 0, 1, 1], [], []>} : vector<8x8xf32>, vector<8x32xf32>, vector<8x32xf32> -> vector<8x32xf32>
    %247 = arith.addf %226, %246 : vector<8x32xf32>
    %248 = vector.extract_strided_slice %193 {offsets = [0, 16], sizes = [8, 8], strides = [1, 1]} : vector<8x32xf32> to vector<8x8xf32>
    %249 = vector.extract_strided_slice %197 {offsets = [0, 8], sizes = [8, 8], strides = [1, 1]} : vector<8x16xf32> to vector<8x8xf32>
    %250 = vector.extract_strided_slice %189 {offsets = [0, 8], sizes = [8, 8], strides = [1, 1]} : vector<8x16xf32> to vector<8x8xf32>
    %cst_133 = arith.constant dense<0.000000e+00> : vector<8x8xf32>
    %251 = tpu.matmul %248, %249, %cst_133 {dimension_numbers = #tpu.dot_dimension_numbers<[1], [1], [0], [0], [0, 0, 1, 0], [], []>} : vector<8x8xf32>, vector<8x8xf32>, vector<8x8xf32> -> vector<8x8xf32>
    %cst_134 = arith.constant 0.353553385 : f32
    %252 = vector.broadcast %cst_134 : f32 to vector<8x8xf32>
    %253 = arith.mulf %251, %252 : vector<8x8xf32>
    %cst_135 = arith.constant -1.000000e+30 : f32
    %254 = vector.broadcast %cst_135 : f32 to vector<8x8xf32>
    %255 = arith.select %12, %253, %254 : vector<8x8xi1>, vector<8x8xf32>
    %cst_136 = arith.constant dense<0xFF800000> : vector<8xf32>
    %256 = vector.multi_reduction <maximumf>, %255, %cst_136 [1] : vector<8x8xf32> to vector<8xf32>
    %257 = vector.shape_cast %256 : vector<8xf32> to vector<8x1xf32>
    %258 = vector.broadcast %257 : vector<8x1xf32> to vector<8x8xf32>
    %259 = arith.subf %255, %258 : vector<8x8xf32>
    %260 = math.exp %259 : vector<8x8xf32>
    %cst_137 = arith.constant dense<0.000000e+00> : vector<8xf32>
    %261 = vector.multi_reduction <add>, %260, %cst_137 [1] : vector<8x8xf32> to vector<8xf32>
    %262 = vector.shape_cast %261 : vector<8xf32> to vector<8x1xf32>
    %cst_138 = arith.constant dense<0.000000e+00> : vector<8x8xf32>
    %263 = tpu.matmul %260, %250, %cst_138 {dimension_numbers = #tpu.dot_dimension_numbers<[1], [0], [0], [1], [0, 0, 1, 1], [], []>} : vector<8x8xf32>, vector<8x8xf32>, vector<8x8xf32> -> vector<8x8xf32>
    %264 = vector.broadcast %262 : vector<8x1xf32> to vector<8x8xf32>
    %265 = arith.divf %263, %264 : vector<8x8xf32>
    %266 = vector.extract_strided_slice %205 {offsets = [16, 0], sizes = [8, 32], strides = [1, 1]} : vector<32x32xf32> to vector<8x32xf32>
    %cst_139 = arith.constant dense<0.000000e+00> : vector<8x32xf32>
    %267 = tpu.matmul %265, %266, %cst_139 {dimension_numbers = #tpu.dot_dimension_numbers<[1], [0], [0], [1], [0, 0, 1, 1], [], []>} : vector<8x8xf32>, vector<8x32xf32>, vector<8x32xf32> -> vector<8x32xf32>
    %268 = arith.addf %247, %267 : vector<8x32xf32>
    %269 = vector.extract_strided_slice %193 {offsets = [0, 24], sizes = [8, 8], strides = [1, 1]} : vector<8x32xf32> to vector<8x8xf32>
    %270 = vector.extract_strided_slice %197 {offsets = [0, 8], sizes = [8, 8], strides = [1, 1]} : vector<8x16xf32> to vector<8x8xf32>
    %271 = vector.extract_strided_slice %189 {offsets = [0, 8], sizes = [8, 8], strides = [1, 1]} : vector<8x16xf32> to vector<8x8xf32>
    %cst_140 = arith.constant dense<0.000000e+00> : vector<8x8xf32>
    %272 = tpu.matmul %269, %270, %cst_140 {dimension_numbers = #tpu.dot_dimension_numbers<[1], [1], [0], [0], [0, 0, 1, 0], [], []>} : vector<8x8xf32>, vector<8x8xf32>, vector<8x8xf32> -> vector<8x8xf32>
    %cst_141 = arith.constant 0.353553385 : f32
    %273 = vector.broadcast %cst_141 : f32 to vector<8x8xf32>
    %274 = arith.mulf %272, %273 : vector<8x8xf32>
    %cst_142 = arith.constant -1.000000e+30 : f32
    %275 = vector.broadcast %cst_142 : f32 to vector<8x8xf32>
    %276 = arith.select %12, %274, %275 : vector<8x8xi1>, vector<8x8xf32>
    %cst_143 = arith.constant dense<0xFF800000> : vector<8xf32>
    %277 = vector.multi_reduction <maximumf>, %276, %cst_143 [1] : vector<8x8xf32> to vector<8xf32>
    %278 = vector.shape_cast %277 : vector<8xf32> to vector<8x1xf32>
    %279 = vector.broadcast %278 : vector<8x1xf32> to vector<8x8xf32>
    %280 = arith.subf %276, %279 : vector<8x8xf32>
    %281 = math.exp %280 : vector<8x8xf32>
    %cst_144 = arith.constant dense<0.000000e+00> : vector<8xf32>
    %282 = vector.multi_reduction <add>, %281, %cst_144 [1] : vector<8x8xf32> to vector<8xf32>
    %283 = vector.shape_cast %282 : vector<8xf32> to vector<8x1xf32>
    %cst_145 = arith.constant dense<0.000000e+00> : vector<8x8xf32>
    %284 = tpu.matmul %281, %271, %cst_145 {dimension_numbers = #tpu.dot_dimension_numbers<[1], [0], [0], [1], [0, 0, 1, 1], [], []>} : vector<8x8xf32>, vector<8x8xf32>, vector<8x8xf32> -> vector<8x8xf32>
    %285 = vector.broadcast %283 : vector<8x1xf32> to vector<8x8xf32>
    %286 = arith.divf %284, %285 : vector<8x8xf32>
    %287 = vector.extract_strided_slice %205 {offsets = [24, 0], sizes = [8, 32], strides = [1, 1]} : vector<32x32xf32> to vector<8x32xf32>
    %cst_146 = arith.constant dense<0.000000e+00> : vector<8x32xf32>
    %288 = tpu.matmul %286, %287, %cst_146 {dimension_numbers = #tpu.dot_dimension_numbers<[1], [0], [0], [1], [0, 0, 1, 1], [], []>} : vector<8x8xf32>, vector<8x32xf32>, vector<8x32xf32> -> vector<8x32xf32>
    %289 = arith.addf %268, %288 : vector<8x32xf32>
    %c1_147 = arith.constant 1 : index
    %c0_148 = arith.constant 0 : index
    %c0_149 = arith.constant 0 : index
    %290 = vector.load %arg14[%c1_147, %c0_148, %c0_149] : memref<2x1x32xf32, #tpu.memory_space<vmem>>, vector<1x1x32xf32>
    %291 = vector.shape_cast %290 : vector<1x1x32xf32> to vector<1x32xf32>
    %292 = arith.mulf %289, %289 : vector<8x32xf32>
    %cst_150 = arith.constant dense<0.000000e+00> : vector<8xf32>
    %293 = vector.multi_reduction <add>, %292, %cst_150 [1] : vector<8x32xf32> to vector<8xf32>
    %294 = vector.shape_cast %293 : vector<8xf32> to vector<8x1xf32>
    %cst_151 = arith.constant 3.200000e+01 : f32
    %295 = vector.broadcast %cst_151 : f32 to vector<8x1xf32>
    %296 = arith.divf %294, %295 : vector<8x1xf32>
    %cst_152 = arith.constant 9.99999997E-7 : f32
    %297 = vector.broadcast %cst_152 : f32 to vector<8x1xf32>
    %298 = arith.addf %296, %297 : vector<8x1xf32>
    %299 = math.rsqrt %298 : vector<8x1xf32>
    %300 = vector.broadcast %299 : vector<8x1xf32> to vector<8x32xf32>
    %301 = arith.mulf %289, %300 : vector<8x32xf32>
    %302 = vector.broadcast %291 : vector<1x32xf32> to vector<8x32xf32>
    %303 = arith.mulf %302, %301 : vector<8x32xf32>
    %c1_153 = arith.constant 1 : index
    %c0_154 = arith.constant 0 : index
    %c0_155 = arith.constant 0 : index
    %304 = vector.load %arg10[%c1_153, %c0_154, %c0_155] : memref<2x32x64xf32, #tpu.memory_space<vmem>>, vector<1x32x64xf32>
    %305 = vector.shape_cast %304 : vector<1x32x64xf32> to vector<32x64xf32>
    %cst_156 = arith.constant dense<0.000000e+00> : vector<8x64xf32>
    %306 = tpu.matmul %303, %305, %cst_156 {dimension_numbers = #tpu.dot_dimension_numbers<[1], [0], [0], [1], [0, 0, 1, 1], [], []>} : vector<8x32xf32>, vector<32x64xf32>, vector<8x64xf32> -> vector<8x64xf32>
    %c1_157 = arith.constant 1 : index
    %c0_158 = arith.constant 0 : index
    %c0_159 = arith.constant 0 : index
    %307 = vector.load %arg11[%c1_157, %c0_158, %c0_159] : memref<2x32x64xf32, #tpu.memory_space<vmem>>, vector<1x32x64xf32>
    %308 = vector.shape_cast %307 : vector<1x32x64xf32> to vector<32x64xf32>
    %cst_160 = arith.constant dense<0.000000e+00> : vector<8x64xf32>
    %309 = tpu.matmul %303, %308, %cst_160 {dimension_numbers = #tpu.dot_dimension_numbers<[1], [0], [0], [1], [0, 0, 1, 1], [], []>} : vector<8x32xf32>, vector<32x64xf32>, vector<8x64xf32> -> vector<8x64xf32>
    %310 = arith.negf %306 : vector<8x64xf32>
    %311 = math.exp %310 : vector<8x64xf32>
    %cst_161 = arith.constant 1.000000e+00 : f32
    %312 = vector.broadcast %cst_161 : f32 to vector<8x64xf32>
    %313 = arith.addf %312, %311 : vector<8x64xf32>
    %314 = arith.divf %312, %313 : vector<8x64xf32>
    %315 = arith.mulf %306, %314 : vector<8x64xf32>
    %316 = arith.mulf %309, %315 : vector<8x64xf32>
    %c1_162 = arith.constant 1 : index
    %c0_163 = arith.constant 0 : index
    %c0_164 = arith.constant 0 : index
    %317 = vector.load %arg12[%c1_162, %c0_163, %c0_164] : memref<2x64x32xf32, #tpu.memory_space<vmem>>, vector<1x64x32xf32>
    %318 = vector.shape_cast %317 : vector<1x64x32xf32> to vector<64x32xf32>
    %cst_165 = arith.constant dense<0.000000e+00> : vector<8x32xf32>
    %319 = tpu.matmul %316, %318, %cst_165 {dimension_numbers = #tpu.dot_dimension_numbers<[1], [0], [0], [1], [0, 0, 1, 1], [], []>} : vector<8x64xf32>, vector<64x32xf32>, vector<8x32xf32> -> vector<8x32xf32>
    %320 = arith.addf %289, %319 : vector<8x32xf32>
    %c0_166 = arith.constant 0 : index
    %c0_167 = arith.constant 0 : index
    %321 = vector.load %arg15[%c0_166, %c0_167] : memref<1x32xf32, #tpu.memory_space<vmem>>, vector<1x32xf32>
    %322 = arith.mulf %320, %320 : vector<8x32xf32>
    %cst_168 = arith.constant dense<0.000000e+00> : vector<8xf32>
    %323 = vector.multi_reduction <add>, %322, %cst_168 [1] : vector<8x32xf32> to vector<8xf32>
    %324 = vector.shape_cast %323 : vector<8xf32> to vector<8x1xf32>
    %cst_169 = arith.constant 3.200000e+01 : f32
    %325 = vector.broadcast %cst_169 : f32 to vector<8x1xf32>
    %326 = arith.divf %324, %325 : vector<8x1xf32>
    %cst_170 = arith.constant 9.99999997E-7 : f32
    %327 = vector.broadcast %cst_170 : f32 to vector<8x1xf32>
    %328 = arith.addf %326, %327 : vector<8x1xf32>
    %329 = math.rsqrt %328 : vector<8x1xf32>
    %330 = vector.broadcast %329 : vector<8x1xf32> to vector<8x32xf32>
    %331 = arith.mulf %320, %330 : vector<8x32xf32>
    %332 = vector.broadcast %321 : vector<1x32xf32> to vector<8x32xf32>
    %333 = arith.mulf %332, %331 : vector<8x32xf32>
    %c0_171 = arith.constant 0 : index
    %c0_172 = arith.constant 0 : index
    %c0_173 = arith.constant 0 : index
    %334 = vector.load %arg16[%c0_171, %c0_172, %c0_173] : memref<1x8x32xf32, #tpu.memory_space<vmem>>, vector<1x8x32xf32>
    %335 = vector.shape_cast %334 : vector<1x8x32xf32> to vector<8x32xf32>
    %336 = vector.shape_cast %333 : vector<8x32xf32> to vector<1x8x32xf32>
    tpu.vector_store %arg16[%c0_171, %c0_172, %c0_173], %336 {strides = array<i32>} : memref<1x8x32xf32, #tpu.memory_space<vmem>>, vector<1x8x32xf32>,
    return
  }
  func.func @transform_0(%arg0: i32) -> (i32, i32, i32) {
    %c0_i32 = arith.constant 0 : i32
    %c0_i32_0 = arith.constant 0 : i32
    %c0_i32_1 = arith.constant 0 : i32
    return %arg0, %c0_i32, %c0_i32_0 : i32, i32, i32
  }
  func.func @transform_1(%arg0: i32) -> (i32, i32, i32) {
    %c0_i32 = arith.constant 0 : i32
    %c0_i32_0 = arith.constant 0 : i32
    %c0_i32_1 = arith.constant 0 : i32
    return %arg0, %c0_i32, %c0_i32_0 : i32, i32, i32
  }
  func.func @transform_2(%arg0: i32) -> (i32, i32, i32) {
    %c0_i32 = arith.constant 0 : i32
    %c0_i32_0 = arith.constant 0 : i32
    %c0_i32_1 = arith.constant 0 : i32
    return %arg0, %c0_i32, %c0_i32_0 : i32, i32, i32
  }
  func.func @transform_3(%arg0: i32) -> (i32, i32) {
    %c0_i32 = arith.constant 0 : i32
    %c0_i32_0 = arith.constant 0 : i32
    %c0_i32_1 = arith.constant 0 : i32
    return %c0_i32, %c0_i32_0 : i32, i32
  }
  func.func @transform_4(%arg0: i32) -> (i32, i32) {
    %c0_i32 = arith.constant 0 : i32
    %c0_i32_0 = arith.constant 0 : i32
    %c0_i32_1 = arith.constant 0 : i32
    return %c0_i32, %c0_i32_0 : i32, i32
  }
  func.func @transform_5(%arg0: i32) -> (i32, i32, i32) {
    %c0_i32 = arith.constant 0 : i32
    %c0_i32_0 = arith.constant 0 : i32
    %c0_i32_1 = arith.constant 0 : i32
    %c0_i32_2 = arith.constant 0 : i32
    return %c0_i32, %c0_i32_0, %c0_i32_1 : i32, i32, i32
  }
  func.func @transform_6(%arg0: i32) -> (i32, i32, i32) {
    %c0_i32 = arith.constant 0 : i32
    %c0_i32_0 = arith.constant 0 : i32
    %c0_i32_1 = arith.constant 0 : i32
    %c0_i32_2 = arith.constant 0 : i32
    return %c0_i32, %c0_i32_0, %c0_i32_1 : i32, i32, i32
  }
  func.func @transform_7(%arg0: i32) -> (i32, i32, i32) {
    %c0_i32 = arith.constant 0 : i32
    %c0_i32_0 = arith.constant 0 : i32
    %c0_i32_1 = arith.constant 0 : i32
    %c0_i32_2 = arith.constant 0 : i32
    return %c0_i32, %c0_i32_0, %c0_i32_1 : i32, i32, i32
  }
  func.func @transform_8(%arg0: i32) -> (i32, i32, i32) {
    %c0_i32 = arith.constant 0 : i32
    %c0_i32_0 = arith.constant 0 : i32
    %c0_i32_1 = arith.constant 0 : i32
    %c0_i32_2 = arith.constant 0 : i32
    return %c0_i32, %c0_i32_0, %c0_i32_1 : i32, i32, i32
  }
  func.func @transform_9(%arg0: i32) -> (i32, i32, i32) {
    %c0_i32 = arith.constant 0 : i32
    %c0_i32_0 = arith.constant 0 : i32
    %c0_i32_1 = arith.constant 0 : i32
    %c0_i32_2 = arith.constant 0 : i32
    return %c0_i32, %c0_i32_0, %c0_i32_1 : i32, i32, i32
  }
  func.func @transform_10(%arg0: i32) -> (i32, i32, i32) {
    %c0_i32 = arith.constant 0 : i32
    %c0_i32_0 = arith.constant 0 : i32
    %c0_i32_1 = arith.constant 0 : i32
    %c0_i32_2 = arith.constant 0 : i32
    return %c0_i32, %c0_i32_0, %c0_i32_1 : i32, i32, i32
  }
  func.func @transform_11(%arg0: i32) -> (i32, i32, i32) {
    %c0_i32 = arith.constant 0 : i32
    %c0_i32_0 = arith.constant 0 : i32
    %c0_i32_1 = arith.constant 0 : i32
    %c0_i32_2 = arith.constant 0 : i32
    return %c0_i32, %c0_i32_0, %c0_i32_1 : i32, i32, i32
  }
  func.func @transform_12(%arg0: i32) -> (i32, i32, i32) {
    %c0_i32 = arith.constant 0 : i32
    %c0_i32_0 = arith.constant 0 : i32
    %c0_i32_1 = arith.constant 0 : i32
    %c0_i32_2 = arith.constant 0 : i32
    return %c0_i32, %c0_i32_0, %c0_i32_1 : i32, i32, i32
  }
  func.func @transform_13(%arg0: i32) -> (i32, i32, i32) {
    %c0_i32 = arith.constant 0 : i32
    %c0_i32_0 = arith.constant 0 : i32
    %c0_i32_1 = arith.constant 0 : i32
    %c0_i32_2 = arith.constant 0 : i32
    return %c0_i32, %c0_i32_0, %c0_i32_1 : i32, i32, i32
  }
  func.func @transform_14(%arg0: i32) -> (i32, i32) {
    %c0_i32 = arith.constant 0 : i32
    %c0_i32_0 = arith.constant 0 : i32
    %c0_i32_1 = arith.constant 0 : i32
    return %c0_i32, %c0_i32_0 : i32, i32
  }
  func.func @transform_15(%arg0: i32) -> (i32, i32, i32) {
    %c0_i32 = arith.constant 0 : i32
    %c0_i32_0 = arith.constant 0 : i32
    %c0_i32_1 = arith.constant 0 : i32
    return %arg0, %c0_i32, %c0_i32_0 : i32, i32, i32
  }
  func.func @transform_16(%arg0: i32) -> (i32, i32, i32, i32) {
    %c0_i32 = arith.constant 0 : i32
    %c0_i32_0 = arith.constant 0 : i32
    %c0_i32_1 = arith.constant 0 : i32
    %c0_i32_2 = arith.constant 0 : i32
    return %c0_i32, %arg0, %c0_i32_0, %c0_i32_1 : i32, i32, i32, i32
  }
  func.func @transform_17(%arg0: i32) -> (i32, i32, i32, i32) {
    %c0_i32 = arith.constant 0 : i32
    %c0_i32_0 = arith.constant 0 : i32
    %c0_i32_1 = arith.constant 0 : i32
    %c0_i32_2 = arith.constant 0 : i32
    return %c0_i32, %arg0, %c0_i32_0, %c0_i32_1 : i32, i32, i32, i32
  }
}

</mosaic_0001>

<llo_original>
// kernel: tile.19
$region0: #{tile.19}
  %s0 = inlined_call_operand.vmem [shape: f32[2,8,4,8], index: 0, kind: input, shape index: {}]
  %s1 = inlined_call_operand.vmem [shape: f32[2,8,32], index: 1, kind: output, shape index: {}]
  $region1: #{tile.19} parent=0
    #allocation0 [shape = 'u8[65536]{0}', space=vmem, size = 0x10000, scoped, tag = 'scoped mem for input reshape']
    %s3 = ssub.s32 16, 1
    %s4 = scalar_lea.vmem %s0, 60
    %v5 = vld [vmem:[%s4] sm:%s3]
    %s6 = scalar_lea.vmem [#allocation0], 120
    %7 = vst [vmem:[%s6] sm:%s3] %v5
    %s8 = scalar_lea.vmem %s0, 56
    %v9 = vld [vmem:[%s8] sm:%s3]
    %s10 = scalar_lea.vmem [#allocation0], 112
    %11 = vst [vmem:[%s10] sm:%s3] %v9
    %s12 = scalar_lea.vmem %s0, 52
    %v13 = vld [vmem:[%s12] sm:%s3]
    %s14 = scalar_lea.vmem [#allocation0], 104
    %15 = vst [vmem:[%s14] sm:%s3] %v13
    %s16 = scalar_lea.vmem %s0, 48
    %v17 = vld [vmem:[%s16] sm:%s3]
    %s18 = scalar_lea.vmem [#allocation0], 96
    %19 = vst [vmem:[%s18] sm:%s3] %v17
    %s20 = scalar_lea.vmem %s0, 44
    %v21 = vld [vmem:[%s20] sm:%s3]
    %s22 = scalar_lea.vmem [#allocation0], 88
    %23 = vst [vmem:[%s22] sm:%s3] %v21
    %s24 = scalar_lea.vmem %s0, 40
    %v25 = vld [vmem:[%s24] sm:%s3]
    %s26 = scalar_lea.vmem [#allocation0], 80
    %27 = vst [vmem:[%s26] sm:%s3] %v25
    %s28 = scalar_lea.vmem %s0, 36
    %v29 = vld [vmem:[%s28] sm:%s3]
    %s30 = scalar_lea.vmem [#allocation0], 72
    %31 = vst [vmem:[%s30] sm:%s3] %v29
    %s32 = scalar_lea.vmem %s0, 32
    %v33 = vld [vmem:[%s32] sm:%s3]
    %s34 = scalar_lea.vmem [#allocation0], 64
    %35 = vst [vmem:[%s34] sm:%s3] %v33
    %s36 = scalar_lea.vmem %s0, 28
    %v37 = vld [vmem:[%s36] sm:%s3]
    %s38 = scalar_lea.vmem [#allocation0], 56
    %39 = vst [vmem:[%s38] sm:%s3] %v37
    %s40 = scalar_lea.vmem %s0, 24
    %v41 = vld [vmem:[%s40] sm:%s3]
    %s42 = scalar_lea.vmem [#allocation0], 48
    %43 = vst [vmem:[%s42] sm:%s3] %v41
    %s44 = scalar_lea.vmem %s0, 20
    %v45 = vld [vmem:[%s44] sm:%s3]
    %s46 = scalar_lea.vmem [#allocation0], 40
    %47 = vst [vmem:[%s46] sm:%s3] %v45
    %s48 = scalar_lea.vmem %s0, 16
    %v49 = vld [vmem:[%s48] sm:%s3]
    %s50 = scalar_lea.vmem [#allocation0], 32
    %51 = vst [vmem:[%s50] sm:%s3] %v49
    %s52 = scalar_lea.vmem %s0, 12
    %v53 = vld [vmem:[%s52] sm:%s3]
    %s54 = scalar_lea.vmem [#allocation0], 24
    %55 = vst [vmem:[%s54] sm:%s3] %v53
    %s56 = scalar_lea.vmem %s0, 8
    %v57 = vld [vmem:[%s56] sm:%s3]
    %s58 = scalar_lea.vmem [#allocation0], 16
    %59 = vst [vmem:[%s58] sm:%s3] %v57
    %s60 = scalar_lea.vmem %s0, 4
    %v61 = vld [vmem:[%s60] sm:%s3]
    %s62 = scalar_lea.vmem [#allocation0], 8
    %63 = vst [vmem:[%s62] sm:%s3] %v61
    %v64 = vld [vmem:[%s0] sm:%s3]
    %65 = vst [vmem:[#allocation0] sm:%s3] %v64
    %v66 = vld [vmem:[#allocation0] ss:$8 sm:$0xf]
    %v67 = vld [vmem:[#allocation0] ss:$8 sm:$0xf0]
    %vm68 = vcmask 1047556
    %v69 = vsel %vm68, %v67, %v66
    %vm70 = vcmask 64512
    %71 = vst.msk [vmem:[%s1] sm:$0xff] %vm70, %v69
    %s72 = scalar_lea.vmem [#allocation0], 64
    %v73 = vld [vmem:[%s72] ss:$8 sm:$0xf]
    %s74 = scalar_lea.vmem [#allocation0], 64
    %v75 = vld [vmem:[%s74] ss:$8 sm:$0xf0]
    %vm76 = vcmask 1047556
    %v77 = vsel %vm76, %v75, %v73
    %vm78 = vcmask 64512
    %s79 = scalar_lea.vmem %s1, 8
    %80 = vst.msk [vmem:[%s79] sm:$0xff] %vm78, %v77
    %s81 = scalar_lea.vmem [#allocation0], 3
    %v82 = vld [vmem:[%s81] ss:$8 sm:$0xf]
    %s83 = scalar_lea.vmem [#allocation0], 3
    %v84 = vld [vmem:[%s83] ss:$8 sm:$0xf0]
    %vm85 = vcmask 1047556
    %v86 = vsel %vm85, %v84, %v82
    %87 = vrot.lane.b32.xlu0 %v86, 24
    %v88 = vpop.permute.xlu0 %87
    %vm89 = vcmask 261312
    %90 = vst.msk [vmem:[%s1] sm:$0xff] %vm89, %v88
    %s91 = scalar_lea.vmem [#allocation0], 67
    %v92 = vld [vmem:[%s91] ss:$8 sm:$0xf]
    %s93 = scalar_lea.vmem [#allocation0], 67
    %v94 = vld [vmem:[%s93] ss:$8 sm:$0xf0]
    %vm95 = vcmask 1047556
    %v96 = vsel %vm95, %v94, %v92
    %97 = vrot.lane.b32.xlu0 %v96, 24
    %v98 = vpop.permute.xlu0 %97
    %vm99 = vcmask 261312
    %s100 = scalar_lea.vmem %s1, 8
    %101 = vst.msk [vmem:[%s100] sm:$0xff] %vm99, %v98
    %s102 = scalar_lea.vmem [#allocation0], 2
    %v103 = vld [vmem:[%s102] ss:$8 sm:$0xf]
    %s104 = scalar_lea.vmem [#allocation0], 2
    %v105 = vld [vmem:[%s104] ss:$8 sm:$0xf0]
    %vm106 = vcmask 1047556
    %v107 = vsel %vm106, %v105, %v103
    %108 = vrot.lane.b32.xlu0 %v107, 16
    %v109 = vpop.permute.xlu0 %108
    %vm110 = vcmask 195712
    %111 = vst.msk [vmem:[%s1] sm:$0xff] %vm110, %v109
    %s112 = scalar_lea.vmem [#allocation0], 66
    %v113 = vld [vmem:[%s112] ss:$8 sm:$0xf]
    %s114 = scalar_lea.vmem [#allocation0], 66
    %v115 = vld [vmem:[%s114] ss:$8 sm:$0xf0]
    %vm116 = vcmask 1047556
    %v117 = vsel %vm116, %v115, %v113
    %118 = vrot.lane.b32.xlu0 %v117, 16
    %v119 = vpop.permute.xlu0 %118
    %vm120 = vcmask 195712
    %s121 = scalar_lea.vmem %s1, 8
    %122 = vst.msk [vmem:[%s121] sm:$0xff] %vm120, %v119
    %s123 = scalar_lea.vmem [#allocation0], 1
    %v124 = vld [vmem:[%s123] ss:$8 sm:$0xf]
    %s125 = scalar_lea.vmem [#allocation0], 1
    %v126 = vld [vmem:[%s125] ss:$8 sm:$0xf0]
    %vm127 = vcmask 1047556
    %v128 = vsel %vm127, %v126, %v124
    %129 = vrot.lane.b32.xlu0 %v128, 8
    %v130 = vpop.permute.xlu0 %129
    %vm131 = vcmask 130112
    %132 = vst.msk [vmem:[%s1] sm:$0xff] %vm131, %v130
    %s133 = scalar_lea.vmem [#allocation0], 65
    %v134 = vld [vmem:[%s133] ss:$8 sm:$0xf]
    %s135 = scalar_lea.vmem [#allocation0], 65
    %v136 = vld [vmem:[%s135] ss:$8 sm:$0xf0]
    %vm137 = vcmask 1047556
    %v138 = vsel %vm137, %v136, %v134
    %139 = vrot.lane.b32.xlu0 %v138, 8
    %v140 = vpop.permute.xlu0 %139
    %vm141 = vcmask 130112
    %s142 = scalar_lea.vmem %s1, 8
    %143 = vst.msk [vmem:[%s142] sm:$0xff] %vm141, %v140

// kernel: squeeze.6
$region0: #{squeeze.6}
  %s0 = inlined_call_operand.vmem [shape: f32[1,2,8,16], index: 0, kind: input, shape index: {}]
  %s1 = inlined_call_operand.hbm [shape: f32[2,8,2,8], index: 1, kind: output, shape index: {}]
  $region1: #{squeeze.6} parent=0
    #allocation0 [shape = 'u8[16384]{0}', space=vmem, size = 0x4000, scoped, tag = 'operand span for operand 1']
    #allocation1 [shape = 's32[1]{0}', space=sflag, size = 0x4, scoped, tag = 'scoped memory for squeeze.6']
    #allocation2 [shape = 'u8[65536]{0}', space=vmem, size = 0x10000, scoped, tag = 'scoped mem for output reshape']
    %2 = vsyncpa [#allocation1], 0
    %v3 = vld [vmem:[%s0] sm:$0xff]
    %vm4 = vcmask 64512
    %5 = vst.msk [vmem:[#allocation2] ss:$8 sm:$0xf] %vm4, %v3
    %6 = vst.msk [vmem:[#allocation2] ss:$8 sm:$0xf0] %vm4, %v3
    %s7 = scalar_lea.vmem %s0, 8
    %v8 = vld [vmem:[%s7] sm:$0xff]
    %vm9 = vcmask 64512
    %s10 = scalar_lea.vmem [#allocation2], 64
    %11 = vst.msk [vmem:[%s10] ss:$8 sm:$0xf] %vm9, %v8
    %s12 = scalar_lea.vmem [#allocation2], 64
    %13 = vst.msk [vmem:[%s12] ss:$8 sm:$0xf0] %vm9, %v8
    %v14 = vld [vmem:[%s0] sm:$0xff]
    %15 = vrot.lane.b32.xlu0 %v14, 120
    %v16 = vpop.permute.xlu0 %15
    %vm17 = vcmask 64512
    %s18 = scalar_lea.vmem [#allocation2], 1
    %19 = vst.msk [vmem:[%s18] ss:$8 sm:$0xf] %vm17, %v16
    %s20 = scalar_lea.vmem [#allocation2], 1
    %21 = vst.msk [vmem:[%s20] ss:$8 sm:$0xf0] %vm17, %v16
    %s22 = scalar_lea.vmem %s0, 8
    %v23 = vld [vmem:[%s22] sm:$0xff]
    %24 = vrot.lane.b32.xlu0 %v23, 120
    %v25 = vpop.permute.xlu0 %24
    %vm26 = vcmask 64512
    %s27 = scalar_lea.vmem [#allocation2], 65
    %28 = vst.msk [vmem:[%s27] ss:$8 sm:$0xf] %vm26, %v25
    %s29 = scalar_lea.vmem [#allocation2], 65
    %30 = vst.msk [vmem:[%s29] ss:$8 sm:$0xf0] %vm26, %v25
    %s32 = ssub.s32 4, 1
    %v33 = vld [vmem:[#allocation2] sm:%s32]
    %s35 = ssub.s32 4, 1
    %36 = vst [vmem:[#allocation0] sm:%s35] %v33
    %s37 = scalar_lea.vmem [#allocation2], 8
    %v38 = vld [vmem:[%s37] sm:%s32]
    %s40 = ssub.s32 4, 1
    %s41 = scalar_lea.vmem [#allocation0], 2
    %42 = vst [vmem:[%s41] sm:%s40] %v38
    %s43 = scalar_lea.vmem [#allocation2], 16
    %v44 = vld [vmem:[%s43] sm:%s32]
    %s46 = ssub.s32 4, 1
    %s47 = scalar_lea.vmem [#allocation0], 4
    %48 = vst [vmem:[%s47] sm:%s46] %v44
    %s49 = scalar_lea.vmem [#allocation2], 24
    %v50 = vld [vmem:[%s49] sm:%s32]
    %s52 = ssub.s32 4, 1
    %s53 = scalar_lea.vmem [#allocation0], 6
    %54 = vst [vmem:[%s53] sm:%s52] %v50
    %s55 = scalar_lea.vmem [#allocation2], 32
    %v56 = vld [vmem:[%s55] sm:%s32]
    %s58 = ssub.s32 4, 1
    %s59 = scalar_lea.vmem [#allocation0], 8
    %60 = vst [vmem:[%s59] sm:%s58] %v56
    %s61 = scalar_lea.vmem [#allocation2], 40
    %v62 = vld [vmem:[%s61] sm:%s32]
    %s64 = ssub.s32 4, 1
    %s65 = scalar_lea.vmem [#allocation0], 10
    %66 = vst [vmem:[%s65] sm:%s64] %v62
    %s67 = scalar_lea.vmem [#allocation2], 48
    %v68 = vld [vmem:[%s67] sm:%s32]
    %s70 = ssub.s32 4, 1
    %s71 = scalar_lea.vmem [#allocation0], 12
    %72 = vst [vmem:[%s71] sm:%s70] %v68
    %s73 = scalar_lea.vmem [#allocation2], 56
    %v74 = vld [vmem:[%s73] sm:%s32]
    %s76 = ssub.s32 4, 1
    %s77 = scalar_lea.vmem [#allocation0], 14
    %78 = vst [vmem:[%s77] sm:%s76] %v74
    %s79 = scalar_lea.vmem [#allocation2], 64
    %v80 = vld [vmem:[%s79] sm:%s32]
    %s82 = ssub.s32 4, 1
    %s83 = scalar_lea.vmem [#allocation0], 16
    %84 = vst [vmem:[%s83] sm:%s82] %v80
    %s85 = scalar_lea.vmem [#allocation2], 72
    %v86 = vld [vmem:[%s85] sm:%s32]
    %s88 = ssub.s32 4, 1
    %s89 = scalar_lea.vmem [#allocation0], 18
    %90 = vst [vmem:[%s89] sm:%s88] %v86
    %s91 = scalar_lea.vmem [#allocation2], 80
    %v92 = vld [vmem:[%s91] sm:%s32]
    %s94 = ssub.s32 4, 1
    %s95 = scalar_lea.vmem [#allocation0], 20
    %96 = vst [vmem:[%s95] sm:%s94] %v92
    %s97 = scalar_lea.vmem [#allocation2], 88
    %v98 = vld [vmem:[%s97] sm:%s32]
    %s100 = ssub.s32 4, 1
    %s101 = scalar_lea.vmem [#allocation0], 22
    %102 = vst [vmem:[%s101] sm:%s100] %v98
    %s103 = scalar_lea.vmem [#allocation2], 96
    %v104 = vld [vmem:[%s103] sm:%s32]
    %s106 = ssub.s32 4, 1
    %s107 = scalar_lea.vmem [#allocation0], 24
    %108 = vst [vmem:[%s107] sm:%s106] %v104
    %s109 = scalar_lea.vmem [#allocation2], 104
    %v110 = vld [vmem:[%s109] sm:%s32]
    %s112 = ssub.s32 4, 1
    %s113 = scalar_lea.vmem [#allocation0], 26
    %114 = vst [vmem:[%s113] sm:%s112] %v110
    %s115 = scalar_lea.vmem [#allocation2], 112
    %v116 = vld [vmem:[%s115] sm:%s32]
    %s118 = ssub.s32 4, 1
    %s119 = scalar_lea.vmem [#allocation0], 28
    %120 = vst [vmem:[%s119] sm:%s118] %v116
    %s121 = scalar_lea.vmem [#allocation2], 120
    %v122 = vld [vmem:[%s121] sm:%s32]
    %s124 = ssub.s32 4, 1
    %s125 = scalar_lea.vmem [#allocation0], 30
    %126 = vst [vmem:[%s125] sm:%s124] %v122
    %128 = vsyncadd [#allocation1], 0
    %s130 = sshll.u32 [#allocation0], 4
    %s131 = int_to_ptr.vmem [resolvable:$true] %s130
    %s132 = sshll.u32 %s1, 4
    %s133 = int_to_ptr.hbm [resolvable:$true] %s132
    %135 = dma.vmem_to_hbm [thread:$0]  %s131, 512, %s133, [#allocation1]
    %137 = dma.done [#allocation1], 512
    %138 = vsyncpa [#allocation1], 1

// kernel: _lambda_.1
$region0: #{_lambda_.1}
  #allocation0 [shape = 'u32[]', space=smem, size = 0x4, offset = 0x4, fixed_abs, tag = 'smem constant byte address 0x4 - core index']
  #allocation1 [shape = 'u32[72,128]{1,0:T(1,128)}', space=vmem, size = 0x9000, scoped, tag = 'internal scratch']
  %s0 = inlined_call_operand.vmem [shape: f32[2,8,32], index: 0, kind: input, shape index: {}]
  %s1 = inlined_call_operand.vmem [shape: f32[2,8,32], index: 1, kind: input, shape index: {}]
  %s2 = inlined_call_operand.vmem [shape: f32[2,8,32], index: 2, kind: input, shape index: {}]
  %s3 = inlined_call_operand.vmem [shape: f32[32,32], index: 3, kind: input, shape index: {}]
  %s4 = inlined_call_operand.vmem [shape: f32[16,16], index: 4, kind: input, shape index: {}]
  %s5 = inlined_call_operand.vmem [shape: f32[2,32,32], index: 5, kind: input, shape index: {}]
  %s6 = inlined_call_operand.vmem [shape: f32[2,32,16], index: 6, kind: input, shape index: {}]
  %s7 = inlined_call_operand.vmem [shape: f32[2,32,16], index: 7, kind: input, shape index: {}]
  %s8 = inlined_call_operand.vmem [shape: f32[2,32,32], index: 8, kind: input, shape index: {}]
  %s9 = inlined_call_operand.vmem [shape: f32[2,32,64], index: 9, kind: input, shape index: {}]
  %s10 = inlined_call_operand.vmem [shape: f32[2,32,64], index: 10, kind: input, shape index: {}]
  %s11 = inlined_call_operand.vmem [shape: f32[2,64,32], index: 11, kind: input, shape index: {}]
  %s12 = inlined_call_operand.vmem [shape: f32[2,1,32], index: 12, kind: input, shape index: {}, may-alias: {12,13}]
  %s13 = inlined_call_operand.vmem [shape: f32[2,1,32], index: 13, kind: input, shape index: {}, may-alias: {12,13}]
  %s14 = inlined_call_operand.vmem [shape: f32[1,32], index: 14, kind: input, shape index: {}]
  %s15 = inlined_call_operand.hbm [shape: f32[2,8,32], index: 15, kind: output, shape index: {0}]
  %s16 = inlined_call_operand.vmem [shape: f32[2,2,8,16], index: 16, kind: output, shape index: {1}]
  %s17 = inlined_call_operand.vmem [shape: f32[2,2,8,16], index: 17, kind: output, shape index: {2}]
  %18 = xla_tuple %s15, %s16, %s17
  %s19 = sld [smem:[#allocation0]]
  $region177: #{_lambda_.1} parent=0
    _
  %s21 = ssub.s32 1, %s19
  %s22 = scalar_select 0, %s21, %s19
  $region1: #{_lambda_.1} parent=0
    #allocation2 [shape = 'u8[8192]{0}', space=vmem, size = 0x2000, scoped, tag = 'output window, operand 0']
    #allocation3 [shape = 's32[2]{0}', space=sflag, size = 0x8, scoped, tag = 'scoped memory for _lambda_.1']
    #allocation4 [shape = 'u8[16384]{0}', space=vmem, size = 0x4000, scoped, tag = 'output window, operand 1']
    #allocation5 [shape = 'u8[16384]{0}', space=vmem, size = 0x4000, scoped, tag = 'output window, operand 2']
    %23 = vsyncpa [#allocation3], 0
    %s24 = scalar_lea.sflag [#allocation3], 1
    %25 = vsyncpa %s24, 0
    loop: start=0, step=1, limit=4
    $region2: #{_lambda_.1} parent=1 // loop_pre_header
      _
    $region3: #{_lambda_.1} parent=1 // loop_header
      %s27 = sphi 0, %s31
      %p28 = scmp.ge.s32.totalorder %s27, 4
      %s37 = sphi 0, %s39
      %s40 = sphi 0, %s37
      %s41 = sphi 0, %s40
      %s57 = sphi 0, %s41
      %s63 = sphi 0, %s65
      %s66 = sphi 0, %s63
      %s67 = sphi 0, %s66
      %s83 = sphi 0, %s67
      %s89 = sphi 0, %s91
      %s92 = sphi 0, %s89
      %s93 = sphi 0, %s92
      %s109 = sphi 0, %s93
      %s113 = sphi 0, %s113
      %s115 = sphi 0, %s113
      %s116 = sphi 0, %s115
      %s130 = sphi 0, %s116
      %s134 = sphi 0, %s134
      %s136 = sphi 0, %s134
      %s137 = sphi 0, %s136
      %s151 = sphi 0, %s137
      %s155 = sphi 0, %s155
      %s157 = sphi 0, %s155
      %s158 = sphi 0, %s157
      %s172 = sphi 0, %s158
      %s176 = sphi 0, %s176
      %s178 = sphi 0, %s176
      %s179 = sphi 0, %s178
      %s193 = sphi 0, %s179
      %s197 = sphi 0, %s197
      %s199 = sphi 0, %s197
      %s200 = sphi 0, %s199
      %s214 = sphi 0, %s200
      %s218 = sphi 0, %s218
      %s220 = sphi 0, %s218
      %s221 = sphi 0, %s220
      %s235 = sphi 0, %s221
      %s239 = sphi 0, %s239
      %s241 = sphi 0, %s239
      %s242 = sphi 0, %s241
      %s256 = sphi 0, %s242
      %s260 = sphi 0, %s260
      %s262 = sphi 0, %s260
      %s263 = sphi 0, %s262
      %s277 = sphi 0, %s263
      %s281 = sphi 0, %s281
      %s283 = sphi 0, %s281
      %s284 = sphi 0, %s283
      %s298 = sphi 0, %s284
      %s302 = sphi 0, %s302
      %s304 = sphi 0, %s302
      %s305 = sphi 0, %s304
      %s319 = sphi 0, %s305
      %s323 = sphi 0, %s323
      %s325 = sphi 0, %s323
      %s326 = sphi 0, %s325
      %s340 = sphi 0, %s326
      %s344 = sphi 0, %s344
      %s346 = sphi 0, %s344
      %s347 = sphi 0, %s346
      %s361 = sphi 0, %s347
      %s367 = sphi 0, %s369
      %s370 = sphi 0, %s367
      %s371 = sphi 0, %s370
      %s387 = sphi 0, %s371
      %s393 = sphi 0, %s395
      %s396 = sphi 0, %s393
      %s397 = sphi 0, %s396
      %s413 = sphi 0, %s397
      %s419 = sphi 0, %s421
      %s422 = sphi 0, %s419
      %s423 = sphi 0, %s422
      %s439 = sphi 0, %s423
    $region4: #{_lambda_.1} parent=1 // loop_header_branch
      %30 = sbr.rel (%p28) target = $region8
    $region5: #{_lambda_.1} parent=1 // loop_body
      %s32 = ssub.s32 %s27, 1
      %s33 = ssub.s32 %s27, 2
      %s34 = sadd.s32 %s27, 1
      %s35 = ssub.s32 %s27, %s34
      %p36 = scmp.eq.s32.totalorder %s35, 0
      %s38 = sadd.s32 %s37, 1
      %s39 = scalar_select %p36, %s37, %s38
      %p42 = pneg %p36
      %p43 = scmp.eq.s32.totalorder %s27, 1
      %p44 = por %p42, %p43
      %p45 = scmp.ne.s32.totalorder %s37, %s40
      %p46 = scmp.eq.s32.totalorder %s27, 0
      %p47 = por %p45, %p46
      %p48 = scmp.ne.s32.totalorder %s37, %s40
      %p49 = scmp.eq.s32.totalorder %s32, 1
      %p50 = por %p48, %p49
      %p51 = scmp.ne.s32.totalorder %s40, %s41
      %p52 = scmp.eq.s32.totalorder %s32, 0
      %p53 = por %p51, %p52
      %p54 = scmp.ne.s32.totalorder %s40, %s41
      %p55 = scmp.eq.s32.totalorder %s33, 1
      %p56 = por %p54, %p55
      %p58 = scmp.ne.s32.totalorder %s41, %s57
      %p59 = scmp.eq.s32.totalorder %s33, 0
      %p60 = por %p58, %p59
      %s61 = ssub.s32 %s27, %s34
      %p62 = scmp.eq.s32.totalorder %s61, 0
      %s64 = sadd.s32 %s63, 1
      %s65 = scalar_select %p62, %s63, %s64
      %p68 = pneg %p62
      %p69 = scmp.eq.s32.totalorder %s27, 1
      %p70 = por %p68, %p69
      %p71 = scmp.ne.s32.totalorder %s63, %s66
      %p72 = scmp.eq.s32.totalorder %s27, 0
      %p73 = por %p71, %p72
      %p74 = scmp.ne.s32.totalorder %s63, %s66
      %p75 = scmp.eq.s32.totalorder %s32, 1
      %p76 = por %p74, %p75
      %p77 = scmp.ne.s32.totalorder %s66, %s67
      %p78 = scmp.eq.s32.totalorder %s32, 0
      %p79 = por %p77, %p78
      %p80 = scmp.ne.s32.totalorder %s66, %s67
      %p81 = scmp.eq.s32.totalorder %s33, 1
      %p82 = por %p80, %p81
      %p84 = scmp.ne.s32.totalorder %s67, %s83
      %p85 = scmp.eq.s32.totalorder %s33, 0
      %p86 = por %p84, %p85
      %s87 = ssub.s32 %s27, %s34
      %p88 = scmp.eq.s32.totalorder %s87, 0
      %s90 = sadd.s32 %s89, 1
      %s91 = scalar_select %p88, %s89, %s90
      %p94 = pneg %p88
      %p95 = scmp.eq.s32.totalorder %s27, 1
      %p96 = por %p94, %p95
      %p97 = scmp.ne.s32.totalorder %s89, %s92
      %p98 = scmp.eq.s32.totalorder %s27, 0
      %p99 = por %p97, %p98
      %p100 = scmp.ne.s32.totalorder %s89, %s92
      %p101 = scmp.eq.s32.totalorder %s32, 1
      %p102 = por %p100, %p101
      %p103 = scmp.ne.s32.totalorder %s92, %s93
      %p104 = scmp.eq.s32.totalorder %s32, 0
      %p105 = por %p103, %p104
      %p106 = scmp.ne.s32.totalorder %s92, %s93
      %p107 = scmp.eq.s32.totalorder %s33, 1
      %p108 = por %p106, %p107
      %p110 = scmp.ne.s32.totalorder %s93, %s109
      %p111 = scmp.eq.s32.totalorder %s33, 0
      %p112 = por %p110, %p111
      %s114 = sadd.s32 %s113, 1
      %p117 = scmp.eq.s32.totalorder %s27, 1
      %p118 = scmp.ne.s32.totalorder %s113, %s115
      %p119 = scmp.eq.s32.totalorder %s27, 0
      %p120 = por %p118, %p119
      %p121 = scmp.ne.s32.totalorder %s113, %s115
      %p122 = scmp.eq.s32.totalorder %s32, 1
      %p123 = por %p121, %p122
      %p124 = scmp.ne.s32.totalorder %s115, %s116
      %p125 = scmp.eq.s32.totalorder %s32, 0
      %p126 = por %p124, %p125
      %p127 = scmp.ne.s32.totalorder %s115, %s116
      %p128 = scmp.eq.s32.totalorder %s33, 1
      %p129 = por %p127, %p128
      %p131 = scmp.ne.s32.totalorder %s116, %s130
      %p132 = scmp.eq.s32.totalorder %s33, 0
      %p133 = por %p131, %p132
      %s135 = sadd.s32 %s134, 1
      %p138 = scmp.eq.s32.totalorder %s27, 1
      %p139 = scmp.ne.s32.totalorder %s134, %s136
      %p140 = scmp.eq.s32.totalorder %s27, 0
      %p141 = por %p139, %p140
      %p142 = scmp.ne.s32.totalorder %s134, %s136
      %p143 = scmp.eq.s32.totalorder %s32, 1
      %p144 = por %p142, %p143
      %p145 = scmp.ne.s32.totalorder %s136, %s137
      %p146 = scmp.eq.s32.totalorder %s32, 0
      %p147 = por %p145, %p146
      %p148 = scmp.ne.s32.totalorder %s136, %s137
      %p149 = scmp.eq.s32.totalorder %s33, 1
      %p150 = por %p148, %p149
      %p152 = scmp.ne.s32.totalorder %s137, %s151
      %p153 = scmp.eq.s32.totalorder %s33, 0
      %p154 = por %p152, %p153
      %s156 = sadd.s32 %s155, 1
      %p159 = scmp.eq.s32.totalorder %s27, 1
      %p160 = scmp.ne.s32.totalorder %s155, %s157
      %p161 = scmp.eq.s32.totalorder %s27, 0
      %p162 = por %p160, %p161
      %p163 = scmp.ne.s32.totalorder %s155, %s157
      %p164 = scmp.eq.s32.totalorder %s32, 1
      %p165 = por %p163, %p164
      %p166 = scmp.ne.s32.totalorder %s157, %s158
      %p167 = scmp.eq.s32.totalorder %s32, 0
      %p168 = por %p166, %p167
      %p169 = scmp.ne.s32.totalorder %s157, %s158
      %p170 = scmp.eq.s32.totalorder %s33, 1
      %p171 = por %p169, %p170
      %p173 = scmp.ne.s32.totalorder %s158, %s172
      %p174 = scmp.eq.s32.totalorder %s33, 0
      %p175 = por %p173, %p174
      %s177 = sadd.s32 %s176, 1
      %p180 = scmp.eq.s32.totalorder %s27, 1
      %p181 = scmp.ne.s32.totalorder %s176, %s178
      %p182 = scmp.eq.s32.totalorder %s27, 0
      %p183 = por %p181, %p182
      %p184 = scmp.ne.s32.totalorder %s176, %s178
      %p185 = scmp.eq.s32.totalorder %s32, 1
      %p186 = por %p184, %p185
      %p187 = scmp.ne.s32.totalorder %s178, %s179
      %p188 = scmp.eq.s32.totalorder %s32, 0
      %p189 = por %p187, %p188
      %p190 = scmp.ne.s32.totalorder %s178, %s179
      %p191 = scmp.eq.s32.totalorder %s33, 1
      %p192 = por %p190, %p191
      %p194 = scmp.ne.s32.totalorder %s179, %s193
      %p195 = scmp.eq.s32.totalorder %s33, 0
      %p196 = por %p194, %p195
      %s198 = sadd.s32 %s197, 1
      %p201 = scmp.eq.s32.totalorder %s27, 1
      %p202 = scmp.ne.s32.totalorder %s197, %s199
      %p203 = scmp.eq.s32.totalorder %s27, 0
      %p204 = por %p202, %p203
      %p205 = scmp.ne.s32.totalorder %s197, %s199
      %p206 = scmp.eq.s32.totalorder %s32, 1
      %p207 = por %p205, %p206
      %p208 = scmp.ne.s32.totalorder %s199, %s200
      %p209 = scmp.eq.s32.totalorder %s32, 0
      %p210 = por %p208, %p209
      %p211 = scmp.ne.s32.totalorder %s199, %s200
      %p212 = scmp.eq.s32.totalorder %s33, 1
      %p213 = por %p211, %p212
      %p215 = scmp.ne.s32.totalorder %s200, %s214
      %p216 = scmp.eq.s32.totalorder %s33, 0
      %p217 = por %p215, %p216
      %s219 = sadd.s32 %s218, 1
      %p222 = scmp.eq.s32.totalorder %s27, 1
      %p223 = scmp.ne.s32.totalorder %s218, %s220
      %p224 = scmp.eq.s32.totalorder %s27, 0
      %p225 = por %p223, %p224
      %p226 = scmp.ne.s32.totalorder %s218, %s220
      %p227 = scmp.eq.s32.totalorder %s32, 1
      %p228 = por %p226, %p227
      %p229 = scmp.ne.s32.totalorder %s220, %s221
      %p230 = scmp.eq.s32.totalorder %s32, 0
      %p231 = por %p229, %p230
      %p232 = scmp.ne.s32.totalorder %s220, %s221
      %p233 = scmp.eq.s32.totalorder %s33, 1
      %p234 = por %p232, %p233
      %p236 = scmp.ne.s32.totalorder %s221, %s235
      %p237 = scmp.eq.s32.totalorder %s33, 0
      %p238 = por %p236, %p237
      %s240 = sadd.s32 %s239, 1
      %p243 = scmp.eq.s32.totalorder %s27, 1
      %p244 = scmp.ne.s32.totalorder %s239, %s241
      %p245 = scmp.eq.s32.totalorder %s27, 0
      %p246 = por %p244, %p245
      %p247 = scmp.ne.s32.totalorder %s239, %s241
      %p248 = scmp.eq.s32.totalorder %s32, 1
      %p249 = por %p247, %p248
      %p250 = scmp.ne.s32.totalorder %s241, %s242
      %p251 = scmp.eq.s32.totalorder %s32, 0
      %p252 = por %p250, %p251
      %p253 = scmp.ne.s32.totalorder %s241, %s242
      %p254 = scmp.eq.s32.totalorder %s33, 1
      %p255 = por %p253, %p254
      %p257 = scmp.ne.s32.totalorder %s242, %s256
      %p258 = scmp.eq.s32.totalorder %s33, 0
      %p259 = por %p257, %p258
      %s261 = sadd.s32 %s260, 1
      %p264 = scmp.eq.s32.totalorder %s27, 1
      %p265 = scmp.ne.s32.totalorder %s260, %s262
      %p266 = scmp.eq.s32.totalorder %s27, 0
      %p267 = por %p265, %p266
      %p268 = scmp.ne.s32.totalorder %s260, %s262
      %p269 = scmp.eq.s32.totalorder %s32, 1
      %p270 = por %p268, %p269
      %p271 = scmp.ne.s32.totalorder %s262, %s263
      %p272 = scmp.eq.s32.totalorder %s32, 0
      %p273 = por %p271, %p272
      %p274 = scmp.ne.s32.totalorder %s262, %s263
      %p275 = scmp.eq.s32.totalorder %s33, 1
      %p276 = por %p274, %p275
      %p278 = scmp.ne.s32.totalorder %s263, %s277
      %p279 = scmp.eq.s32.totalorder %s33, 0
      %p280 = por %p278, %p279
      %s282 = sadd.s32 %s281, 1
      %p285 = scmp.eq.s32.totalorder %s27, 1
      %p286 = scmp.ne.s32.totalorder %s281, %s283
      %p287 = scmp.eq.s32.totalorder %s27, 0
      %p288 = por %p286, %p287
      %p289 = scmp.ne.s32.totalorder %s281, %s283
      %p290 = scmp.eq.s32.totalorder %s32, 1
      %p291 = por %p289, %p290
      %p292 = scmp.ne.s32.totalorder %s283, %s284
      %p293 = scmp.eq.s32.totalorder %s32, 0
      %p294 = por %p292, %p293
      %p295 = scmp.ne.s32.totalorder %s283, %s284
      %p296 = scmp.eq.s32.totalorder %s33, 1
      %p297 = por %p295, %p296
      %p299 = scmp.ne.s32.totalorder %s284, %s298
      %p300 = scmp.eq.s32.totalorder %s33, 0
      %p301 = por %p299, %p300
      %s303 = sadd.s32 %s302, 1
      %p306 = scmp.eq.s32.totalorder %s27, 1
      %p307 = scmp.ne.s32.totalorder %s302, %s304
      %p308 = scmp.eq.s32.totalorder %s27, 0
      %p309 = por %p307, %p308
      %p310 = scmp.ne.s32.totalorder %s302, %s304
      %p311 = scmp.eq.s32.totalorder %s32, 1
      %p312 = por %p310, %p311
      %p313 = scmp.ne.s32.totalorder %s304, %s305
      %p314 = scmp.eq.s32.totalorder %s32, 0
      %p315 = por %p313, %p314
      %p316 = scmp.ne.s32.totalorder %s304, %s305
      %p317 = scmp.eq.s32.totalorder %s33, 1
      %p318 = por %p316, %p317
      %p320 = scmp.ne.s32.totalorder %s305, %s319
      %p321 = scmp.eq.s32.totalorder %s33, 0
      %p322 = por %p320, %p321
      %s324 = sadd.s32 %s323, 1
      %p327 = scmp.eq.s32.totalorder %s27, 1
      %p328 = scmp.ne.s32.totalorder %s323, %s325
      %p329 = scmp.eq.s32.totalorder %s27, 0
      %p330 = por %p328, %p329
      %p331 = scmp.ne.s32.totalorder %s323, %s325
      %p332 = scmp.eq.s32.totalorder %s32, 1
      %p333 = por %p331, %p332
      %p334 = scmp.ne.s32.totalorder %s325, %s326
      %p335 = scmp.eq.s32.totalorder %s32, 0
      %p336 = por %p334, %p335
      %p337 = scmp.ne.s32.totalorder %s325, %s326
      %p338 = scmp.eq.s32.totalorder %s33, 1
      %p339 = por %p337, %p338
      %p341 = scmp.ne.s32.totalorder %s326, %s340
      %p342 = scmp.eq.s32.totalorder %s33, 0
      %p343 = por %p341, %p342
      %s345 = sadd.s32 %s344, 1
      %p348 = scmp.eq.s32.totalorder %s27, 1
      %p349 = scmp.ne.s32.totalorder %s344, %s346
      %p350 = scmp.eq.s32.totalorder %s27, 0
      %p351 = por %p349, %p350
      %p352 = scmp.ne.s32.totalorder %s344, %s346
      %p353 = scmp.eq.s32.totalorder %s32, 1
      %p354 = por %p352, %p353
      %p355 = scmp.ne.s32.totalorder %s346, %s347
      %p356 = scmp.eq.s32.totalorder %s32, 0
      %p357 = por %p355, %p356
      %p358 = scmp.ne.s32.totalorder %s346, %s347
      %p359 = scmp.eq.s32.totalorder %s33, 1
      %p360 = por %p358, %p359
      %p362 = scmp.ne.s32.totalorder %s347, %s361
      %p363 = scmp.eq.s32.totalorder %s33, 0
      %p364 = por %p362, %p363
      %s365 = ssub.s32 %s27, %s34
      %p366 = scmp.eq.s32.totalorder %s365, 0
      %s368 = sadd.s32 %s367, 1
      %s369 = scalar_select %p366, %s367, %s368
      %p372 = pneg %p366
      %p373 = scmp.eq.s32.totalorder %s27, 1
      %p374 = por %p372, %p373
      %p375 = scmp.ne.s32.totalorder %s367, %s370
      %p376 = scmp.eq.s32.totalorder %s27, 0
      %p377 = por %p375, %p376
      %p378 = scmp.ne.s32.totalorder %s367, %s370
      %p379 = scmp.eq.s32.totalorder %s32, 1
      %p380 = por %p378, %p379
      %p381 = scmp.ne.s32.totalorder %s370, %s371
      %p382 = scmp.eq.s32.totalorder %s32, 0
      %p383 = por %p381, %p382
      %p384 = scmp.ne.s32.totalorder %s370, %s371
      %p385 = scmp.eq.s32.totalorder %s33, 1
      %p386 = por %p384, %p385
      %p388 = scmp.ne.s32.totalorder %s371, %s387
      %p389 = scmp.eq.s32.totalorder %s33, 0
      %p390 = por %p388, %p389
      %s391 = ssub.s32 %s27, %s34
      %p392 = scmp.eq.s32.totalorder %s391, 0
      %s394 = sadd.s32 %s393, 1
      %s395 = scalar_select %p392, %s393, %s394
      %p398 = pneg %p392
      %p399 = scmp.eq.s32.totalorder %s27, 1
      %p400 = por %p398, %p399
      %p401 = scmp.ne.s32.totalorder %s393, %s396
      %p402 = scmp.eq.s32.totalorder %s27, 0
      %p403 = por %p401, %p402
      %p404 = scmp.ne.s32.totalorder %s393, %s396
      %p405 = scmp.eq.s32.totalorder %s32, 1
      %p406 = por %p404, %p405
      %p407 = scmp.ne.s32.totalorder %s396, %s397
      %p408 = scmp.eq.s32.totalorder %s32, 0
      %p409 = por %p407, %p408
      %p410 = scmp.ne.s32.totalorder %s396, %s397
      %p411 = scmp.eq.s32.totalorder %s33, 1
      %p412 = por %p410, %p411
      %p414 = scmp.ne.s32.totalorder %s397, %s413
      %p415 = scmp.eq.s32.totalorder %s33, 0
      %p416 = por %p414, %p415
      %s417 = ssub.s32 %s27, %s34
      %p418 = scmp.eq.s32.totalorder %s417, 0
      %s420 = sadd.s32 %s419, 1
      %s421 = scalar_select %p418, %s419, %s420
      %p424 = pneg %p418
      %p425 = scmp.eq.s32.totalorder %s27, 1
      %p426 = por %p424, %p425
      %p427 = scmp.ne.s32.totalorder %s419, %s422
      %p428 = scmp.eq.s32.totalorder %s27, 0
      %p429 = por %p427, %p428
      %p430 = scmp.ne.s32.totalorder %s419, %s422
      %p431 = scmp.eq.s32.totalorder %s32, 1
      %p432 = por %p430, %p431
      %p433 = scmp.ne.s32.totalorder %s422, %s423
      %p434 = scmp.eq.s32.totalorder %s32, 0
      %p435 = por %p433, %p434
      %p436 = scmp.ne.s32.totalorder %s422, %s423
      %p437 = scmp.eq.s32.totalorder %s33, 1
      %p438 = por %p436, %p437
      %p440 = scmp.ne.s32.totalorder %s423, %s439
      %p441 = scmp.eq.s32.totalorder %s33, 0
      %p442 = por %p440, %p441
      %p443 = scmp.le.s32.totalorder 1, %s27
      %p444 = scmp.lt.s32.totalorder %s27, 3
      %p445 = pnand %p443, %p444
      %p446 = pneg %p445
      // Predicated region
      $region9: #{_lambda_.1} parent=5 // pred_check
        _
      $region10: #{_lambda_.1} parent=5 // pred_check_branch
        %448 = sbr.rel (%p445) target = $region12
      $region11: #{_lambda_.1} parent=5 // pred_region
        %s449 = ssub.s32 %s27, 1
        // Predicated region
        $region13: #{_lambda_.1} parent=11 // pred_check
          %p450 = pneg %p126
        $region14: #{_lambda_.1} parent=11 // pred_check_branch
          %452 = sbr.rel (%p450) target = $region16
        $region15: #{_lambda_.1} parent=11 // pred_region
          _
        $region16: #{_lambda_.1} parent=11 // pred_fallthru
          _
        // Predicated region
        $region17: #{_lambda_.1} parent=11 // pred_check
          %p453 = pneg %p147
        $region18: #{_lambda_.1} parent=11 // pred_check_branch
          %455 = sbr.rel (%p453) target = $region20
        $region19: #{_lambda_.1} parent=11 // pred_region
          _
        $region20: #{_lambda_.1} parent=11 // pred_fallthru
          _
        // Predicated region
        $region21: #{_lambda_.1} parent=11 // pred_check
          %p456 = pneg %p168
        $region22: #{_lambda_.1} parent=11 // pred_check_branch
          %458 = sbr.rel (%p456) target = $region24
        $region23: #{_lambda_.1} parent=11 // pred_region
          _
        $region24: #{_lambda_.1} parent=11 // pred_fallthru
          _
        // Predicated region
        $region25: #{_lambda_.1} parent=11 // pred_check
          %p459 = pneg %p189
        $region26: #{_lambda_.1} parent=11 // pred_check_branch
          %461 = sbr.rel (%p459) target = $region28
        $region27: #{_lambda_.1} parent=11 // pred_region
          _
        $region28: #{_lambda_.1} parent=11 // pred_fallthru
          _
        // Predicated region
        $region29: #{_lambda_.1} parent=11 // pred_check
          %p462 = pneg %p210
        $region30: #{_lambda_.1} parent=11 // pred_check_branch
          %464 = sbr.rel (%p462) target = $region32
        $region31: #{_lambda_.1} parent=11 // pred_region
          _
        $region32: #{_lambda_.1} parent=11 // pred_fallthru
          _
        // Predicated region
        $region33: #{_lambda_.1} parent=11 // pred_check
          %p465 = pneg %p231
        $region34: #{_lambda_.1} parent=11 // pred_check_branch
          %467 = sbr.rel (%p465) target = $region36
        $region35: #{_lambda_.1} parent=11 // pred_region
          _
        $region36: #{_lambda_.1} parent=11 // pred_fallthru
          _
        // Predicated region
        $region37: #{_lambda_.1} parent=11 // pred_check
          %p468 = pneg %p252
        $region38: #{_lambda_.1} parent=11 // pred_check_branch
          %470 = sbr.rel (%p468) target = $region40
        $region39: #{_lambda_.1} parent=11 // pred_region
          _
        $region40: #{_lambda_.1} parent=11 // pred_fallthru
          _
        // Predicated region
        $region41: #{_lambda_.1} parent=11 // pred_check
          %p471 = pneg %p273
        $region42: #{_lambda_.1} parent=11 // pred_check_branch
          %473 = sbr.rel (%p471) target = $region44
        $region43: #{_lambda_.1} parent=11 // pred_region
          _
        $region44: #{_lambda_.1} parent=11 // pred_fallthru
          _
        // Predicated region
        $region45: #{_lambda_.1} parent=11 // pred_check
          %p474 = pneg %p294
        $region46: #{_lambda_.1} parent=11 // pred_check_branch
          %476 = sbr.rel (%p474) target = $region48
        $region47: #{_lambda_.1} parent=11 // pred_region
          _
        $region48: #{_lambda_.1} parent=11 // pred_fallthru
          _
        // Predicated region
        $region49: #{_lambda_.1} parent=11 // pred_check
          %p477 = pneg %p315
        $region50: #{_lambda_.1} parent=11 // pred_check_branch
          %479 = sbr.rel (%p477) target = $region52
        $region51: #{_lambda_.1} parent=11 // pred_region
          _
        $region52: #{_lambda_.1} parent=11 // pred_fallthru
          _
        // Predicated region
        $region53: #{_lambda_.1} parent=11 // pred_check
          %p480 = pneg %p336
        $region54: #{_lambda_.1} parent=11 // pred_check_branch
          %482 = sbr.rel (%p480) target = $region56
        $region55: #{_lambda_.1} parent=11 // pred_region
          _
        $region56: #{_lambda_.1} parent=11 // pred_fallthru
          _
        // Predicated region
        $region57: #{_lambda_.1} parent=11 // pred_check
          %p483 = pneg %p357
        $region58: #{_lambda_.1} parent=11 // pred_check_branch
          %485 = sbr.rel (%p483) target = $region60
        $region59: #{_lambda_.1} parent=11 // pred_region
          _
        $region60: #{_lambda_.1} parent=11 // pred_fallthru
          _
      $region12: #{_lambda_.1} parent=5 // pred_fallthru
        _
      %p486 = scmp.lt.s32.totalorder %s27, 2
      // Predicated region
      $region61: #{_lambda_.1} parent=5 // pred_check
        %p487 = pneg %p486
      $region62: #{_lambda_.1} parent=5 // pred_check_branch
        %489 = sbr.rel (%p487) target = $region64
      $region63: #{_lambda_.1} parent=5 // pred_region
        // Predicated region
        $region65: #{_lambda_.1} parent=63 // pred_check
          %p490 = pneg %p47
        $region66: #{_lambda_.1} parent=63 // pred_check_branch
          %492 = sbr.rel (%p490) target = $region68
        $region67: #{_lambda_.1} parent=63 // pred_region
          %p493 = scmp.lt.s32.totalorder %s27, 1
          %s494 = scalar_select %p493, %s27, 1
          %s495 = smul.addr %s494, 8
          %s496 = scalar_lea.vmem %s0, %s495
        $region68: #{_lambda_.1} parent=63 // pred_fallthru
          _
        // Predicated region
        $region69: #{_lambda_.1} parent=63 // pred_check
          %p497 = pneg %p73
        $region70: #{_lambda_.1} parent=63 // pred_check_branch
          %499 = sbr.rel (%p497) target = $region72
        $region71: #{_lambda_.1} parent=63 // pred_region
          %p500 = scmp.lt.s32.totalorder %s27, 1
          %s501 = scalar_select %p500, %s27, 1
          %s502 = smul.addr %s501, 8
          %s503 = scalar_lea.vmem %s1, %s502
        $region72: #{_lambda_.1} parent=63 // pred_fallthru
          _
        // Predicated region
        $region73: #{_lambda_.1} parent=63 // pred_check
          %p504 = pneg %p99
        $region74: #{_lambda_.1} parent=63 // pred_check_branch
          %506 = sbr.rel (%p504) target = $region76
        $region75: #{_lambda_.1} parent=63 // pred_region
          %p507 = scmp.lt.s32.totalorder %s27, 1
          %s508 = scalar_select %p507, %s27, 1
          %s509 = smul.addr %s508, 8
          %s510 = scalar_lea.vmem %s2, %s509
        $region76: #{_lambda_.1} parent=63 // pred_fallthru
          _
      $region64: #{_lambda_.1} parent=5 // pred_fallthru
        _
      %p511 = scmp.le.s32.totalorder 1, %s27
      %p512 = scmp.lt.s32.totalorder %s27, 3
      %p513 = pnand %p511, %p512
      %p514 = pneg %p513
      // Predicated region
      $region77: #{_lambda_.1} parent=5 // pred_check
        _
      $region78: #{_lambda_.1} parent=5 // pred_check_branch
        %516 = sbr.rel (%p513) target = $region80
      $region79: #{_lambda_.1} parent=5 // pred_region
        %s517 = ssub.s32 %s27, 1
        %p518 = scmp.lt.s32.totalorder %s32, 1
        %s519 = scalar_select %p518, %s32, 1
        %s520 = smul.addr %s519, 8
        %s521 = scalar_lea.vmem %s0, %s520
        %p522 = pneg %p53
        %p523 = pneg %p50
        %p524 = scmp.lt.s32.totalorder %s32, 1
        %s525 = scalar_select %p524, %s32, 1
        %s526 = smul.addr %s525, 8
        %s527 = scalar_lea.vmem %s1, %s526
        %p528 = pneg %p79
        %p529 = pneg %p76
        %p530 = scmp.lt.s32.totalorder %s32, 1
        %s531 = scalar_select %p530, %s32, 1
        %s532 = smul.addr %s531, 8
        %s533 = scalar_lea.vmem %s2, %s532
        %p534 = pneg %p105
        %p535 = pneg %p102
        %p536 = pneg %p126
        %p537 = pneg %p123
        %p538 = pneg %p147
        %p539 = pneg %p144
        %p540 = pneg %p168
        %p541 = pneg %p165
        %p542 = pneg %p189
        %p543 = pneg %p186
        %p544 = pneg %p210
        %p545 = pneg %p207
        %p546 = pneg %p231
        %p547 = pneg %p228
        %p548 = pneg %p252
        %p549 = pneg %p249
        %p550 = pneg %p273
        %p551 = pneg %p270
        %p552 = pneg %p294
        %p553 = pneg %p291
        %p554 = pneg %p315
        %p555 = pneg %p312
        %p556 = pneg %p336
        %p557 = pneg %p333
        %p558 = pneg %p357
        %p559 = pneg %p354
        %p560 = pneg %p383
        %p561 = pneg %p380
        %s562 = sand.u32 %s370, 1
        %s563 = scalar_lea.sflag [#allocation3], %s562
        %s564 = sand.u32 %s370, 1
        %s565 = smul.addr %s564, 8
        %s566 = scalar_lea.vmem [#allocation2], %s565
        %p567 = pneg %p409
        %p568 = pneg %p406
        %s569 = sand.u32 %s396, 1
        %s570 = sand.u32 %s396, 1
        %s571 = smul.addr %s570, 16
        %s572 = scalar_lea.vmem [#allocation4], %s571
        %p573 = pneg %p435
        %p574 = pneg %p432
        %s575 = sand.u32 %s422, 1
        %s576 = sand.u32 %s422, 1
        %s577 = smul.addr %s576, 16
        %s578 = scalar_lea.vmem [#allocation5], %s577
        %p579 = scmp.lt.s32.totalorder %s32, 1
        %s580 = scalar_select %p579, %s32, 1
        %s581 = smul.addr %s580, 8
        %s582 = scalar_lea.vmem %s0, %s581
        %p583 = scmp.lt.s32.totalorder %s32, 1
        %s584 = scalar_select %p583, %s32, 1
        %s585 = smul.addr %s584, 8
        %s586 = scalar_lea.vmem %s1, %s585
        %p587 = scmp.lt.s32.totalorder %s32, 1
        %s588 = scalar_select %p587, %s32, 1
        %s589 = smul.addr %s588, 8
        %s590 = scalar_lea.vmem %s2, %s589
        %v591 = vld [vmem:[%s582] sm:$0xff]
        %v592 = vld [vmem:[%s586] sm:$0xff]
        %v593 = vld [vmem:[%s590] sm:$0xff]
        %v594 = vld [vmem:[%s3] sm:$0xff]
        %v595 = vld [vmem:[%s3 + $0x8] sm:$0xff]
        %v596 = vld [vmem:[%s3 + $0x10] sm:$0xff]
        %v597 = vld [vmem:[%s3 + $0x18] sm:$0xff]
        %v598 = vld [vmem:[%s4] sm:$0xff]
        %v599 = vld [vmem:[%s4 + $0x8] sm:$0xff]
        %v600 = vlaneseq
        %v601 = vshrl.u32 %v600, 7
        %v602 = vlaneseq
        %v603 = vand.u32 %v602, 127
        %vm604 = vcmp.le.s32.totalorder %v603, %v601
        %v605 = vld [vmem:[%s12] sm:$0x1]
        %v606 = vmul.f32 %v591, %v591
        %vm607 = vcmask 261120
        %v608 = vsel %vm607, %v606, 0.0
        %609 = vadd.xlane.f32.xlu0 %v608
        %v610 = vpop.xlane.xlu0 %609
        %v611 = vrcp.pop 32.0
        %v612 = vmul.f32 32.0, %v611
        %v613 = vsub.f32 1.0, %v612
        %v614 = vmul.f32 %v611, %v613
        %v615 = vadd.f32 %v611, %v614
        %vm616 = vweird.f32 %v611
        %v617 = vsel %vm616, %v611, %v615
        %v618 = vmul.f32 %v610, %v617
        %v619 = vadd.f32 %v618, 1e-06
        %v620 = vrsqrt.pop %v619
        %v621 = vmul.f32 %v620, %v619
        %v622 = vmul.f32 %v621, %v620
        %v623 = vmul.f32 0.5, %v622
        %v624 = vsub.f32 1.5, %v623
        %v625 = vmul.f32 %v620, %v624
        %vm626 = vweird.f32 %v619
        %vm627 = vweird.f32 %v620
        %vm628 = vmor %vm626, %vm627
        %v629 = vsel %vm628, %v620, %v625
        %v630 = vmul.f32 %v591, %v629
        %v632 = vperm.slane %v605, 0
        %v634 = vmul.f32 %v632, %v630
        %v635 = vld [vmem:[%s5] sm:$0xff]
        %v636 = vld [vmem:[%s5 + $0x8] sm:$0xff]
        %v637 = vld [vmem:[%s5 + $0x10] sm:$0xff]
        %v638 = vld [vmem:[%s5 + $0x18] sm:$0xff]
        %v640 = vsel %vm607, %v634, 0
        %642 = vmatpush.msra.mxu0 0.0
        %643 = vmatpush.msra.mxu0 0.0
        %644 = vmatpush.msra.mxu0 0.0
        %645 = vmatpush.msra.mxu0 0.0
        %646 = vmatpush.msra.mxu0 0.0
        %647 = vmatpush.msra.mxu0 0.0
        %648 = vmatpush.msra.mxu0 0.0
        %649 = vmatpush.msra.mxu0 0.0
        %650 = vmatpush.msra.mxu0 0.0
        %651 = vmatpush.msra.mxu0 0.0
        %652 = vmatpush.msra.mxu0 0.0
        %653 = vmatpush.msra.mxu0 0.0
        %654 = vmatpush.msra.mxu0 %v638
        %655 = vmatpush.msra.mxu0 %v637
        %656 = vmatpush.msra.mxu0 %v636
        %657 = vmatpush.msra.mxu0 %v635
        %658 = vmatmul.f32.gmra.mxu0 %v640
        %v659 = vpop.f32.mrf.mxu0
        %v660 = vadd.f32 0.0, %v659
        %661 = vdwg.mxu0
        %v662 = vld [vmem:[%s6] sm:$0xff]
        %v663 = vld [vmem:[%s6 + $0x8] sm:$0xff]
        %v664 = vld [vmem:[%s6 + $0x10] sm:$0xff]
        %v665 = vld [vmem:[%s6 + $0x18] sm:$0xff]
        %666 = vmatpush.msra.mxu0 0.0
        %667 = vmatpush.msra.mxu0 0.0
        %668 = vmatpush.msra.mxu0 0.0
        %669 = vmatpush.msra.mxu0 0.0
        %670 = vmatpush.msra.mxu0 0.0
        %671 = vmatpush.msra.mxu0 0.0
        %672 = vmatpush.msra.mxu0 0.0
        %673 = vmatpush.msra.mxu0 0.0
        %674 = vmatpush.msra.mxu0 0.0
        %675 = vmatpush.msra.mxu0 0.0
        %676 = vmatpush.msra.mxu0 0.0
        %677 = vmatpush.msra.mxu0 0.0
        %678 = vmatpush.msra.mxu0 %v665
        %679 = vmatpush.msra.mxu0 %v664
        %680 = vmatpush.msra.mxu0 %v663
        %681 = vmatpush.msra.mxu0 %v662
        %682 = vmatmul.f32.gmra.mxu0 %v640
        %v683 = vpop.f32.mrf.mxu0
        %v684 = vadd.f32 0.0, %v683
        %685 = vdwg.mxu0
        %v686 = vld [vmem:[%s7] sm:$0xff]
        %v687 = vld [vmem:[%s7 + $0x8] sm:$0xff]
        %v688 = vld [vmem:[%s7 + $0x10] sm:$0xff]
        %v689 = vld [vmem:[%s7 + $0x18] sm:$0xff]
        %690 = vmatpush.msra.mxu0 0.0
        %691 = vmatpush.msra.mxu0 0.0
        %692 = vmatpush.msra.mxu0 0.0
        %693 = vmatpush.msra.mxu0 0.0
        %694 = vmatpush.msra.mxu0 0.0
        %695 = vmatpush.msra.mxu0 0.0
        %696 = vmatpush.msra.mxu0 0.0
        %697 = vmatpush.msra.mxu0 0.0
        %698 = vmatpush.msra.mxu0 0.0
        %699 = vmatpush.msra.mxu0 0.0
        %700 = vmatpush.msra.mxu0 0.0
        %701 = vmatpush.msra.mxu0 0.0
        %702 = vmatpush.msra.mxu0 %v689
        %703 = vmatpush.msra.mxu0 %v688
        %704 = vmatpush.msra.mxu0 %v687
        %705 = vmatpush.msra.mxu0 %v686
        %706 = vmatmul.f32.gmra.mxu0 %v640
        %v707 = vpop.f32.mrf.mxu0
        %v708 = vadd.f32 0.0, %v707
        %709 = vdwg.mxu0
        %v710 = vmul.f32 %v660, %v592
        %v712 = vsel %vm607, %v660, 0
        %714 = vmatpush.msra.mxu0 0.0
        %715 = vmatpush.msra.mxu0 0.0
        %716 = vmatpush.msra.mxu0 0.0
        %717 = vmatpush.msra.mxu0 0.0
        %718 = vmatpush.msra.mxu0 0.0
        %719 = vmatpush.msra.mxu0 0.0
        %720 = vmatpush.msra.mxu0 0.0
        %721 = vmatpush.msra.mxu0 0.0
        %722 = vmatpush.msra.mxu0 0.0
        %723 = vmatpush.msra.mxu0 0.0
        %724 = vmatpush.msra.mxu0 0.0
        %725 = vmatpush.msra.mxu0 0.0
        %726 = vmatpush.msra.mxu0 %v597
        %727 = vmatpush.msra.mxu0 %v596
        %728 = vmatpush.msra.mxu0 %v595
        %729 = vmatpush.msra.mxu0 %v594
        %730 = vmatmul.f32.gmra.mxu0 %v712
        %v731 = vpop.f32.mrf.mxu0
        %v732 = vadd.f32 0.0, %v731
        %733 = vdwg.mxu0
        %v734 = vmul.f32 %v732, %v593
        %v735 = vadd.f32 %v710, %v734
        %v736 = vmul.f32 %v684, %v592
        %vm737 = vcmask 130048
        %v739 = vsel %vm737, %v684, 0
        %741 = vmatpush.msra.mxu0 0.0
        %742 = vmatpush.msra.mxu0 0.0
        %743 = vmatpush.msra.mxu0 0.0
        %744 = vmatpush.msra.mxu0 0.0
        %745 = vmatpush.msra.mxu0 0.0
        %746 = vmatpush.msra.mxu0 0.0
        %747 = vmatpush.msra.mxu0 0.0
        %748 = vmatpush.msra.mxu0 0.0
        %749 = vmatpush.msra.mxu0 0.0
        %750 = vmatpush.msra.mxu0 0.0
        %751 = vmatpush.msra.mxu0 0.0
        %752 = vmatpush.msra.mxu0 0.0
        %753 = vmatpush.msra.mxu0 0.0
        %754 = vmatpush.msra.mxu0 0.0
        %755 = vmatpush.msra.mxu0 %v599
        %756 = vmatpush.msra.mxu0 %v598
        %757 = vmatmul.f32.gmra.mxu0 %v739
        %v758 = vpop.f32.mrf.mxu0
        %v759 = vadd.f32 0.0, %v758
        %760 = vdwg.mxu0
        %v761 = vmul.f32 %v759, %v593
        %v762 = vadd.f32 %v736, %v761
        %763 = vst.msk [vmem:[%s572] sm:$0xff] %vm737, %v762
        %764 = vst.msk [vmem:[%s578] sm:$0xff] %vm737, %v708
        %v765 = vld [vmem:[%s8] sm:$0xff]
        %v766 = vld [vmem:[%s8 + $0x8] sm:$0xff]
        %v767 = vld [vmem:[%s8 + $0x10] sm:$0xff]
        %v768 = vld [vmem:[%s8 + $0x18] sm:$0xff]
        %vm769 = vcmask 64512
        %v771 = vsel %vm769, %v735, 0
        %v774 = vsel %vm769, %v762, 0
        %776 = vmatpush.xpose.msra.mxu0 0.0
        %777 = vmatpush.xpose.msra.mxu0 0.0
        %778 = vmatpush.xpose.msra.mxu0 0.0
        %779 = vmatpush.xpose.msra.mxu0 0.0
        %780 = vmatpush.xpose.msra.mxu0 0.0
        %781 = vmatpush.xpose.msra.mxu0 0.0
        %782 = vmatpush.xpose.msra.mxu0 0.0
        %783 = vmatpush.xpose.msra.mxu0 0.0
        %784 = vmatpush.xpose.msra.mxu0 0.0
        %785 = vmatpush.xpose.msra.mxu0 0.0
        %786 = vmatpush.xpose.msra.mxu0 0.0
        %787 = vmatpush.xpose.msra.mxu0 0.0
        %788 = vmatpush.xpose.msra.mxu0 0.0
        %789 = vmatpush.xpose.msra.mxu0 0.0
        %790 = vmatpush.xpose.msra.mxu0 0.0
        %791 = vmatpush.xpose.msra.mxu0 %v774
        %792 = vmatmul.f32.gmra.mxu0 %v771
        %v793 = vpop.f32.mrf.mxu0
        %v794 = vadd.f32 0.0, %v793
        %795 = vdwg.mxu0
        %v796 = vmul.f32 %v794, 0.35355338
        %v797 = vsel %vm604, %v796, -1e+30
        %v798 = vsel %vm769, %v797, -inf
        %799 = vmax.xlane.f32.xlu0 %v798
        %v800 = vpop.xlane.xlu0 %799
        %v801 = vsub.f32 %v797, %v800
        %v802 = vmul.f32 %v801, 1.442695
        %v803 = vpow.pop %v802
        %v804 = vsel %vm769, %v803, 0.0
        %805 = vadd.xlane.f32.xlu0 %v804
        %v806 = vpop.xlane.xlu0 %805
        %v808 = vsel %vm769, %v803, 0
        %810 = vmatpush.msra.mxu0 0.0
        %811 = vmatpush.msra.mxu0 0.0
        %812 = vmatpush.msra.mxu0 0.0
        %813 = vmatpush.msra.mxu0 0.0
        %814 = vmatpush.msra.mxu0 0.0
        %815 = vmatpush.msra.mxu0 0.0
        %816 = vmatpush.msra.mxu0 0.0
        %817 = vmatpush.msra.mxu0 0.0
        %818 = vmatpush.msra.mxu0 0.0
        %819 = vmatpush.msra.mxu0 0.0
        %820 = vmatpush.msra.mxu0 0.0
        %821 = vmatpush.msra.mxu0 0.0
        %822 = vmatpush.msra.mxu0 0.0
        %823 = vmatpush.msra.mxu0 0.0
        %824 = vmatpush.msra.mxu0 0.0
        %825 = vmatpush.msra.mxu0 %v708
        %826 = vmatmul.f32.gmra.mxu0 %v808
        %v827 = vpop.f32.mrf.mxu0
        %v828 = vadd.f32 0.0, %v827
        %829 = vdwg.mxu0
        %v830 = vrcp.pop %v806
        %v831 = vmul.f32 %v806, %v830
        %v832 = vsub.f32 1.0, %v831
        %v833 = vmul.f32 %v830, %v832
        %v834 = vadd.f32 %v830, %v833
        %vm835 = vweird.f32 %v806
        %vm836 = vweird.f32 %v830
        %vm837 = vmor %vm835, %vm836
        %v838 = vsel %vm837, %v830, %v834
        %v839 = vand.u32 2147483647, %v806
        %vm840 = vcmp.eq.f32.partialorder %v839, 8.507059e+37
        %v841 = vand.u32 %v806, 2147483648
        %v842 = vor.u32 1.1754944e-38, %v841
        %v843 = vsel %vm840, %v842, %v838
        %v844 = vmul.f32 %v828, %v843
        %v846 = vsel %vm769, %v844, 0
        %848 = vmatpush.msra.mxu0 0.0
        %849 = vmatpush.msra.mxu0 0.0
        %850 = vmatpush.msra.mxu0 0.0
        %851 = vmatpush.msra.mxu0 0.0
        %852 = vmatpush.msra.mxu0 0.0
        %853 = vmatpush.msra.mxu0 0.0
        %854 = vmatpush.msra.mxu0 0.0
        %855 = vmatpush.msra.mxu0 0.0
        %856 = vmatpush.msra.mxu0 0.0
        %857 = vmatpush.msra.mxu0 0.0
        %858 = vmatpush.msra.mxu0 0.0
        %859 = vmatpush.msra.mxu0 0.0
        %860 = vmatpush.msra.mxu0 0.0
        %861 = vmatpush.msra.mxu0 0.0
        %862 = vmatpush.msra.mxu0 0.0
        %863 = vmatpush.msra.mxu0 %v765
        %864 = vmatmul.f32.gmra.mxu0 %v846
        %v865 = vpop.f32.mrf.mxu0
        %v866 = vadd.f32 0.0, %v865
        %867 = vdwg.mxu0
        %v868 = vadd.f32 %v591, %v866
        %869 = vrot.lane.b32.xlu0 %v735, 120
        %v870 = vpop.permute.xlu0 %869
        %v871 = vsel %vm769, %v870, 0
        %873 = vmatpush.xpose.msra.mxu0 0.0
        %874 = vmatpush.xpose.msra.mxu0 0.0
        %875 = vmatpush.xpose.msra.mxu0 0.0
        %876 = vmatpush.xpose.msra.mxu0 0.0
        %877 = vmatpush.xpose.msra.mxu0 0.0
        %878 = vmatpush.xpose.msra.mxu0 0.0
        %879 = vmatpush.xpose.msra.mxu0 0.0
        %880 = vmatpush.xpose.msra.mxu0 0.0
        %881 = vmatpush.xpose.msra.mxu0 0.0
        %882 = vmatpush.xpose.msra.mxu0 0.0
        %883 = vmatpush.xpose.msra.mxu0 0.0
        %884 = vmatpush.xpose.msra.mxu0 0.0
        %885 = vmatpush.xpose.msra.mxu0 0.0
        %886 = vmatpush.xpose.msra.mxu0 0.0
        %887 = vmatpush.xpose.msra.mxu0 0.0
        %888 = vmatpush.xpose.msra.mxu0 %v774
        %889 = vmatmul.f32.gmra.mxu0 %v871
        %v890 = vpop.f32.mrf.mxu0
        %v891 = vadd.f32 0.0, %v890
        %892 = vdwg.mxu0
        %v893 = vmul.f32 %v891, 0.35355338
        %v894 = vsel %vm604, %v893, -1e+30
        %v895 = vsel %vm769, %v894, -inf
        %896 = vmax.xlane.f32.xlu0 %v895
        %v897 = vpop.xlane.xlu0 %896
        %v898 = vsub.f32 %v894, %v897
        %v899 = vmul.f32 %v898, 1.442695
        %v900 = vpow.pop %v899
        %v901 = vsel %vm769, %v900, 0.0
        %902 = vadd.xlane.f32.xlu0 %v901
        %v903 = vpop.xlane.xlu0 %902
        %v905 = vsel %vm769, %v900, 0
        %907 = vmatpush.msra.mxu0 0.0
        %908 = vmatpush.msra.mxu0 0.0
        %909 = vmatpush.msra.mxu0 0.0
        %910 = vmatpush.msra.mxu0 0.0
        %911 = vmatpush.msra.mxu0 0.0
        %912 = vmatpush.msra.mxu0 0.0
        %913 = vmatpush.msra.mxu0 0.0
        %914 = vmatpush.msra.mxu0 0.0
        %915 = vmatpush.msra.mxu0 0.0
        %916 = vmatpush.msra.mxu0 0.0
        %917 = vmatpush.msra.mxu0 0.0
        %918 = vmatpush.msra.mxu0 0.0
        %919 = vmatpush.msra.mxu0 0.0
        %920 = vmatpush.msra.mxu0 0.0
        %921 = vmatpush.msra.mxu0 0.0
        %922 = vmatpush.msra.mxu0 %v708
        %923 = vmatmul.f32.gmra.mxu0 %v905
        %v924 = vpop.f32.mrf.mxu0
        %v925 = vadd.f32 0.0, %v924
        %926 = vdwg.mxu0
        %v927 = vrcp.pop %v903
        %v928 = vmul.f32 %v903, %v927
        %v929 = vsub.f32 1.0, %v928
        %v930 = vmul.f32 %v927, %v929
        %v931 = vadd.f32 %v927, %v930
        %vm932 = vweird.f32 %v903
        %vm933 = vweird.f32 %v927
        %vm934 = vmor %vm932, %vm933
        %v935 = vsel %vm934, %v927, %v931
        %v936 = vand.u32 2147483647, %v903
        %vm937 = vcmp.eq.f32.partialorder %v936, 8.507059e+37
        %v938 = vand.u32 %v903, 2147483648
        %v939 = vor.u32 1.1754944e-38, %v938
        %v940 = vsel %vm937, %v939, %v935
        %v941 = vmul.f32 %v925, %v940
        %v943 = vsel %vm769, %v941, 0
        %945 = vmatpush.msra.mxu0 0.0
        %946 = vmatpush.msra.mxu0 0.0
        %947 = vmatpush.msra.mxu0 0.0
        %948 = vmatpush.msra.mxu0 0.0
        %949 = vmatpush.msra.mxu0 0.0
        %950 = vmatpush.msra.mxu0 0.0
        %951 = vmatpush.msra.mxu0 0.0
        %952 = vmatpush.msra.mxu0 0.0
        %953 = vmatpush.msra.mxu0 0.0
        %954 = vmatpush.msra.mxu0 0.0
        %955 = vmatpush.msra.mxu0 0.0
        %956 = vmatpush.msra.mxu0 0.0
        %957 = vmatpush.msra.mxu0 0.0
        %958 = vmatpush.msra.mxu0 0.0
        %959 = vmatpush.msra.mxu0 0.0
        %960 = vmatpush.msra.mxu0 %v766
        %961 = vmatmul.f32.gmra.mxu0 %v943
        %v962 = vpop.f32.mrf.mxu0
        %v963 = vadd.f32 0.0, %v962
        %964 = vdwg.mxu0
        %v965 = vadd.f32 %v868, %v963
        %966 = vrot.lane.b32.xlu0 %v735, 112
        %v967 = vpop.permute.xlu0 %966
        %968 = vrot.lane.b32.xlu0 %v762, 120
        %v969 = vpop.permute.xlu0 %968
        %v970 = vsel %vm769, %v967, 0
        %v972 = vsel %vm769, %v969, 0
        %974 = vmatpush.xpose.msra.mxu0 0.0
        %975 = vmatpush.xpose.msra.mxu0 0.0
        %976 = vmatpush.xpose.msra.mxu0 0.0
        %977 = vmatpush.xpose.msra.mxu0 0.0
        %978 = vmatpush.xpose.msra.mxu0 0.0
        %979 = vmatpush.xpose.msra.mxu0 0.0
        %980 = vmatpush.xpose.msra.mxu0 0.0
        %981 = vmatpush.xpose.msra.mxu0 0.0
        %982 = vmatpush.xpose.msra.mxu0 0.0
        %983 = vmatpush.xpose.msra.mxu0 0.0
        %984 = vmatpush.xpose.msra.mxu0 0.0
        %985 = vmatpush.xpose.msra.mxu0 0.0
        %986 = vmatpush.xpose.msra.mxu0 0.0
        %987 = vmatpush.xpose.msra.mxu0 0.0
        %988 = vmatpush.xpose.msra.mxu0 0.0
        %989 = vmatpush.xpose.msra.mxu0 %v972
        %990 = vmatmul.f32.gmra.mxu0 %v970
        %v991 = vpop.f32.mrf.mxu0
        %v992 = vadd.f32 0.0, %v991
        %993 = vdwg.mxu0
        %v994 = vmul.f32 %v992, 0.35355338
        %v995 = vsel %vm604, %v994, -1e+30
        %v996 = vsel %vm769, %v995, -inf
        %997 = vmax.xlane.f32.xlu0 %v996
        %v998 = vpop.xlane.xlu0 %997
        %v999 = vsub.f32 %v995, %v998
        %v1000 = vmul.f32 %v999, 1.442695
        %v1001 = vpow.pop %v1000
        %v1002 = vsel %vm769, %v1001, 0.0
        %1003 = vadd.xlane.f32.xlu0 %v1002
        %v1004 = vpop.xlane.xlu0 %1003
        %1006 = vrot.lane.b32.xlu0 %v708, 120
        %v1007 = vpop.permute.xlu0 %1006
        %v1010 = vsel %vm769, %v1001, 0
        %1012 = vmatpush.msra.mxu0 0.0
        %1013 = vmatpush.msra.mxu0 0.0
        %1014 = vmatpush.msra.mxu0 0.0
        %1015 = vmatpush.msra.mxu0 0.0
        %1016 = vmatpush.msra.mxu0 0.0
        %1017 = vmatpush.msra.mxu0 0.0
        %1018 = vmatpush.msra.mxu0 0.0
        %1019 = vmatpush.msra.mxu0 0.0
        %1020 = vmatpush.msra.mxu0 0.0
        %1021 = vmatpush.msra.mxu0 0.0
        %1022 = vmatpush.msra.mxu0 0.0
        %1023 = vmatpush.msra.mxu0 0.0
        %1024 = vmatpush.msra.mxu0 0.0
        %1025 = vmatpush.msra.mxu0 0.0
        %1026 = vmatpush.msra.mxu0 0.0
        %1027 = vmatpush.msra.mxu0 %v1007
        %1028 = vmatmul.f32.gmra.mxu0 %v1010
        %v1029 = vpop.f32.mrf.mxu0
        %v1030 = vadd.f32 0.0, %v1029
        %1031 = vdwg.mxu0
        %v1032 = vrcp.pop %v1004
        %v1033 = vmul.f32 %v1004, %v1032
        %v1034 = vsub.f32 1.0, %v1033
        %v1035 = vmul.f32 %v1032, %v1034
        %v1036 = vadd.f32 %v1032, %v1035
        %vm1037 = vweird.f32 %v1004
        %vm1038 = vweird.f32 %v1032
        %vm1039 = vmor %vm1037, %vm1038
        %v1040 = vsel %vm1039, %v1032, %v1036
        %v1041 = vand.u32 2147483647, %v1004
        %vm1042 = vcmp.eq.f32.partialorder %v1041, 8.507059e+37
        %v1043 = vand.u32 %v1004, 2147483648
        %v1044 = vor.u32 1.1754944e-38, %v1043
        %v1045 = vsel %vm1042, %v1044, %v1040
        %v1046 = vmul.f32 %v1030, %v1045
        %v1048 = vsel %vm769, %v1046, 0
        %1050 = vmatpush.msra.mxu0 0.0
        %1051 = vmatpush.msra.mxu0 0.0
        %1052 = vmatpush.msra.mxu0 0.0
        %1053 = vmatpush.msra.mxu0 0.0
        %1054 = vmatpush.msra.mxu0 0.0
        %1055 = vmatpush.msra.mxu0 0.0
        %1056 = vmatpush.msra.mxu0 0.0
        %1057 = vmatpush.msra.mxu0 0.0
        %1058 = vmatpush.msra.mxu0 0.0
        %1059 = vmatpush.msra.mxu0 0.0
        %1060 = vmatpush.msra.mxu0 0.0
        %1061 = vmatpush.msra.mxu0 0.0
        %1062 = vmatpush.msra.mxu0 0.0
        %1063 = vmatpush.msra.mxu0 0.0
        %1064 = vmatpush.msra.mxu0 0.0
        %1065 = vmatpush.msra.mxu0 %v767
        %1066 = vmatmul.f32.gmra.mxu0 %v1048
        %v1067 = vpop.f32.mrf.mxu0
        %v1068 = vadd.f32 0.0, %v1067
        %1069 = vdwg.mxu0
        %v1070 = vadd.f32 %v965, %v1068
        %1071 = vrot.lane.b32.xlu0 %v735, 104
        %v1072 = vpop.permute.xlu0 %1071
        %v1073 = vsel %vm769, %v1072, 0
        %1075 = vmatpush.xpose.msra.mxu0 0.0
        %1076 = vmatpush.xpose.msra.mxu0 0.0
        %1077 = vmatpush.xpose.msra.mxu0 0.0
        %1078 = vmatpush.xpose.msra.mxu0 0.0
        %1079 = vmatpush.xpose.msra.mxu0 0.0
        %1080 = vmatpush.xpose.msra.mxu0 0.0
        %1081 = vmatpush.xpose.msra.mxu0 0.0
        %1082 = vmatpush.xpose.msra.mxu0 0.0
        %1083 = vmatpush.xpose.msra.mxu0 0.0
        %1084 = vmatpush.xpose.msra.mxu0 0.0
        %1085 = vmatpush.xpose.msra.mxu0 0.0
        %1086 = vmatpush.xpose.msra.mxu0 0.0
        %1087 = vmatpush.xpose.msra.mxu0 0.0
        %1088 = vmatpush.xpose.msra.mxu0 0.0
        %1089 = vmatpush.xpose.msra.mxu0 0.0
        %1090 = vmatpush.xpose.msra.mxu0 %v972
        %1091 = vmatmul.f32.gmra.mxu0 %v1073
        %v1092 = vpop.f32.mrf.mxu0
        %v1093 = vadd.f32 0.0, %v1092
        %1094 = vdwg.mxu0
        %v1095 = vmul.f32 %v1093, 0.35355338
        %v1096 = vsel %vm604, %v1095, -1e+30
        %v1097 = vsel %vm769, %v1096, -inf
        %1098 = vmax.xlane.f32.xlu0 %v1097
        %v1099 = vpop.xlane.xlu0 %1098
        %v1100 = vsub.f32 %v1096, %v1099
        %v1101 = vmul.f32 %v1100, 1.442695
        %v1102 = vpow.pop %v1101
        %v1103 = vsel %vm769, %v1102, 0.0
        %1104 = vadd.xlane.f32.xlu0 %v1103
        %v1105 = vpop.xlane.xlu0 %1104
        %v1107 = vsel %vm769, %v1102, 0
        %1109 = vmatpush.msra.mxu0 0.0
        %1110 = vmatpush.msra.mxu0 0.0
        %1111 = vmatpush.msra.mxu0 0.0
        %1112 = vmatpush.msra.mxu0 0.0
        %1113 = vmatpush.msra.mxu0 0.0
        %1114 = vmatpush.msra.mxu0 0.0
        %1115 = vmatpush.msra.mxu0 0.0
        %1116 = vmatpush.msra.mxu0 0.0
        %1117 = vmatpush.msra.mxu0 0.0
        %1118 = vmatpush.msra.mxu0 0.0
        %1119 = vmatpush.msra.mxu0 0.0
        %1120 = vmatpush.msra.mxu0 0.0
        %1121 = vmatpush.msra.mxu0 0.0
        %1122 = vmatpush.msra.mxu0 0.0
        %1123 = vmatpush.msra.mxu0 0.0
        %1124 = vmatpush.msra.mxu0 %v1007
        %1125 = vmatmul.f32.gmra.mxu0 %v1107
        %v1126 = vpop.f32.mrf.mxu0
        %v1127 = vadd.f32 0.0, %v1126
        %1128 = vdwg.mxu0
        %v1129 = vrcp.pop %v1105
        %v1130 = vmul.f32 %v1105, %v1129
        %v1131 = vsub.f32 1.0, %v1130
        %v1132 = vmul.f32 %v1129, %v1131
        %v1133 = vadd.f32 %v1129, %v1132
        %vm1134 = vweird.f32 %v1105
        %vm1135 = vweird.f32 %v1129
        %vm1136 = vmor %vm1134, %vm1135
        %v1137 = vsel %vm1136, %v1129, %v1133
        %v1138 = vand.u32 2147483647, %v1105
        %vm1139 = vcmp.eq.f32.partialorder %v1138, 8.507059e+37
        %v1140 = vand.u32 %v1105, 2147483648
        %v1141 = vor.u32 1.1754944e-38, %v1140
        %v1142 = vsel %vm1139, %v1141, %v1137
        %v1143 = vmul.f32 %v1127, %v1142
        %v1145 = vsel %vm769, %v1143, 0
        %1147 = vmatpush.msra.mxu0 0.0
        %1148 = vmatpush.msra.mxu0 0.0
        %1149 = vmatpush.msra.mxu0 0.0
        %1150 = vmatpush.msra.mxu0 0.0
        %1151 = vmatpush.msra.mxu0 0.0
        %1152 = vmatpush.msra.mxu0 0.0
        %1153 = vmatpush.msra.mxu0 0.0
        %1154 = vmatpush.msra.mxu0 0.0
        %1155 = vmatpush.msra.mxu0 0.0
        %1156 = vmatpush.msra.mxu0 0.0
        %1157 = vmatpush.msra.mxu0 0.0
        %1158 = vmatpush.msra.mxu0 0.0
        %1159 = vmatpush.msra.mxu0 0.0
        %1160 = vmatpush.msra.mxu0 0.0
        %1161 = vmatpush.msra.mxu0 0.0
        %1162 = vmatpush.msra.mxu0 %v768
        %1163 = vmatmul.f32.gmra.mxu0 %v1145
        %v1164 = vpop.f32.mrf.mxu0
        %v1165 = vadd.f32 0.0, %v1164
        %1166 = vdwg.mxu0
        %v1167 = vadd.f32 %v1070, %v1165
        %v1168 = vld [vmem:[%s13] sm:$0x1]
        %v1169 = vmul.f32 %v1167, %v1167
        %v1170 = vsel %vm607, %v1169, 0.0
        %1171 = vadd.xlane.f32.xlu0 %v1170
        %v1172 = vpop.xlane.xlu0 %1171
        %v1173 = vmul.f32 %v1172, %v617
        %v1174 = vadd.f32 %v1173, 1e-06
        %v1175 = vrsqrt.pop %v1174
        %v1176 = vmul.f32 %v1175, %v1174
        %v1177 = vmul.f32 %v1176, %v1175
        %v1178 = vmul.f32 0.5, %v1177
        %v1179 = vsub.f32 1.5, %v1178
        %v1180 = vmul.f32 %v1175, %v1179
        %vm1181 = vweird.f32 %v1174
        %vm1182 = vweird.f32 %v1175
        %vm1183 = vmor %vm1181, %vm1182
        %v1184 = vsel %vm1183, %v1175, %v1180
        %v1185 = vmul.f32 %v1167, %v1184
        %v1187 = vperm.slane %v1168, 0
        %v1189 = vmul.f32 %v1187, %v1185
        %v1190 = vld [vmem:[%s9] sm:$0xff]
        %v1191 = vld [vmem:[%s9 + $0x8] sm:$0xff]
        %v1192 = vld [vmem:[%s9 + $0x10] sm:$0xff]
        %v1193 = vld [vmem:[%s9 + $0x18] sm:$0xff]
        %v1195 = vsel %vm607, %v1189, 0
        %1197 = vmatpush.msra.mxu0 0.0
        %1198 = vmatpush.msra.mxu0 0.0
        %1199 = vmatpush.msra.mxu0 0.0
        %1200 = vmatpush.msra.mxu0 0.0
        %1201 = vmatpush.msra.mxu0 0.0
        %1202 = vmatpush.msra.mxu0 0.0
        %1203 = vmatpush.msra.mxu0 0.0
        %1204 = vmatpush.msra.mxu0 0.0
        %1205 = vmatpush.msra.mxu0 0.0
        %1206 = vmatpush.msra.mxu0 0.0
        %1207 = vmatpush.msra.mxu0 0.0
        %1208 = vmatpush.msra.mxu0 0.0
        %1209 = vmatpush.msra.mxu0 %v1193
        %1210 = vmatpush.msra.mxu0 %v1192
        %1211 = vmatpush.msra.mxu0 %v1191
        %1212 = vmatpush.msra.mxu0 %v1190
        %1213 = vmatmul.f32.gmra.mxu0 %v1195
        %v1214 = vpop.f32.mrf.mxu0
        %v1215 = vadd.f32 0.0, %v1214
        %1216 = vdwg.mxu0
        %v1217 = vld [vmem:[%s10] sm:$0xff]
        %v1218 = vld [vmem:[%s10 + $0x8] sm:$0xff]
        %v1219 = vld [vmem:[%s10 + $0x10] sm:$0xff]
        %v1220 = vld [vmem:[%s10 + $0x18] sm:$0xff]
        %1221 = vmatpush.msra.mxu0 0.0
        %1222 = vmatpush.msra.mxu0 0.0
        %1223 = vmatpush.msra.mxu0 0.0
        %1224 = vmatpush.msra.mxu0 0.0
        %1225 = vmatpush.msra.mxu0 0.0
        %1226 = vmatpush.msra.mxu0 0.0
        %1227 = vmatpush.msra.mxu0 0.0
        %1228 = vmatpush.msra.mxu0 0.0
        %1229 = vmatpush.msra.mxu0 0.0
        %1230 = vmatpush.msra.mxu0 0.0
        %1231 = vmatpush.msra.mxu0 0.0
        %1232 = vmatpush.msra.mxu0 0.0
        %1233 = vmatpush.msra.mxu0 %v1220
        %1234 = vmatpush.msra.mxu0 %v1219
        %1235 = vmatpush.msra.mxu0 %v1218
        %1236 = vmatpush.msra.mxu0 %v1217
        %1237 = vmatmul.f32.gmra.mxu0 %v1195
        %v1238 = vpop.f32.mrf.mxu0
        %v1239 = vadd.f32 0.0, %v1238
        %1240 = vdwg.mxu0
        %v1241 = vxor.u32 %v1215, 2147483648
        %v1242 = vmul.f32 %v1241, 1.442695
        %v1243 = vpow.pop %v1242
        %v1244 = vadd.f32 %v1243, 1.0
        %v1245 = vrcp.pop %v1244
        %v1246 = vmul.f32 %v1244, %v1245
        %v1247 = vsub.f32 1.0, %v1246
        %v1248 = vmul.f32 %v1245, %v1247
        %v1249 = vadd.f32 %v1245, %v1248
        %vm1250 = vweird.f32 %v1244
        %vm1251 = vweird.f32 %v1245
        %vm1252 = vmor %vm1250, %vm1251
        %v1253 = vsel %vm1252, %v1245, %v1249
        %v1254 = vand.u32 2147483647, %v1244
        %vm1255 = vcmp.eq.f32.partialorder %v1254, 8.507059e+37
        %v1256 = vand.u32 %v1244, 2147483648
        %v1257 = vor.u32 1.1754944e-38, %v1256
        %v1258 = vsel %vm1255, %v1257, %v1253
        %v1259 = vmul.f32 1.0, %v1258
        %v1260 = vmul.f32 %v1215, %v1259
        %v1261 = vmul.f32 %v1239, %v1260
        %v1262 = vld [vmem:[%s11] sm:$0xff]
        %v1263 = vld [vmem:[%s11 + $0x8] sm:$0xff]
        %v1264 = vld [vmem:[%s11 + $0x10] sm:$0xff]
        %v1265 = vld [vmem:[%s11 + $0x18] sm:$0xff]
        %v1266 = vld [vmem:[%s11 + $0x20] sm:$0xff]
        %v1267 = vld [vmem:[%s11 + $0x28] sm:$0xff]
        %v1268 = vld [vmem:[%s11 + $0x30] sm:$0xff]
        %v1269 = vld [vmem:[%s11 + $0x38] sm:$0xff]
        %vm1270 = vcmask 523264
        %v1272 = vsel %vm1270, %v1261, 0
        %1274 = vmatpush.msra.mxu0 0.0
        %1275 = vmatpush.msra.mxu0 0.0
        %1276 = vmatpush.msra.mxu0 0.0
        %1277 = vmatpush.msra.mxu0 0.0
        %1278 = vmatpush.msra.mxu0 0.0
        %1279 = vmatpush.msra.mxu0 0.0
        %1280 = vmatpush.msra.mxu0 0.0
        %1281 = vmatpush.msra.mxu0 0.0
        %1282 = vmatpush.msra.mxu0 %v1269
        %1283 = vmatpush.msra.mxu0 %v1268
        %1284 = vmatpush.msra.mxu0 %v1267
        %1285 = vmatpush.msra.mxu0 %v1266
        %1286 = vmatpush.msra.mxu0 %v1265
        %1287 = vmatpush.msra.mxu0 %v1264
        %1288 = vmatpush.msra.mxu0 %v1263
        %1289 = vmatpush.msra.mxu0 %v1262
        %1290 = vmatmul.f32.gmra.mxu0 %v1272
        %v1291 = vpop.f32.mrf.mxu0
        %v1292 = vadd.f32 0.0, %v1291
        %1293 = vdwg.mxu0
        %v1294 = vadd.f32 %v1167, %v1292
        %s1295 = scalar_lea.vmem %s12, 1
        %v1296 = vld [vmem:[%s1295] sm:$0x1]
        %v1297 = vmul.f32 %v1294, %v1294
        %v1298 = vsel %vm607, %v1297, 0.0
        %1299 = vadd.xlane.f32.xlu0 %v1298
        %v1300 = vpop.xlane.xlu0 %1299
        %v1301 = vmul.f32 %v1300, %v617
        %v1302 = vadd.f32 %v1301, 1e-06
        %v1303 = vrsqrt.pop %v1302
        %v1304 = vmul.f32 %v1303, %v1302
        %v1305 = vmul.f32 %v1304, %v1303
        %v1306 = vmul.f32 0.5, %v1305
        %v1307 = vsub.f32 1.5, %v1306
        %v1308 = vmul.f32 %v1303, %v1307
        %vm1309 = vweird.f32 %v1302
        %vm1310 = vweird.f32 %v1303
        %vm1311 = vmor %vm1309, %vm1310
        %v1312 = vsel %vm1311, %v1303, %v1308
        %v1313 = vmul.f32 %v1294, %v1312
        %v1315 = vperm.slane %v1296, 0
        %v1317 = vmul.f32 %v1315, %v1313
        %s1318 = scalar_lea.vmem %s5, 32
        %v1319 = vld [vmem:[%s1318] sm:$0xff]
        %v1320 = vld [vmem:[%s1318 + $0x8] sm:$0xff]
        %v1321 = vld [vmem:[%s1318 + $0x10] sm:$0xff]
        %v1322 = vld [vmem:[%s1318 + $0x18] sm:$0xff]
        %v1324 = vsel %vm607, %v1317, 0
        %1326 = vmatpush.msra.mxu0 0.0
        %1327 = vmatpush.msra.mxu0 0.0
        %1328 = vmatpush.msra.mxu0 0.0
        %1329 = vmatpush.msra.mxu0 0.0
        %1330 = vmatpush.msra.mxu0 0.0
        %1331 = vmatpush.msra.mxu0 0.0
        %1332 = vmatpush.msra.mxu0 0.0
        %1333 = vmatpush.msra.mxu0 0.0
        %1334 = vmatpush.msra.mxu0 0.0
        %1335 = vmatpush.msra.mxu0 0.0
        %1336 = vmatpush.msra.mxu0 0.0
        %1337 = vmatpush.msra.mxu0 0.0
        %1338 = vmatpush.msra.mxu0 %v1322
        %1339 = vmatpush.msra.mxu0 %v1321
        %1340 = vmatpush.msra.mxu0 %v1320
        %1341 = vmatpush.msra.mxu0 %v1319
        %1342 = vmatmul.f32.gmra.mxu0 %v1324
        %v1343 = vpop.f32.mrf.mxu0
        %v1344 = vadd.f32 0.0, %v1343
        %1345 = vdwg.mxu0
        %s1346 = scalar_lea.vmem %s6, 32
        %v1347 = vld [vmem:[%s1346] sm:$0xff]
        %v1348 = vld [vmem:[%s1346 + $0x8] sm:$0xff]
        %v1349 = vld [vmem:[%s1346 + $0x10] sm:$0xff]
        %v1350 = vld [vmem:[%s1346 + $0x18] sm:$0xff]
        %1351 = vmatpush.msra.mxu0 0.0
        %1352 = vmatpush.msra.mxu0 0.0
        %1353 = vmatpush.msra.mxu0 0.0
        %1354 = vmatpush.msra.mxu0 0.0
        %1355 = vmatpush.msra.mxu0 0.0
        %1356 = vmatpush.msra.mxu0 0.0
        %1357 = vmatpush.msra.mxu0 0.0
        %1358 = vmatpush.msra.mxu0 0.0
        %1359 = vmatpush.msra.mxu0 0.0
        %1360 = vmatpush.msra.mxu0 0.0
        %1361 = vmatpush.msra.mxu0 0.0
        %1362 = vmatpush.msra.mxu0 0.0
        %1363 = vmatpush.msra.mxu0 %v1350
        %1364 = vmatpush.msra.mxu0 %v1349
        %1365 = vmatpush.msra.mxu0 %v1348
        %1366 = vmatpush.msra.mxu0 %v1347
        %1367 = vmatmul.f32.gmra.mxu0 %v1324
        %v1368 = vpop.f32.mrf.mxu0
        %v1369 = vadd.f32 0.0, %v1368
        %1370 = vdwg.mxu0
        %s1371 = scalar_lea.vmem %s7, 32
        %v1372 = vld [vmem:[%s1371] sm:$0xff]
        %v1373 = vld [vmem:[%s1371 + $0x8] sm:$0xff]
        %v1374 = vld [vmem:[%s1371 + $0x10] sm:$0xff]
        %v1375 = vld [vmem:[%s1371 + $0x18] sm:$0xff]
        %1376 = vmatpush.msra.mxu0 0.0
        %1377 = vmatpush.msra.mxu0 0.0
        %1378 = vmatpush.msra.mxu0 0.0
        %1379 = vmatpush.msra.mxu0 0.0
        %1380 = vmatpush.msra.mxu0 0.0
        %1381 = vmatpush.msra.mxu0 0.0
        %1382 = vmatpush.msra.mxu0 0.0
        %1383 = vmatpush.msra.mxu0 0.0
        %1384 = vmatpush.msra.mxu0 0.0
        %1385 = vmatpush.msra.mxu0 0.0
        %1386 = vmatpush.msra.mxu0 0.0
        %1387 = vmatpush.msra.mxu0 0.0
        %1388 = vmatpush.msra.mxu0 %v1375
        %1389 = vmatpush.msra.mxu0 %v1374
        %1390 = vmatpush.msra.mxu0 %v1373
        %1391 = vmatpush.msra.mxu0 %v1372
        %1392 = vmatmul.f32.gmra.mxu0 %v1324
        %v1393 = vpop.f32.mrf.mxu0
        %v1394 = vadd.f32 0.0, %v1393
        %1395 = vdwg.mxu0
        %v1396 = vmul.f32 %v1344, %v592
        %v1398 = vsel %vm607, %v1344, 0
        %1400 = vmatpush.msra.mxu0 0.0
        %1401 = vmatpush.msra.mxu0 0.0
        %1402 = vmatpush.msra.mxu0 0.0
        %1403 = vmatpush.msra.mxu0 0.0
        %1404 = vmatpush.msra.mxu0 0.0
        %1405 = vmatpush.msra.mxu0 0.0
        %1406 = vmatpush.msra.mxu0 0.0
        %1407 = vmatpush.msra.mxu0 0.0
        %1408 = vmatpush.msra.mxu0 0.0
        %1409 = vmatpush.msra.mxu0 0.0
        %1410 = vmatpush.msra.mxu0 0.0
        %1411 = vmatpush.msra.mxu0 0.0
        %1412 = vmatpush.msra.mxu0 %v597
        %1413 = vmatpush.msra.mxu0 %v596
        %1414 = vmatpush.msra.mxu0 %v595
        %1415 = vmatpush.msra.mxu0 %v594
        %1416 = vmatmul.f32.gmra.mxu0 %v1398
        %v1417 = vpop.f32.mrf.mxu0
        %v1418 = vadd.f32 0.0, %v1417
        %1419 = vdwg.mxu0
        %v1420 = vmul.f32 %v1418, %v593
        %v1421 = vadd.f32 %v1396, %v1420
        %v1422 = vmul.f32 %v1369, %v592
        %v1424 = vsel %vm737, %v1369, 0
        %1426 = vmatpush.msra.mxu0 0.0
        %1427 = vmatpush.msra.mxu0 0.0
        %1428 = vmatpush.msra.mxu0 0.0
        %1429 = vmatpush.msra.mxu0 0.0
        %1430 = vmatpush.msra.mxu0 0.0
        %1431 = vmatpush.msra.mxu0 0.0
        %1432 = vmatpush.msra.mxu0 0.0
        %1433 = vmatpush.msra.mxu0 0.0
        %1434 = vmatpush.msra.mxu0 0.0
        %1435 = vmatpush.msra.mxu0 0.0
        %1436 = vmatpush.msra.mxu0 0.0
        %1437 = vmatpush.msra.mxu0 0.0
        %1438 = vmatpush.msra.mxu0 0.0
        %1439 = vmatpush.msra.mxu0 0.0
        %1440 = vmatpush.msra.mxu0 %v599
        %1441 = vmatpush.msra.mxu0 %v598
        %1442 = vmatmul.f32.gmra.mxu0 %v1424
        %v1443 = vpop.f32.mrf.mxu0
        %v1444 = vadd.f32 0.0, %v1443
        %1445 = vdwg.mxu0
        %v1446 = vmul.f32 %v1444, %v593
        %v1447 = vadd.f32 %v1422, %v1446
        %s1448 = scalar_lea.vmem %s572, 8 [#allocation4]
        %1449 = vst.msk [vmem:[%s1448] sm:$0xff] %vm737, %v1447
        %s1450 = scalar_lea.vmem %s578, 8 [#allocation5]
        %1451 = vst.msk [vmem:[%s1450] sm:$0xff] %vm737, %v1394
        %s1452 = scalar_lea.vmem %s8, 32
        %v1453 = vld [vmem:[%s1452] sm:$0xff]
        %v1454 = vld [vmem:[%s1452 + $0x8] sm:$0xff]
        %v1455 = vld [vmem:[%s1452 + $0x10] sm:$0xff]
        %v1456 = vld [vmem:[%s1452 + $0x18] sm:$0xff]
        %v1458 = vsel %vm769, %v1421, 0
        %v1461 = vsel %vm769, %v1447, 0
        %1463 = vmatpush.xpose.msra.mxu0 0.0
        %1464 = vmatpush.xpose.msra.mxu0 0.0
        %1465 = vmatpush.xpose.msra.mxu0 0.0
        %1466 = vmatpush.xpose.msra.mxu0 0.0
        %1467 = vmatpush.xpose.msra.mxu0 0.0
        %1468 = vmatpush.xpose.msra.mxu0 0.0
        %1469 = vmatpush.xpose.msra.mxu0 0.0
        %1470 = vmatpush.xpose.msra.mxu0 0.0
        %1471 = vmatpush.xpose.msra.mxu0 0.0
        %1472 = vmatpush.xpose.msra.mxu0 0.0
        %1473 = vmatpush.xpose.msra.mxu0 0.0
        %1474 = vmatpush.xpose.msra.mxu0 0.0
        %1475 = vmatpush.xpose.msra.mxu0 0.0
        %1476 = vmatpush.xpose.msra.mxu0 0.0
        %1477 = vmatpush.xpose.msra.mxu0 0.0
        %1478 = vmatpush.xpose.msra.mxu0 %v1461
        %1479 = vmatmul.f32.gmra.mxu0 %v1458
        %v1480 = vpop.f32.mrf.mxu0
        %v1481 = vadd.f32 0.0, %v1480
        %1482 = vdwg.mxu0
        %v1483 = vmul.f32 %v1481, 0.35355338
        %v1484 = vsel %vm604, %v1483, -1e+30
        %v1485 = vsel %vm769, %v1484, -inf
        %1486 = vmax.xlane.f32.xlu0 %v1485
        %v1487 = vpop.xlane.xlu0 %1486
        %v1488 = vsub.f32 %v1484, %v1487
        %v1489 = vmul.f32 %v1488, 1.442695
        %v1490 = vpow.pop %v1489
        %v1491 = vsel %vm769, %v1490, 0.0
        %1492 = vadd.xlane.f32.xlu0 %v1491
        %v1493 = vpop.xlane.xlu0 %1492
        %v1495 = vsel %vm769, %v1490, 0
        %1497 = vmatpush.msra.mxu0 0.0
        %1498 = vmatpush.msra.mxu0 0.0
        %1499 = vmatpush.msra.mxu0 0.0
        %1500 = vmatpush.msra.mxu0 0.0
        %1501 = vmatpush.msra.mxu0 0.0
        %1502 = vmatpush.msra.mxu0 0.0
        %1503 = vmatpush.msra.mxu0 0.0
        %1504 = vmatpush.msra.mxu0 0.0
        %1505 = vmatpush.msra.mxu0 0.0
        %1506 = vmatpush.msra.mxu0 0.0
        %1507 = vmatpush.msra.mxu0 0.0
        %1508 = vmatpush.msra.mxu0 0.0
        %1509 = vmatpush.msra.mxu0 0.0
        %1510 = vmatpush.msra.mxu0 0.0
        %1511 = vmatpush.msra.mxu0 0.0
        %1512 = vmatpush.msra.mxu0 %v1394
        %1513 = vmatmul.f32.gmra.mxu0 %v1495
        %v1514 = vpop.f32.mrf.mxu0
        %v1515 = vadd.f32 0.0, %v1514
        %1516 = vdwg.mxu0
        %v1517 = vrcp.pop %v1493
        %v1518 = vmul.f32 %v1493, %v1517
        %v1519 = vsub.f32 1.0, %v1518
        %v1520 = vmul.f32 %v1517, %v1519
        %v1521 = vadd.f32 %v1517, %v1520
        %vm1522 = vweird.f32 %v1493
        %vm1523 = vweird.f32 %v1517
        %vm1524 = vmor %vm1522, %vm1523
        %v1525 = vsel %vm1524, %v1517, %v1521
        %v1526 = vand.u32 2147483647, %v1493
        %vm1527 = vcmp.eq.f32.partialorder %v1526, 8.507059e+37
        %v1528 = vand.u32 %v1493, 2147483648
        %v1529 = vor.u32 1.1754944e-38, %v1528
        %v1530 = vsel %vm1527, %v1529, %v1525
        %v1531 = vmul.f32 %v1515, %v1530
        %v1533 = vsel %vm769, %v1531, 0
        %1535 = vmatpush.msra.mxu0 0.0
        %1536 = vmatpush.msra.mxu0 0.0
        %1537 = vmatpush.msra.mxu0 0.0
        %1538 = vmatpush.msra.mxu0 0.0
        %1539 = vmatpush.msra.mxu0 0.0
        %1540 = vmatpush.msra.mxu0 0.0
        %1541 = vmatpush.msra.mxu0 0.0
        %1542 = vmatpush.msra.mxu0 0.0
        %1543 = vmatpush.msra.mxu0 0.0
        %1544 = vmatpush.msra.mxu0 0.0
        %1545 = vmatpush.msra.mxu0 0.0
        %1546 = vmatpush.msra.mxu0 0.0
        %1547 = vmatpush.msra.mxu0 0.0
        %1548 = vmatpush.msra.mxu0 0.0
        %1549 = vmatpush.msra.mxu0 0.0
        %1550 = vmatpush.msra.mxu0 %v1453
        %1551 = vmatmul.f32.gmra.mxu0 %v1533
        %v1552 = vpop.f32.mrf.mxu0
        %v1553 = vadd.f32 0.0, %v1552
        %1554 = vdwg.mxu0
        %v1555 = vadd.f32 %v1294, %v1553
        %1556 = vrot.lane.b32.xlu0 %v1421, 120
        %v1557 = vpop.permute.xlu0 %1556
        %v1558 = vsel %vm769, %v1557, 0
        %1560 = vmatpush.xpose.msra.mxu0 0.0
        %1561 = vmatpush.xpose.msra.mxu0 0.0
        %1562 = vmatpush.xpose.msra.mxu0 0.0
        %1563 = vmatpush.xpose.msra.mxu0 0.0
        %1564 = vmatpush.xpose.msra.mxu0 0.0
        %1565 = vmatpush.xpose.msra.mxu0 0.0
        %1566 = vmatpush.xpose.msra.mxu0 0.0
        %1567 = vmatpush.xpose.msra.mxu0 0.0
        %1568 = vmatpush.xpose.msra.mxu0 0.0
        %1569 = vmatpush.xpose.msra.mxu0 0.0
        %1570 = vmatpush.xpose.msra.mxu0 0.0
        %1571 = vmatpush.xpose.msra.mxu0 0.0
        %1572 = vmatpush.xpose.msra.mxu0 0.0
        %1573 = vmatpush.xpose.msra.mxu0 0.0
        %1574 = vmatpush.xpose.msra.mxu0 0.0
        %1575 = vmatpush.xpose.msra.mxu0 %v1461
        %1576 = vmatmul.f32.gmra.mxu0 %v1558
        %v1577 = vpop.f32.mrf.mxu0
        %v1578 = vadd.f32 0.0, %v1577
        %1579 = vdwg.mxu0
        %v1580 = vmul.f32 %v1578, 0.35355338
        %v1581 = vsel %vm604, %v1580, -1e+30
        %v1582 = vsel %vm769, %v1581, -inf
        %1583 = vmax.xlane.f32.xlu0 %v1582
        %v1584 = vpop.xlane.xlu0 %1583
        %v1585 = vsub.f32 %v1581, %v1584
        %v1586 = vmul.f32 %v1585, 1.442695
        %v1587 = vpow.pop %v1586
        %v1588 = vsel %vm769, %v1587, 0.0
        %1589 = vadd.xlane.f32.xlu0 %v1588
        %v1590 = vpop.xlane.xlu0 %1589
        %v1592 = vsel %vm769, %v1587, 0
        %1594 = vmatpush.msra.mxu0 0.0
        %1595 = vmatpush.msra.mxu0 0.0
        %1596 = vmatpush.msra.mxu0 0.0
        %1597 = vmatpush.msra.mxu0 0.0
        %1598 = vmatpush.msra.mxu0 0.0
        %1599 = vmatpush.msra.mxu0 0.0
        %1600 = vmatpush.msra.mxu0 0.0
        %1601 = vmatpush.msra.mxu0 0.0
        %1602 = vmatpush.msra.mxu0 0.0
        %1603 = vmatpush.msra.mxu0 0.0
        %1604 = vmatpush.msra.mxu0 0.0
        %1605 = vmatpush.msra.mxu0 0.0
        %1606 = vmatpush.msra.mxu0 0.0
        %1607 = vmatpush.msra.mxu0 0.0
        %1608 = vmatpush.msra.mxu0 0.0
        %1609 = vmatpush.msra.mxu0 %v1394
        %1610 = vmatmul.f32.gmra.mxu0 %v1592
        %v1611 = vpop.f32.mrf.mxu0
        %v1612 = vadd.f32 0.0, %v1611
        %1613 = vdwg.mxu0
        %v1614 = vrcp.pop %v1590
        %v1615 = vmul.f32 %v1590, %v1614
        %v1616 = vsub.f32 1.0, %v1615
        %v1617 = vmul.f32 %v1614, %v1616
        %v1618 = vadd.f32 %v1614, %v1617
        %vm1619 = vweird.f32 %v1590
        %vm1620 = vweird.f32 %v1614
        %vm1621 = vmor %vm1619, %vm1620
        %v1622 = vsel %vm1621, %v1614, %v1618
        %v1623 = vand.u32 2147483647, %v1590
        %vm1624 = vcmp.eq.f32.partialorder %v1623, 8.507059e+37
        %v1625 = vand.u32 %v1590, 2147483648
        %v1626 = vor.u32 1.1754944e-38, %v1625
        %v1627 = vsel %vm1624, %v1626, %v1622
        %v1628 = vmul.f32 %v1612, %v1627
        %v1630 = vsel %vm769, %v1628, 0
        %1632 = vmatpush.msra.mxu0 0.0
        %1633 = vmatpush.msra.mxu0 0.0
        %1634 = vmatpush.msra.mxu0 0.0
        %1635 = vmatpush.msra.mxu0 0.0
        %1636 = vmatpush.msra.mxu0 0.0
        %1637 = vmatpush.msra.mxu0 0.0
        %1638 = vmatpush.msra.mxu0 0.0
        %1639 = vmatpush.msra.mxu0 0.0
        %1640 = vmatpush.msra.mxu0 0.0
        %1641 = vmatpush.msra.mxu0 0.0
        %1642 = vmatpush.msra.mxu0 0.0
        %1643 = vmatpush.msra.mxu0 0.0
        %1644 = vmatpush.msra.mxu0 0.0
        %1645 = vmatpush.msra.mxu0 0.0
        %1646 = vmatpush.msra.mxu0 0.0
        %1647 = vmatpush.msra.mxu0 %v1454
        %1648 = vmatmul.f32.gmra.mxu0 %v1630
        %v1649 = vpop.f32.mrf.mxu0
        %v1650 = vadd.f32 0.0, %v1649
        %1651 = vdwg.mxu0
        %v1652 = vadd.f32 %v1555, %v1650
        %1653 = vrot.lane.b32.xlu0 %v1421, 112
        %v1654 = vpop.permute.xlu0 %1653
        %1655 = vrot.lane.b32.xlu0 %v1447, 120
        %v1656 = vpop.permute.xlu0 %1655
        %v1657 = vsel %vm769, %v1654, 0
        %v1659 = vsel %vm769, %v1656, 0
        %1661 = vmatpush.xpose.msra.mxu0 0.0
        %1662 = vmatpush.xpose.msra.mxu0 0.0
        %1663 = vmatpush.xpose.msra.mxu0 0.0
        %1664 = vmatpush.xpose.msra.mxu0 0.0
        %1665 = vmatpush.xpose.msra.mxu0 0.0
        %1666 = vmatpush.xpose.msra.mxu0 0.0
        %1667 = vmatpush.xpose.msra.mxu0 0.0
        %1668 = vmatpush.xpose.msra.mxu0 0.0
        %1669 = vmatpush.xpose.msra.mxu0 0.0
        %1670 = vmatpush.xpose.msra.mxu0 0.0
        %1671 = vmatpush.xpose.msra.mxu0 0.0
        %1672 = vmatpush.xpose.msra.mxu0 0.0
        %1673 = vmatpush.xpose.msra.mxu0 0.0
        %1674 = vmatpush.xpose.msra.mxu0 0.0
        %1675 = vmatpush.xpose.msra.mxu0 0.0
        %1676 = vmatpush.xpose.msra.mxu0 %v1659
        %1677 = vmatmul.f32.gmra.mxu0 %v1657
        %v1678 = vpop.f32.mrf.mxu0
        %v1679 = vadd.f32 0.0, %v1678
        %1680 = vdwg.mxu0
        %v1681 = vmul.f32 %v1679, 0.35355338
        %v1682 = vsel %vm604, %v1681, -1e+30
        %v1683 = vsel %vm769, %v1682, -inf
        %1684 = vmax.xlane.f32.xlu0 %v1683
        %v1685 = vpop.xlane.xlu0 %1684
        %v1686 = vsub.f32 %v1682, %v1685
        %v1687 = vmul.f32 %v1686, 1.442695
        %v1688 = vpow.pop %v1687
        %v1689 = vsel %vm769, %v1688, 0.0
        %1690 = vadd.xlane.f32.xlu0 %v1689
        %v1691 = vpop.xlane.xlu0 %1690
        %1693 = vrot.lane.b32.xlu0 %v1394, 120
        %v1694 = vpop.permute.xlu0 %1693
        %v1697 = vsel %vm769, %v1688, 0
        %1699 = vmatpush.msra.mxu0 0.0
        %1700 = vmatpush.msra.mxu0 0.0
        %1701 = vmatpush.msra.mxu0 0.0
        %1702 = vmatpush.msra.mxu0 0.0
        %1703 = vmatpush.msra.mxu0 0.0
        %1704 = vmatpush.msra.mxu0 0.0
        %1705 = vmatpush.msra.mxu0 0.0
        %1706 = vmatpush.msra.mxu0 0.0
        %1707 = vmatpush.msra.mxu0 0.0
        %1708 = vmatpush.msra.mxu0 0.0
        %1709 = vmatpush.msra.mxu0 0.0
        %1710 = vmatpush.msra.mxu0 0.0
        %1711 = vmatpush.msra.mxu0 0.0
        %1712 = vmatpush.msra.mxu0 0.0
        %1713 = vmatpush.msra.mxu0 0.0
        %1714 = vmatpush.msra.mxu0 %v1694
        %1715 = vmatmul.f32.gmra.mxu0 %v1697
        %v1716 = vpop.f32.mrf.mxu0
        %v1717 = vadd.f32 0.0, %v1716
        %1718 = vdwg.mxu0
        %v1719 = vrcp.pop %v1691
        %v1720 = vmul.f32 %v1691, %v1719
        %v1721 = vsub.f32 1.0, %v1720
        %v1722 = vmul.f32 %v1719, %v1721
        %v1723 = vadd.f32 %v1719, %v1722
        %vm1724 = vweird.f32 %v1691
        %vm1725 = vweird.f32 %v1719
        %vm1726 = vmor %vm1724, %vm1725
        %v1727 = vsel %vm1726, %v1719, %v1723
        %v1728 = vand.u32 2147483647, %v1691
        %vm1729 = vcmp.eq.f32.partialorder %v1728, 8.507059e+37
        %v1730 = vand.u32 %v1691, 2147483648
        %v1731 = vor.u32 1.1754944e-38, %v1730
        %v1732 = vsel %vm1729, %v1731, %v1727
        %v1733 = vmul.f32 %v1717, %v1732
        %v1735 = vsel %vm769, %v1733, 0
        %1737 = vmatpush.msra.mxu0 0.0
        %1738 = vmatpush.msra.mxu0 0.0
        %1739 = vmatpush.msra.mxu0 0.0
        %1740 = vmatpush.msra.mxu0 0.0
        %1741 = vmatpush.msra.mxu0 0.0
        %1742 = vmatpush.msra.mxu0 0.0
        %1743 = vmatpush.msra.mxu0 0.0
        %1744 = vmatpush.msra.mxu0 0.0
        %1745 = vmatpush.msra.mxu0 0.0
        %1746 = vmatpush.msra.mxu0 0.0
        %1747 = vmatpush.msra.mxu0 0.0
        %1748 = vmatpush.msra.mxu0 0.0
        %1749 = vmatpush.msra.mxu0 0.0
        %1750 = vmatpush.msra.mxu0 0.0
        %1751 = vmatpush.msra.mxu0 0.0
        %1752 = vmatpush.msra.mxu0 %v1455
        %1753 = vmatmul.f32.gmra.mxu0 %v1735
        %v1754 = vpop.f32.mrf.mxu0
        %v1755 = vadd.f32 0.0, %v1754
        %1756 = vdwg.mxu0
        %v1757 = vadd.f32 %v1652, %v1755
        %1758 = vrot.lane.b32.xlu0 %v1421, 104
        %v1759 = vpop.permute.xlu0 %1758
        %v1760 = vsel %vm769, %v1759, 0
        %1762 = vmatpush.xpose.msra.mxu0 0.0
        %1763 = vmatpush.xpose.msra.mxu0 0.0
        %1764 = vmatpush.xpose.msra.mxu0 0.0
        %1765 = vmatpush.xpose.msra.mxu0 0.0
        %1766 = vmatpush.xpose.msra.mxu0 0.0
        %1767 = vmatpush.xpose.msra.mxu0 0.0
        %1768 = vmatpush.xpose.msra.mxu0 0.0
        %1769 = vmatpush.xpose.msra.mxu0 0.0
        %1770 = vmatpush.xpose.msra.mxu0 0.0
        %1771 = vmatpush.xpose.msra.mxu0 0.0
        %1772 = vmatpush.xpose.msra.mxu0 0.0
        %1773 = vmatpush.xpose.msra.mxu0 0.0
        %1774 = vmatpush.xpose.msra.mxu0 0.0
        %1775 = vmatpush.xpose.msra.mxu0 0.0
        %1776 = vmatpush.xpose.msra.mxu0 0.0
        %1777 = vmatpush.xpose.msra.mxu0 %v1659
        %1778 = vmatmul.f32.gmra.mxu0 %v1760
        %v1779 = vpop.f32.mrf.mxu0
        %v1780 = vadd.f32 0.0, %v1779
        %1781 = vdwg.mxu0
        %v1782 = vmul.f32 %v1780, 0.35355338
        %v1783 = vsel %vm604, %v1782, -1e+30
        %v1784 = vsel %vm769, %v1783, -inf
        %1785 = vmax.xlane.f32.xlu0 %v1784
        %v1786 = vpop.xlane.xlu0 %1785
        %v1787 = vsub.f32 %v1783, %v1786
        %v1788 = vmul.f32 %v1787, 1.442695
        %v1789 = vpow.pop %v1788
        %v1790 = vsel %vm769, %v1789, 0.0
        %1791 = vadd.xlane.f32.xlu0 %v1790
        %v1792 = vpop.xlane.xlu0 %1791
        %v1794 = vsel %vm769, %v1789, 0
        %1796 = vmatpush.msra.mxu0 0.0
        %1797 = vmatpush.msra.mxu0 0.0
        %1798 = vmatpush.msra.mxu0 0.0
        %1799 = vmatpush.msra.mxu0 0.0
        %1800 = vmatpush.msra.mxu0 0.0
        %1801 = vmatpush.msra.mxu0 0.0
        %1802 = vmatpush.msra.mxu0 0.0
        %1803 = vmatpush.msra.mxu0 0.0
        %1804 = vmatpush.msra.mxu0 0.0
        %1805 = vmatpush.msra.mxu0 0.0
        %1806 = vmatpush.msra.mxu0 0.0
        %1807 = vmatpush.msra.mxu0 0.0
        %1808 = vmatpush.msra.mxu0 0.0
        %1809 = vmatpush.msra.mxu0 0.0
        %1810 = vmatpush.msra.mxu0 0.0
        %1811 = vmatpush.msra.mxu0 %v1694
        %1812 = vmatmul.f32.gmra.mxu0 %v1794
        %v1813 = vpop.f32.mrf.mxu0
        %v1814 = vadd.f32 0.0, %v1813
        %1815 = vdwg.mxu0
        %v1816 = vrcp.pop %v1792
        %v1817 = vmul.f32 %v1792, %v1816
        %v1818 = vsub.f32 1.0, %v1817
        %v1819 = vmul.f32 %v1816, %v1818
        %v1820 = vadd.f32 %v1816, %v1819
        %vm1821 = vweird.f32 %v1792
        %vm1822 = vweird.f32 %v1816
        %vm1823 = vmor %vm1821, %vm1822
        %v1824 = vsel %vm1823, %v1816, %v1820
        %v1825 = vand.u32 2147483647, %v1792
        %vm1826 = vcmp.eq.f32.partialorder %v1825, 8.507059e+37
        %v1827 = vand.u32 %v1792, 2147483648
        %v1828 = vor.u32 1.1754944e-38, %v1827
        %v1829 = vsel %vm1826, %v1828, %v1824
        %v1830 = vmul.f32 %v1814, %v1829
        %v1832 = vsel %vm769, %v1830, 0
        %1834 = vmatpush.msra.mxu0 0.0
        %1835 = vmatpush.msra.mxu0 0.0
        %1836 = vmatpush.msra.mxu0 0.0
        %1837 = vmatpush.msra.mxu0 0.0
        %1838 = vmatpush.msra.mxu0 0.0
        %1839 = vmatpush.msra.mxu0 0.0
        %1840 = vmatpush.msra.mxu0 0.0
        %1841 = vmatpush.msra.mxu0 0.0
        %1842 = vmatpush.msra.mxu0 0.0
        %1843 = vmatpush.msra.mxu0 0.0
        %1844 = vmatpush.msra.mxu0 0.0
        %1845 = vmatpush.msra.mxu0 0.0
        %1846 = vmatpush.msra.mxu0 0.0
        %1847 = vmatpush.msra.mxu0 0.0
        %1848 = vmatpush.msra.mxu0 0.0
        %1849 = vmatpush.msra.mxu0 %v1456
        %1850 = vmatmul.f32.gmra.mxu0 %v1832
        %v1851 = vpop.f32.mrf.mxu0
        %v1852 = vadd.f32 0.0, %v1851
        %1853 = vdwg.mxu0
        %v1854 = vadd.f32 %v1757, %v1852
        %s1855 = scalar_lea.vmem %s13, 1
        %v1856 = vld [vmem:[%s1855] sm:$0x1]
        %v1857 = vmul.f32 %v1854, %v1854
        %v1858 = vsel %vm607, %v1857, 0.0
        %1859 = vadd.xlane.f32.xlu0 %v1858
        %v1860 = vpop.xlane.xlu0 %1859
        %v1861 = vmul.f32 %v1860, %v617
        %v1862 = vadd.f32 %v1861, 1e-06
        %v1863 = vrsqrt.pop %v1862
        %v1864 = vmul.f32 %v1863, %v1862
        %v1865 = vmul.f32 %v1864, %v1863
        %v1866 = vmul.f32 0.5, %v1865
        %v1867 = vsub.f32 1.5, %v1866
        %v1868 = vmul.f32 %v1863, %v1867
        %vm1869 = vweird.f32 %v1862
        %vm1870 = vweird.f32 %v1863
        %vm1871 = vmor %vm1869, %vm1870
        %v1872 = vsel %vm1871, %v1863, %v1868
        %v1873 = vmul.f32 %v1854, %v1872
        %v1875 = vperm.slane %v1856, 0
        %v1877 = vmul.f32 %v1875, %v1873
        %s1878 = scalar_lea.vmem %s9, 32
        %v1879 = vld [vmem:[%s1878] sm:$0xff]
        %v1880 = vld [vmem:[%s1878 + $0x8] sm:$0xff]
        %v1881 = vld [vmem:[%s1878 + $0x10] sm:$0xff]
        %v1882 = vld [vmem:[%s1878 + $0x18] sm:$0xff]
        %v1884 = vsel %vm607, %v1877, 0
        %1886 = vmatpush.msra.mxu0 0.0
        %1887 = vmatpush.msra.mxu0 0.0
        %1888 = vmatpush.msra.mxu0 0.0
        %1889 = vmatpush.msra.mxu0 0.0
        %1890 = vmatpush.msra.mxu0 0.0
        %1891 = vmatpush.msra.mxu0 0.0
        %1892 = vmatpush.msra.mxu0 0.0
        %1893 = vmatpush.msra.mxu0 0.0
        %1894 = vmatpush.msra.mxu0 0.0
        %1895 = vmatpush.msra.mxu0 0.0
        %1896 = vmatpush.msra.mxu0 0.0
        %1897 = vmatpush.msra.mxu0 0.0
        %1898 = vmatpush.msra.mxu0 %v1882
        %1899 = vmatpush.msra.mxu0 %v1881
        %1900 = vmatpush.msra.mxu0 %v1880
        %1901 = vmatpush.msra.mxu0 %v1879
        %1902 = vmatmul.f32.gmra.mxu0 %v1884
        %v1903 = vpop.f32.mrf.mxu0
        %v1904 = vadd.f32 0.0, %v1903
        %1905 = vdwg.mxu0
        %s1906 = scalar_lea.vmem %s10, 32
        %v1907 = vld [vmem:[%s1906] sm:$0xff]
        %v1908 = vld [vmem:[%s1906 + $0x8] sm:$0xff]
        %v1909 = vld [vmem:[%s1906 + $0x10] sm:$0xff]
        %v1910 = vld [vmem:[%s1906 + $0x18] sm:$0xff]
        %1911 = vmatpush.msra.mxu0 0.0
        %1912 = vmatpush.msra.mxu0 0.0
        %1913 = vmatpush.msra.mxu0 0.0
        %1914 = vmatpush.msra.mxu0 0.0
        %1915 = vmatpush.msra.mxu0 0.0
        %1916 = vmatpush.msra.mxu0 0.0
        %1917 = vmatpush.msra.mxu0 0.0
        %1918 = vmatpush.msra.mxu0 0.0
        %1919 = vmatpush.msra.mxu0 0.0
        %1920 = vmatpush.msra.mxu0 0.0
        %1921 = vmatpush.msra.mxu0 0.0
        %1922 = vmatpush.msra.mxu0 0.0
        %1923 = vmatpush.msra.mxu0 %v1910
        %1924 = vmatpush.msra.mxu0 %v1909
        %1925 = vmatpush.msra.mxu0 %v1908
        %1926 = vmatpush.msra.mxu0 %v1907
        %1927 = vmatmul.f32.gmra.mxu0 %v1884
        %v1928 = vpop.f32.mrf.mxu0
        %v1929 = vadd.f32 0.0, %v1928
        %1930 = vdwg.mxu0
        %v1931 = vxor.u32 %v1904, 2147483648
        %v1932 = vmul.f32 %v1931, 1.442695
        %v1933 = vpow.pop %v1932
        %v1934 = vadd.f32 %v1933, 1.0
        %v1935 = vrcp.pop %v1934
        %v1936 = vmul.f32 %v1934, %v1935
        %v1937 = vsub.f32 1.0, %v1936
        %v1938 = vmul.f32 %v1935, %v1937
        %v1939 = vadd.f32 %v1935, %v1938
        %vm1940 = vweird.f32 %v1934
        %vm1941 = vweird.f32 %v1935
        %vm1942 = vmor %vm1940, %vm1941
        %v1943 = vsel %vm1942, %v1935, %v1939
        %v1944 = vand.u32 2147483647, %v1934
        %vm1945 = vcmp.eq.f32.partialorder %v1944, 8.507059e+37
        %v1946 = vand.u32 %v1934, 2147483648
        %v1947 = vor.u32 1.1754944e-38, %v1946
        %v1948 = vsel %vm1945, %v1947, %v1943
        %v1949 = vmul.f32 1.0, %v1948
        %v1950 = vmul.f32 %v1904, %v1949
        %v1951 = vmul.f32 %v1929, %v1950
        %s1952 = scalar_lea.vmem %s11, 64
        %v1953 = vld [vmem:[%s1952] sm:$0xff]
        %v1954 = vld [vmem:[%s1952 + $0x8] sm:$0xff]
        %v1955 = vld [vmem:[%s1952 + $0x10] sm:$0xff]
        %v1956 = vld [vmem:[%s1952 + $0x18] sm:$0xff]
        %v1957 = vld [vmem:[%s1952 + $0x20] sm:$0xff]
        %v1958 = vld [vmem:[%s1952 + $0x28] sm:$0xff]
        %v1959 = vld [vmem:[%s1952 + $0x30] sm:$0xff]
        %v1960 = vld [vmem:[%s1952 + $0x38] sm:$0xff]
        %v1962 = vsel %vm1270, %v1951, 0
        %1964 = vmatpush.msra.mxu0 0.0
        %1965 = vmatpush.msra.mxu0 0.0
        %1966 = vmatpush.msra.mxu0 0.0
        %1967 = vmatpush.msra.mxu0 0.0
        %1968 = vmatpush.msra.mxu0 0.0
        %1969 = vmatpush.msra.mxu0 0.0
        %1970 = vmatpush.msra.mxu0 0.0
        %1971 = vmatpush.msra.mxu0 0.0
        %1972 = vmatpush.msra.mxu0 %v1960
        %1973 = vmatpush.msra.mxu0 %v1959
        %1974 = vmatpush.msra.mxu0 %v1958
        %1975 = vmatpush.msra.mxu0 %v1957
        %1976 = vmatpush.msra.mxu0 %v1956
        %1977 = vmatpush.msra.mxu0 %v1955
        %1978 = vmatpush.msra.mxu0 %v1954
        %1979 = vmatpush.msra.mxu0 %v1953
        %1980 = vmatmul.f32.gmra.mxu0 %v1962
        %v1981 = vpop.f32.mrf.mxu0
        %v1982 = vadd.f32 0.0, %v1981
        %1983 = vdwg.mxu0
        %v1984 = vadd.f32 %v1854, %v1982
        %v1985 = vld [vmem:[%s14] sm:$0x1]
        %v1986 = vmul.f32 %v1984, %v1984
        %v1987 = vsel %vm607, %v1986, 0.0
        %1988 = vadd.xlane.f32.xlu0 %v1987
        %v1989 = vpop.xlane.xlu0 %1988
        %v1990 = vmul.f32 %v1989, %v617
        %v1991 = vadd.f32 %v1990, 1e-06
        %v1992 = vrsqrt.pop %v1991
        %v1993 = vmul.f32 %v1992, %v1991
        %v1994 = vmul.f32 %v1993, %v1992
        %v1995 = vmul.f32 0.5, %v1994
        %v1996 = vsub.f32 1.5, %v1995
        %v1997 = vmul.f32 %v1992, %v1996
        %vm1998 = vweird.f32 %v1991
        %vm1999 = vweird.f32 %v1992
        %vm2000 = vmor %vm1998, %vm1999
        %v2001 = vsel %vm2000, %v1992, %v1997
        %v2002 = vmul.f32 %v1984, %v2001
        %v2004 = vperm.slane %v1985, 0
        %v2006 = vmul.f32 %v2004, %v2002
        %2007 = vst.msk [vmem:[%s566] sm:$0xff] %vm607, %v2006
        %s2008 = sand.u32 %s370, 1
        %s2009 = scalar_lea.sflag [#allocation3], %s2008
        %s2010 = sand.u32 %s370, 1
        %s2011 = smul.addr %s2010, 8
        %s2012 = scalar_lea.vmem [#allocation2], %s2011
        %s2013 = sand.u32 %s396, 1
        %s2014 = sand.u32 %s396, 1
        %s2015 = smul.addr %s2014, 16
        %s2016 = scalar_lea.vmem [#allocation4], %s2015
        %s2017 = sand.u32 %s422, 1
        %s2018 = sand.u32 %s422, 1
        %s2019 = smul.addr %s2018, 16
        %s2020 = scalar_lea.vmem [#allocation5], %s2019
        // Predicated region
        $region81: #{_lambda_.1} parent=79 // pred_check
          %p2021 = pneg %p380
        $region82: #{_lambda_.1} parent=79 // pred_check_branch
          %2023 = sbr.rel (%p2021) target = $region84
        $region83: #{_lambda_.1} parent=79 // pred_region
          %2025 = vsyncadd %s2009, 0
          %s2026 = smul.addr %s32, 8
          %s2027 = scalar_lea.hbm %s15, %s2026
          %s2029 = sshll.u32 %s2012, 4
          %s2030 = int_to_ptr.vmem [resolvable:$true] %s2029
          %s2031 = sshll.u32 %s2027, 4
          %s2032 = int_to_ptr.hbm [resolvable:$true] %s2031
          %2034 = dma.vmem_to_hbm [thread:$0]  %s2030, 128, %s2032, %s2009
        $region84: #{_lambda_.1} parent=79 // pred_fallthru
          _
        // Predicated region
        $region85: #{_lambda_.1} parent=79 // pred_check
          %p2035 = pneg %p406
        $region86: #{_lambda_.1} parent=79 // pred_check_branch
          %2037 = sbr.rel (%p2035) target = $region88
        $region87: #{_lambda_.1} parent=79 // pred_region
          %s2038 = smul.addr %s32, 8
          %s2039 = scalar_lea.vmem %s16, %s2038
          // Predicated region
          $region89: #{_lambda_.1} parent=87 // pred_check
            _
          $region90: #{_lambda_.1} parent=87 // pred_check_branch
            %2041 = sbr.rel (0) target = $region92
          $region91: #{_lambda_.1} parent=87 // pred_region
            // Predicated region
            $region93: #{_lambda_.1} parent=91 // pred_check
              _
            $region94: #{_lambda_.1} parent=91 // pred_check_branch
              %2043 = sbr.rel (0) target = $region96
            $region95: #{_lambda_.1} parent=91 // pred_region
              // Predicated region
              $region108: #{_lambda_.1} parent=95 // pred_check
                _
              $region109: #{_lambda_.1} parent=95 // pred_check_branch
                %2061 = sbr.rel (0) target = $region111
              $region110: #{_lambda_.1} parent=95 // pred_region
                loop: start=0, step=1, limit=1
                $region112: #{_lambda_.1} parent=110 // loop_pre_header
                  _
                $region113: #{_lambda_.1} parent=110 // loop_header
                  %s2063 = sphi 0, %s2067
                  %p2064 = scmp.ge.s32.totalorder %s2063, 1
                  %s2068 = sphi %s2016, %s2016
                  %s2069 = sphi %s2039, %s2039
                $region114: #{_lambda_.1} parent=110 // loop_header_branch
                  %2066 = sbr.rel (%p2064) target = $region118
                $region115: #{_lambda_.1} parent=110 // loop_body
                  %v2070 = vld [vmem:[%s2068] sm:$0xff]
                  %2071 = vst [vmem:[%s2069] sm:$0xff] %v2070
                  %v2072 = vld [vmem:[%s2068 + $0x8] sm:$0xff]
                  %2073 = vst [vmem:[%s2069 + $0x10] sm:$0xff] %v2072
                $region116: #{_lambda_.1} parent=110 // loop_footer
                  %s2067 = sadd.s32 1, %s2063
                $region117: #{_lambda_.1} parent=110 // loop_footer_branch
                  %2062 = sbr.rel target = $region113
                $region118: #{_lambda_.1} parent=110 // loop_exit
                  _
              $region111: #{_lambda_.1} parent=95 // pred_fallthru
                _
              // Predicated region
              $region119: #{_lambda_.1} parent=95 // pred_check
                _
              $region120: #{_lambda_.1} parent=95 // pred_check_branch
                %2075 = sbr.rel target = $region122
              $region121: #{_lambda_.1} parent=95 // pred_region
                _
              $region122: #{_lambda_.1} parent=95 // pred_fallthru
                _
            $region96: #{_lambda_.1} parent=91 // pred_fallthru
              _
            // Predicated region
            $region97: #{_lambda_.1} parent=91 // pred_check
              _
            $region98: #{_lambda_.1} parent=91 // pred_check_branch
              %2045 = sbr.rel target = $region100
            $region99: #{_lambda_.1} parent=91 // pred_region
              %s2047 = ssub.s32 256, 1
              loop: start=0, step=1, limit=1
              $region101: #{_lambda_.1} parent=99 // loop_pre_header
                _
              $region102: #{_lambda_.1} parent=99 // loop_header
                %s2049 = sphi 0, %s2053
                %p2050 = scmp.ge.s32.totalorder %s2049, 1
                %s2054 = sphi %s2016, %s2016
                %s2055 = sphi %s2039, %s2039
              $region103: #{_lambda_.1} parent=99 // loop_header_branch
                %2052 = sbr.rel (%p2050) target = $region107
              $region104: #{_lambda_.1} parent=99 // loop_body
                %v2056 = vld [vmem:[%s2054] sm:%s2047]
                %2057 = vst [vmem:[%s2055] sm:%s2047] %v2056
                %v2058 = vld [vmem:[%s2054 + $0x8] sm:%s2047]
                %2059 = vst [vmem:[%s2055 + $0x10] sm:%s2047] %v2058
              $region105: #{_lambda_.1} parent=99 // loop_footer
                %s2053 = sadd.s32 1, %s2049
              $region106: #{_lambda_.1} parent=99 // loop_footer_branch
                %2048 = sbr.rel target = $region102
              $region107: #{_lambda_.1} parent=99 // loop_exit
                _
            $region100: #{_lambda_.1} parent=91 // pred_fallthru
              _
          $region92: #{_lambda_.1} parent=87 // pred_fallthru
            _
          %2076 = vnop
        $region88: #{_lambda_.1} parent=79 // pred_fallthru
          _
        // Predicated region
        $region123: #{_lambda_.1} parent=79 // pred_check
          %p2077 = pneg %p432
        $region124: #{_lambda_.1} parent=79 // pred_check_branch
          %2079 = sbr.rel (%p2077) target = $region126
        $region125: #{_lambda_.1} parent=79 // pred_region
          %s2080 = smul.addr %s32, 8
          %s2081 = scalar_lea.vmem %s17, %s2080
          // Predicated region
          $region127: #{_lambda_.1} parent=125 // pred_check
            _
          $region128: #{_lambda_.1} parent=125 // pred_check_branch
            %2083 = sbr.rel (0) target = $region130
          $region129: #{_lambda_.1} parent=125 // pred_region
            // Predicated region
            $region131: #{_lambda_.1} parent=129 // pred_check
              _
            $region132: #{_lambda_.1} parent=129 // pred_check_branch
              %2085 = sbr.rel (0) target = $region134
            $region133: #{_lambda_.1} parent=129 // pred_region
              // Predicated region
              $region146: #{_lambda_.1} parent=133 // pred_check
                _
              $region147: #{_lambda_.1} parent=133 // pred_check_branch
                %2103 = sbr.rel (0) target = $region149
              $region148: #{_lambda_.1} parent=133 // pred_region
                loop: start=0, step=1, limit=1
                $region150: #{_lambda_.1} parent=148 // loop_pre_header
                  _
                $region151: #{_lambda_.1} parent=148 // loop_header
                  %s2105 = sphi 0, %s2109
                  %p2106 = scmp.ge.s32.totalorder %s2105, 1
                  %s2110 = sphi %s2020, %s2020
                  %s2111 = sphi %s2081, %s2081
                $region152: #{_lambda_.1} parent=148 // loop_header_branch
                  %2108 = sbr.rel (%p2106) target = $region156
                $region153: #{_lambda_.1} parent=148 // loop_body
                  %v2112 = vld [vmem:[%s2110] sm:$0xff]
                  %2113 = vst [vmem:[%s2111] sm:$0xff] %v2112
                  %v2114 = vld [vmem:[%s2110 + $0x8] sm:$0xff]
                  %2115 = vst [vmem:[%s2111 + $0x10] sm:$0xff] %v2114
                $region154: #{_lambda_.1} parent=148 // loop_footer
                  %s2109 = sadd.s32 1, %s2105
                $region155: #{_lambda_.1} parent=148 // loop_footer_branch
                  %2104 = sbr.rel target = $region151
                $region156: #{_lambda_.1} parent=148 // loop_exit
                  _
              $region149: #{_lambda_.1} parent=133 // pred_fallthru
                _
              // Predicated region
              $region157: #{_lambda_.1} parent=133 // pred_check
                _
              $region158: #{_lambda_.1} parent=133 // pred_check_branch
                %2117 = sbr.rel target = $region160
              $region159: #{_lambda_.1} parent=133 // pred_region
                _
              $region160: #{_lambda_.1} parent=133 // pred_fallthru
                _
            $region134: #{_lambda_.1} parent=129 // pred_fallthru
              _
            // Predicated region
            $region135: #{_lambda_.1} parent=129 // pred_check
              _
            $region136: #{_lambda_.1} parent=129 // pred_check_branch
              %2087 = sbr.rel target = $region138
            $region137: #{_lambda_.1} parent=129 // pred_region
              %s2089 = ssub.s32 256, 1
              loop: start=0, step=1, limit=1
              $region139: #{_lambda_.1} parent=137 // loop_pre_header
                _
              $region140: #{_lambda_.1} parent=137 // loop_header
                %s2091 = sphi 0, %s2095
                %p2092 = scmp.ge.s32.totalorder %s2091, 1
                %s2096 = sphi %s2020, %s2020
                %s2097 = sphi %s2081, %s2081
              $region141: #{_lambda_.1} parent=137 // loop_header_branch
                %2094 = sbr.rel (%p2092) target = $region145
              $region142: #{_lambda_.1} parent=137 // loop_body
                %v2098 = vld [vmem:[%s2096] sm:%s2089]
                %2099 = vst [vmem:[%s2097] sm:%s2089] %v2098
                %v2100 = vld [vmem:[%s2096 + $0x8] sm:%s2089]
                %2101 = vst [vmem:[%s2097 + $0x10] sm:%s2089] %v2100
              $region143: #{_lambda_.1} parent=137 // loop_footer
                %s2095 = sadd.s32 1, %s2091
              $region144: #{_lambda_.1} parent=137 // loop_footer_branch
                %2090 = sbr.rel target = $region140
              $region145: #{_lambda_.1} parent=137 // loop_exit
                _
            $region138: #{_lambda_.1} parent=129 // pred_fallthru
              _
          $region130: #{_lambda_.1} parent=125 // pred_fallthru
            _
          %2118 = vnop
        $region126: #{_lambda_.1} parent=79 // pred_fallthru
          _
      $region80: #{_lambda_.1} parent=5 // pred_fallthru
        _
      %p2119 = scmp.le.s32.totalorder 2, %s27
      // Predicated region
      $region161: #{_lambda_.1} parent=5 // pred_check
        %p2120 = pneg %p2119
      $region162: #{_lambda_.1} parent=5 // pred_check_branch
        %2122 = sbr.rel (%p2120) target = $region164
      $region163: #{_lambda_.1} parent=5 // pred_region
        %s2123 = ssub.s32 %s27, 2
        // Predicated region
        $region165: #{_lambda_.1} parent=163 // pred_check
          %p2124 = pneg %p386
        $region166: #{_lambda_.1} parent=163 // pred_check_branch
          %2126 = sbr.rel (%p2124) target = $region168
        $region167: #{_lambda_.1} parent=163 // pred_region
          %s2127 = sand.u32 %s371, 1
          %s2128 = scalar_lea.sflag [#allocation3], %s2127
          %s2129 = sand.u32 %s371, 1
          %s2130 = smul.addr %s2129, 8
          %s2131 = scalar_lea.vmem [#allocation2], %s2130
          %2133 = dma.done %s2128, 128
        $region168: #{_lambda_.1} parent=163 // pred_fallthru
          _
        // Predicated region
        $region169: #{_lambda_.1} parent=163 // pred_check
          %p2134 = pneg %p412
        $region170: #{_lambda_.1} parent=163 // pred_check_branch
          %2136 = sbr.rel (%p2134) target = $region172
        $region171: #{_lambda_.1} parent=163 // pred_region
          %s2137 = sand.u32 %s397, 1
          %s2138 = sand.u32 %s397, 1
          %s2139 = smul.addr %s2138, 16
          %s2140 = scalar_lea.vmem [#allocation4], %s2139
        $region172: #{_lambda_.1} parent=163 // pred_fallthru
          _
        // Predicated region
        $region173: #{_lambda_.1} parent=163 // pred_check
          %p2141 = pneg %p438
        $region174: #{_lambda_.1} parent=163 // pred_check_branch
          %2143 = sbr.rel (%p2141) target = $region176
        $region175: #{_lambda_.1} parent=163 // pred_region
          %s2144 = sand.u32 %s423, 1
          %s2145 = sand.u32 %s423, 1
          %s2146 = smul.addr %s2145, 16
          %s2147 = scalar_lea.vmem [#allocation5], %s2146
        $region176: #{_lambda_.1} parent=163 // pred_fallthru
          _
      $region164: #{_lambda_.1} parent=5 // pred_fallthru
        _
    $region6: #{_lambda_.1} parent=1 // loop_footer
      %s31 = sadd.s32 1, %s27
    $region7: #{_lambda_.1} parent=1 // loop_footer_branch
      %26 = sbr.rel target = $region3
    $region8: #{_lambda_.1} parent=1 // loop_exit
      _
    %2148 = vsyncpa [#allocation3], 1
    %s2149 = scalar_lea.sflag [#allocation3], 1
    %2150 = vsyncpa %s2149, 1

</llo_original>
